<compile_context>
chip_gen: v6e
topology: v6e:2x2x1
jax: 0.10.0
libtpu: 0.0.40
codegen_flags: <defaults>
</compile_context>

<pallas_src>
import functools

import numpy as np
import jax
import jax.numpy as jnp
from jax import lax
from jax.experimental import pallas as pl
from jax.experimental.pallas import tpu as pltpu

NEG_SLOPE = 0.01          # LeakyReLU slope used by the model's activations.


# --------------------------------------------------------------------------
# network structure (mirrors Autoencoder._make_network with batch_norm=False)
# --------------------------------------------------------------------------

def _layer_configs(scales, depth, latent, colors):
    """Conv layers: kernel size, channels, activation flag, and the spatial
    transformation ('pool' / 'up' / None) that follows the conv."""
    enc = [dict(K=1, cin=colors, cout=depth, act=False, after=None)]
    cin = depth
    for s in range(scales):
        k = depth * (2 ** s)
        enc.append(dict(K=3, cin=cin, cout=k, act=True, after="pool"))
        cin = k
    k = depth << scales
    enc.append(dict(K=3, cin=cin, cout=k, act=True, after=None))
    enc.append(dict(K=3, cin=k, cout=latent, act=False, after=None))

    dec = []
    cin = latent
    for s in range(scales):
        k = depth * (2 ** s)
        dec.append(dict(K=3, cin=cin, cout=k, act=True, after="up"))
        cin = k
    dec.append(dict(K=3, cin=cin, cout=depth, act=True, after=None))
    dec.append(dict(K=3, cin=depth, cout=colors, act=False, after=None))
    return enc, dec


# --------------------------------------------------------------------------
# trace-time constants (tiny numpy glue)
# --------------------------------------------------------------------------

def _border_mask(H, W):
    """((H+2)*(W+2),) f32: 1 on the valid HxW interior, 0 on the 1-px border."""
    m = np.zeros((H + 2, W + 2), np.float32)
    m[1:H + 1, 1:W + 1] = 1.0
    return m.reshape(-1)


def _pool2_matrix(Hin, Win):
    """AvgPool2d(2) + re-pad, as a flat selection matrix:
       (Hin+2)*(Win+2) -> (Hin//2+2)*(Win//2+2)."""
    Hout, Wout = Hin // 2, Win // 2
    Wpi, Wpo = Win + 2, Wout + 2
    T = np.zeros(((Hin + 2) * Wpi, (Hout + 2) * Wpo), np.float32)
    for y in range(Hout):
        for x in range(Wout):
            qo = (y + 1) * Wpo + (x + 1)
            for a in (0, 1):
                for b in (0, 1):
                    T[(2 * y + a + 1) * Wpi + (2 * x + b + 1), qo] = 0.25
    return T


def _upsample2_matrix(Hin, Win):
    """Nearest Upsample(x2) + re-pad: (Hin+2)*(Win+2) -> (2*Hin+2)*(2*Win+2)."""
    Hout, Wout = 2 * Hin, 2 * Win
    Wpi, Wpo = Win + 2, Wout + 2
    T = np.zeros(((Hin + 2) * Wpi, (Hout + 2) * Wpo), np.float32)
    for y in range(Hout):
        for x in range(Wout):
            T[(y // 2 + 1) * Wpi + (x // 2 + 1), (y + 1) * Wpo + (x + 1)] = 1.0
    return T


# --------------------------------------------------------------------------
# the fused kernel
# --------------------------------------------------------------------------

def _make_fused_kernel(plan, n_spatial, c_pad, l_pad, mxu_dtype):
    """plan: static op descriptors. Kernel refs:
       (x, w_all, b_all, m_all, T_0..T_{n_spatial-1}, out)."""

    def kernel(*refs):
        x_ref, w_ref, b_ref, m_ref = refs[0], refs[1], refs[2], refs[3]
        t_refs = refs[4:4 + n_spatial]
        out_ref = refs[4 + n_spatial]

        x = x_ref[0]                                   # (C0, L0) input canvas, f32
        for op in plan:
            if op["kind"] == "conv":
                K, cin, cout = op["K"], op["cin"], op["cout"]
                Wp, L, r0, li = op["Wp"], op["L"], op["row"], op["layer"]
                assert x.shape == (cin, L), (x.shape, op)
                w = w_ref[r0:r0 + cout, 0:K * K * cin]          # (Cout, K*K*Cin)
                b = b_ref[r0:r0 + cout, 0:1]                    # (Cout, 1) f32
                m = m_ref[li:li + 1, 0:L]                       # (1, L)    f32
                if K == 1:
                    xcat = x
                else:
                    # Stack the K*K shifted taps into one contraction operand.
                    # Guard band so every tap is a plain static lane slice;
                    # out-of-range taps only pollute border outputs, which the
                    # mask `m` zeroes afterwards.
                    c = (K - 1) // 2
                    G = Wp + 1
                    z = jnp.zeros((cin, G), x.dtype)
                    xg = jnp.concatenate([z, x, z], axis=1)      # (Cin, L+2G)
                    parts = []
                    for dh in range(K):
                        for dw in range(K):
                            off = (dh - c) * Wp + (dw - c)
                            parts.append(xg[:, G + off:G + off + L])
                    xcat = jnp.concatenate(parts, axis=0)        # (K*K*Cin, L)
                # single MXU dot per conv, f32 accumulation
                acc = jnp.dot(w.astype(mxu_dtype), xcat.astype(mxu_dtype),
                              preferred_element_type=jnp.float32)
                # bias, zero the conv-padding border, LeakyReLU(0.01) -- f32 VPU
                acc = (acc + b) * m
                if op["act"]:
                    acc = jnp.where(acc >= 0, acc, NEG_SLOPE * acc)
                x = acc
            else:                               # 'spatial': avg-pool / upsample
                t = t_refs[op["t_idx"]][...]    # bf16 constant, exact values
                x = jnp.dot(x.astype(mxu_dtype), t.astype(mxu_dtype),
                            preferred_element_type=jnp.float32)

        # Lane/sublane-dense final store: pad (colors, Lout) -> (c_pad, l_pad).
        C, L = x.shape
        if C < c_pad:
            x = jnp.concatenate([x, jnp.zeros((c_pad - C, L), x.dtype)], axis=0)
        if L < l_pad:
            x = jnp.concatenate([x, jnp.zeros((c_pad, l_pad - L), x.dtype)],
                                axis=1)
        out_ref[0] = x.astype(out_ref.dtype)

    return kernel


# --------------------------------------------------------------------------
# forward pass (NCHW in / NCHW out, like the PyTorch module)
# --------------------------------------------------------------------------

def autoencoder_forward(x_nchw, params, *, scales, depth, latent, colors,
                        mxu_dtype=jnp.float32):
    N, C, H0, W0 = x_nchw.shape
    assert C == colors, (C, colors)
    enc_cfg, dec_cfg = _layer_configs(scales, depth, latent, colors)
    cfgs = enc_cfg + dec_cfg
    weights = list(params["encoder"]) + list(params["decoder"])
    assert len(weights) == len(cfgs)
    n_layers = len(cfgs)

    # The first layer is Conv2d(colors, depth, 1, padding=1), so its (H0+2)^2
    # output lives on an (H0+4)x(W0+4) canvas; pre-place the raw input at
    # offset (2, 2) of that canvas (wrapper-side glue, a few KB).
    H, W = H0 + 2, W0 + 2                       # valid spatial after the 1x1 conv
    L0 = (H + 2) * (W + 2)
    x0 = jnp.pad(x_nchw.astype(jnp.float32),
                 ((0, 0), (0, 0), (2, 2), (2, 2))).reshape(N, colors, L0)

    # ---- static per-layer geometry ----
    sizes = []
    h, w_sp = H, W
    for cfg in cfgs:
        Hp, Wp = h + 2, w_sp + 2
        sizes.append(dict(K=cfg["K"], cin=cfg["cin"], cout=cfg["cout"],
                          Hp=Hp, Wp=Wp, L=Hp * Wp, h=h, w=w_sp))
        if cfg["after"] == "pool":
            h, w_sp = h // 2, w_sp // 2
        elif cfg["after"] == "up":
            h, w_sp = 2 * h, 2 * w_sp
    max_kkcin = max(s["K"] * s["K"] * s["cin"] for s in sizes)
    max_L = max(s["L"] for s in sizes)
    rows = [-(-s["cout"] // 8) * 8 for s in sizes]     # 8-sublane aligned blocks
    row_off = [0]
    for r in rows:
        row_off.append(row_off[-1] + r)
    total_rows = row_off[-1]

    # ---- pack all per-layer constants into a handful of kernel inputs ----
    w_blocks, b_blocks = [], []
    m_all_np = np.zeros((n_layers, max_L), np.float32)
    t_consts = []
    plan = []
    for i, (cfg, s, (w_oihw, bias)) in enumerate(zip(cfgs, sizes, weights)):
        K, cin, cout = s["K"], s["cin"], s["cout"]
        kkcin = K * K * cin
        # (Cout, Cin, K, K) -> (Cout, K*K*Cin), column index = (dh*K+dw)*Cin + c
        w_flat = jnp.transpose(w_oihw, (0, 2, 3, 1)).reshape(cout, kkcin)
        w_blk = jnp.zeros((rows[i], max_kkcin), jnp.float32)
        w_blk = w_blk.at[:cout, :kkcin].set(w_flat)
        b_blk = jnp.zeros((rows[i], 1), jnp.float32).at[:cout, 0].set(bias)
        w_blocks.append(w_blk)
        b_blocks.append(b_blk)
        m_all_np[i, :s["L"]] = _border_mask(s["h"], s["w"])
        plan.append(dict(kind="conv", K=K, cin=cin, cout=cout, Wp=s["Wp"],
                         L=s["L"], row=int(row_off[i]), layer=i,
                         act=cfg["act"]))
        if cfg["after"] == "pool":
            t_consts.append(jnp.asarray(_pool2_matrix(s["h"], s["w"]),
                                        jnp.bfloat16))
            plan.append(dict(kind="spatial", t_idx=len(t_consts) - 1))
        elif cfg["after"] == "up":
            t_consts.append(jnp.asarray(_upsample2_matrix(s["h"], s["w"]),
                                        jnp.bfloat16))
            plan.append(dict(kind="spatial", t_idx=len(t_consts) - 1))

    w_all = jnp.concatenate(w_blocks, axis=0).astype(mxu_dtype)
    b_all = jnp.concatenate(b_blocks, axis=0)          # stays f32 (epilogue)
    m_all = jnp.asarray(m_all_np)                      # f32

    Hp_out, Wp_out = h + 2, w_sp + 2                   # canvas of final output
    Lout = Hp_out * Wp_out
    c_pad = -(-colors // 8) * 8
    l_pad = -(-Lout // 128) * 128

    kernel = _make_fused_kernel(tuple(plan), len(t_consts), c_pad, l_pad,
                                mxu_dtype)

    in_specs = ([pl.BlockSpec((1, colors, L0), lambda n: (n, 0, 0)),
                 pl.BlockSpec((total_rows, max_kkcin), lambda n: (0, 0)),
                 pl.BlockSpec((total_rows, 1), lambda n: (0, 0)),
                 pl.BlockSpec((n_layers, max_L), lambda n: (0, 0))]
                + [pl.BlockSpec(t.shape, lambda n: (0, 0)) for t in t_consts])

    out = pl.pallas_call(
        kernel,
        out_shape=jax.ShapeDtypeStruct((N, c_pad, l_pad), jnp.float32),
        grid=(N,),
        in_specs=in_specs,
        out_specs=pl.BlockSpec((1, c_pad, l_pad), lambda n: (n, 0, 0)),
        compiler_params=pltpu.CompilerParams(dimension_semantics=("parallel",)),
    )(x0, w_all, b_all, m_all, *t_consts)

    # Crop the lane/sublane padding and the zero padding ring; already NCHW.
    out = out[:, :colors, :Lout].reshape(N, colors, Hp_out, Wp_out)
    return out[:, :, 1:h + 1, 1:w_sp + 1]


# --------------------------------------------------------------------------
# parameters
# --------------------------------------------------------------------------

def _init_conv(key, K, cin, cout):
    # Matches the PyTorch reference verbatim:
    #   weight.data.normal_(std=(1/((1+slope**2)*prod(weight.shape[:-1])))**2)
    # with slope=0.2 and weight shape (cout, cin, K, K) -> prod = cout*cin*K;
    # bias.data.zero_().  (The reference squares instead of sqrt-ing; kept.)
    slope = 0.2
    std = (1.0 / ((1.0 + slope ** 2) * (cout * cin * K))) ** 2
    w = std * jax.random.normal(key, (cout, cin, K, K), jnp.float32)
    return w, jnp.zeros((cout,), jnp.float32)


def init_autoencoder_params(key, scales, depth, latent, colors):
    enc_cfg, dec_cfg = _layer_configs(scales, depth, latent, colors)
    cfgs = enc_cfg + dec_cfg
    keys = jax.random.split(key, len(cfgs))
    ws = [_init_conv(k, c["K"], c["cin"], c["cout"]) for k, c in zip(keys, cfgs)]
    return {"encoder": ws[:len(enc_cfg)], "decoder": ws[len(enc_cfg):]}


def _well_scaled_params(key, scales, depth, latent, colors, std=0.05):
    """Non-degenerate weights, used only to validate the kernel against the
    plain-XLA reference (the module's own init underflows to ~0)."""
    enc_cfg, dec_cfg = _layer_configs(scales, depth, latent, colors)
    cfgs = enc_cfg + dec_cfg
    keys = jax.random.split(key, len(cfgs))
    ws = [(std * jax.random.normal(k, (c["cout"], c["cin"], c["K"], c["K"]),
                                   jnp.float32),
           0.01 * jnp.ones((c["cout"],), jnp.float32))
          for k, c in zip(keys, cfgs)]
    return {"encoder": ws[:len(enc_cfg)], "decoder": ws[len(enc_cfg):]}


# --------------------------------------------------------------------------
# plain-JAX (XLA) reference, used only for the in-script numerical self-check
# --------------------------------------------------------------------------

def _reference_forward(x, params, *, scales, depth, latent, colors):
    enc_cfg, dec_cfg = _layer_configs(scales, depth, latent, colors)
    cfgs = enc_cfg + dec_cfg
    weights = list(params["encoder"]) + list(params["decoder"])
    a = x
    for cfg, (w, b) in zip(cfgs, weights):
        a = lax.conv_general_dilated(
            a, w, window_strides=(1, 1), padding=[(1, 1), (1, 1)],
            dimension_numbers=("NCHW", "OIHW", "NCHW"),
            precision=lax.Precision.HIGHEST)
        a = a + b[None, :, None, None]
        if cfg["act"]:
            a = jnp.where(a >= 0, a, NEG_SLOPE * a)
        if cfg["after"] == "pool":
            a = lax.reduce_window(a, 0.0, lax.add, (1, 1, 2, 2), (1, 1, 2, 2),
                                  "VALID") * 0.25
        elif cfg["after"] == "up":
            a = jnp.repeat(jnp.repeat(a, 2, axis=2), 2, axis=3)
    return a


# --------------------------------------------------------------------------
# main
# --------------------------------------------------------------------------

if __name__ == "__main__":
    scales, depth, latent, colors = 2, 8, 4, 4
    key = jax.random.PRNGKey(0)
    kx, kp = jax.random.split(key)

    # PyTorch-style NCHW input: (batch=2, colors=4, 16, 16)
    x = jax.random.normal(kx, (2, colors, 16, 16), jnp.float32)

    fwd = jax.jit(functools.partial(autoencoder_forward, scales=scales,
                                    depth=depth, latent=latent, colors=colors))

    # 1) numerical self-check of the fused kernel vs. a plain-JAX reference
    chk = _well_scaled_params(jax.random.PRNGKey(42), scales, depth, latent,
                              colors)
    y_kernel = fwd(x, chk)
    y_ref = _reference_forward(x, chk, scales=scales, depth=depth,
                               latent=latent, colors=colors)
    np.testing.assert_allclose(np.asarray(y_kernel), np.asarray(y_ref),
                               rtol=2e-2, atol=1e-4)

    # 2) forward pass with the module's own (reference-matching) initialisation
    params = init_autoencoder_params(kp, scales, depth, latent, colors)
    y = fwd(x, params)
    jax.block_until_ready(y)

    assert y.shape == (2, colors, 16, 16), y.shape
    assert y.dtype == jnp.float32
    assert bool(jnp.all(jnp.isfinite(y)))
    print("KERNEL_OK")
</pallas_src>

<mosaic_0001>
module attributes {stable_mosaic.version = 11 : i64} {
  func.func @kernel(%arg0: i32, %arg1: memref<1x4x400xf32, #tpu.memory_space<vmem>>, %arg2: memref<112x288xf32, #tpu.memory_space<vmem>>, %arg3: memref<112x1xf32, #tpu.memory_space<vmem>>, %arg4: memref<9x400xf32, #tpu.memory_space<vmem>>, %arg5: memref<400x121xbf16, #tpu.memory_space<vmem>>, %arg6: memref<121x36xbf16, #tpu.memory_space<vmem>>, %arg7: memref<36x100xbf16, #tpu.memory_space<vmem>>, %arg8: memref<100x324xbf16, #tpu.memory_space<vmem>>, %arg9: memref<1x8x384xf32, #tpu.memory_space<vmem>>) attributes {dimension_semantics = [#tpu.dimension_semantics<parallel>], iteration_bounds = array<i64: 2>, scalar_prefetch = 0 : i64, scratch_operands = 0 : i64, tpu.core_type = #tpu.core_type<tc>, window_params = [{transform_indices = @transform_0, window_bounds = array<i64: 1, 4, 400>}, {pipeline_mode = #tpu.pipeline_mode<synchronous>, transform_indices = @transform_1, window_bounds = array<i64: 112, 288>}, {pipeline_mode = #tpu.pipeline_mode<synchronous>, transform_indices = @transform_2, window_bounds = array<i64: 112, 1>}, {pipeline_mode = #tpu.pipeline_mode<synchronous>, transform_indices = @transform_3, window_bounds = array<i64: 9, 400>}, {pipeline_mode = #tpu.pipeline_mode<synchronous>, transform_indices = @transform_4, window_bounds = array<i64: 400, 121>}, {pipeline_mode = #tpu.pipeline_mode<synchronous>, transform_indices = @transform_5, window_bounds = array<i64: 121, 36>}, {pipeline_mode = #tpu.pipeline_mode<synchronous>, transform_indices = @transform_6, window_bounds = array<i64: 36, 100>}, {pipeline_mode = #tpu.pipeline_mode<synchronous>, transform_indices = @transform_7, window_bounds = array<i64: 100, 324>}, {transform_indices = @transform_8, window_bounds = array<i64: 1, 8, 384>}]} {
    %c0 = arith.constant 0 : index
    %c0_0 = arith.constant 0 : index
    %c0_1 = arith.constant 0 : index
    %0 = vector.load %arg1[%c0, %c0_0, %c0_1] : memref<1x4x400xf32, #tpu.memory_space<vmem>>, vector<1x4x400xf32>
    %1 = vector.shape_cast %0 : vector<1x4x400xf32> to vector<4x400xf32>
    %c0_2 = arith.constant 0 : index
    %c0_3 = arith.constant 0 : index
    %2 = vector.load %arg2[%c0_2, %c0_3] : memref<112x288xf32, #tpu.memory_space<vmem>>, vector<8x4xf32>
    %c0_4 = arith.constant 0 : index
    %c0_5 = arith.constant 0 : index
    %3 = vector.load %arg3[%c0_4, %c0_5] : memref<112x1xf32, #tpu.memory_space<vmem>>, vector<8x1xf32>
    %c0_6 = arith.constant 0 : index
    %c0_7 = arith.constant 0 : index
    %4 = vector.load %arg4[%c0_6, %c0_7] : memref<9x400xf32, #tpu.memory_space<vmem>>, vector<1x400xf32>
    %cst = arith.constant dense<0.000000e+00> : vector<8x400xf32>
    %5 = tpu.matmul %2, %1, %cst {dimension_numbers = #tpu.dot_dimension_numbers<[1], [0], [0], [1], [0, 0, 1, 1], [], []>} : vector<8x4xf32>, vector<4x400xf32>, vector<8x400xf32> -> vector<8x400xf32>
    %6 = vector.broadcast %3 : vector<8x1xf32> to vector<8x400xf32>
    %7 = arith.addf %5, %6 : vector<8x400xf32>
    %8 = vector.broadcast %4 : vector<1x400xf32> to vector<8x400xf32>
    %9 = arith.mulf %7, %8 : vector<8x400xf32>
    %c8 = arith.constant 8 : index
    %c0_8 = arith.constant 0 : index
    %10 = vector.load %arg2[%c8, %c0_8] : memref<112x288xf32, #tpu.memory_space<vmem>>, vector<8x72xf32>
    %c8_9 = arith.constant 8 : index
    %c0_10 = arith.constant 0 : index
    %11 = vector.load %arg3[%c8_9, %c0_10] : memref<112x1xf32, #tpu.memory_space<vmem>>, vector<8x1xf32>
    %c1 = arith.constant 1 : index
    %c0_11 = arith.constant 0 : index
    %12 = vector.load %arg4[%c1, %c0_11] : memref<9x400xf32, #tpu.memory_space<vmem>>, vector<1x400xf32>
    %cst_12 = arith.constant 0.000000e+00 : f32
    %13 = vector.broadcast %cst_12 : f32 to vector<8x21xf32>
    %14 = tpu.concatenate %13, %9, %13 in 1 : vector<8x21xf32>, vector<8x400xf32>, vector<8x21xf32> -> vector<8x442xf32>
    %15 = vector.extract_strided_slice %14 {offsets = [0, 0], sizes = [8, 400], strides = [1, 1]} : vector<8x442xf32> to vector<8x400xf32>
    %16 = vector.extract_strided_slice %14 {offsets = [0, 1], sizes = [8, 400], strides = [1, 1]} : vector<8x442xf32> to vector<8x400xf32>
    %17 = vector.extract_strided_slice %14 {offsets = [0, 2], sizes = [8, 400], strides = [1, 1]} : vector<8x442xf32> to vector<8x400xf32>
    %18 = vector.extract_strided_slice %14 {offsets = [0, 20], sizes = [8, 400], strides = [1, 1]} : vector<8x442xf32> to vector<8x400xf32>
    %19 = vector.extract_strided_slice %14 {offsets = [0, 21], sizes = [8, 400], strides = [1, 1]} : vector<8x442xf32> to vector<8x400xf32>
    %20 = vector.extract_strided_slice %14 {offsets = [0, 22], sizes = [8, 400], strides = [1, 1]} : vector<8x442xf32> to vector<8x400xf32>
    %21 = vector.extract_strided_slice %14 {offsets = [0, 40], sizes = [8, 400], strides = [1, 1]} : vector<8x442xf32> to vector<8x400xf32>
    %22 = vector.extract_strided_slice %14 {offsets = [0, 41], sizes = [8, 400], strides = [1, 1]} : vector<8x442xf32> to vector<8x400xf32>
    %23 = vector.extract_strided_slice %14 {offsets = [0, 42], sizes = [8, 400], strides = [1, 1]} : vector<8x442xf32> to vector<8x400xf32>
    %24 = tpu.concatenate %15, %16, %17, %18, %19, %20, %21, %22, %23 in 0 : vector<8x400xf32>, vector<8x400xf32>, vector<8x400xf32>, vector<8x400xf32>, vector<8x400xf32>, vector<8x400xf32>, vector<8x400xf32>, vector<8x400xf32>, vector<8x400xf32> -> vector<72x400xf32>
    %cst_13 = arith.constant dense<0.000000e+00> : vector<8x400xf32>
    %25 = tpu.matmul %10, %24, %cst_13 {dimension_numbers = #tpu.dot_dimension_numbers<[1], [0], [0], [1], [0, 0, 1, 1], [], []>} : vector<8x72xf32>, vector<72x400xf32>, vector<8x400xf32> -> vector<8x400xf32>
    %26 = vector.broadcast %11 : vector<8x1xf32> to vector<8x400xf32>
    %27 = arith.addf %25, %26 : vector<8x400xf32>
    %28 = vector.broadcast %12 : vector<1x400xf32> to vector<8x400xf32>
    %29 = arith.mulf %27, %28 : vector<8x400xf32>
    %cst_14 = arith.constant 0.000000e+00 : f32
    %30 = vector.broadcast %cst_14 : f32 to vector<8x400xf32>
    %31 = arith.cmpf oge, %29, %30 : vector<8x400xf32>
    %cst_15 = arith.constant 0.00999999977 : f32
    %32 = vector.broadcast %cst_15 : f32 to vector<8x400xf32>
    %33 = arith.mulf %32, %29 : vector<8x400xf32>
    %34 = arith.select %31, %29, %33 : vector<8x400xi1>, vector<8x400xf32>
    %c0_16 = arith.constant 0 : index
    %c0_17 = arith.constant 0 : index
    %35 = vector.load %arg5[%c0_16, %c0_17] : memref<400x121xbf16, #tpu.memory_space<vmem>>, vector<400x121xbf16>
    %36 = arith.extf %35 : vector<400x121xbf16> to vector<400x121xf32>
    %cst_18 = arith.constant dense<0.000000e+00> : vector<8x121xf32>
    %37 = tpu.matmul %34, %36, %cst_18 {dimension_numbers = #tpu.dot_dimension_numbers<[1], [0], [0], [1], [0, 0, 1, 1], [], []>} : vector<8x400xf32>, vector<400x121xf32>, vector<8x121xf32> -> vector<8x121xf32>
    %c16 = arith.constant 16 : index
    %c0_19 = arith.constant 0 : index
    %38 = vector.load %arg2[%c16, %c0_19] : memref<112x288xf32, #tpu.memory_space<vmem>>, vector<16x72xf32>
    %c16_20 = arith.constant 16 : index
    %c0_21 = arith.constant 0 : index
    %39 = vector.load %arg3[%c16_20, %c0_21] : memref<112x1xf32, #tpu.memory_space<vmem>>, vector<16x1xf32>
    %c2 = arith.constant 2 : index
    %c0_22 = arith.constant 0 : index
    %40 = vector.load %arg4[%c2, %c0_22] : memref<9x400xf32, #tpu.memory_space<vmem>>, vector<1x121xf32>
    %cst_23 = arith.constant 0.000000e+00 : f32
    %41 = vector.broadcast %cst_23 : f32 to vector<8x12xf32>
    %42 = tpu.concatenate %41, %37, %41 in 1 : vector<8x12xf32>, vector<8x121xf32>, vector<8x12xf32> -> vector<8x145xf32>
    %43 = vector.extract_strided_slice %42 {offsets = [0, 0], sizes = [8, 121], strides = [1, 1]} : vector<8x145xf32> to vector<8x121xf32>
    %44 = vector.extract_strided_slice %42 {offsets = [0, 1], sizes = [8, 121], strides = [1, 1]} : vector<8x145xf32> to vector<8x121xf32>
    %45 = vector.extract_strided_slice %42 {offsets = [0, 2], sizes = [8, 121], strides = [1, 1]} : vector<8x145xf32> to vector<8x121xf32>
    %46 = vector.extract_strided_slice %42 {offsets = [0, 11], sizes = [8, 121], strides = [1, 1]} : vector<8x145xf32> to vector<8x121xf32>
    %47 = vector.extract_strided_slice %42 {offsets = [0, 12], sizes = [8, 121], strides = [1, 1]} : vector<8x145xf32> to vector<8x121xf32>
    %48 = vector.extract_strided_slice %42 {offsets = [0, 13], sizes = [8, 121], strides = [1, 1]} : vector<8x145xf32> to vector<8x121xf32>
    %49 = vector.extract_strided_slice %42 {offsets = [0, 22], sizes = [8, 121], strides = [1, 1]} : vector<8x145xf32> to vector<8x121xf32>
    %50 = vector.extract_strided_slice %42 {offsets = [0, 23], sizes = [8, 121], strides = [1, 1]} : vector<8x145xf32> to vector<8x121xf32>
    %51 = vector.extract_strided_slice %42 {offsets = [0, 24], sizes = [8, 121], strides = [1, 1]} : vector<8x145xf32> to vector<8x121xf32>
    %52 = tpu.concatenate %43, %44, %45, %46, %47, %48, %49, %50, %51 in 0 : vector<8x121xf32>, vector<8x121xf32>, vector<8x121xf32>, vector<8x121xf32>, vector<8x121xf32>, vector<8x121xf32>, vector<8x121xf32>, vector<8x121xf32>, vector<8x121xf32> -> vector<72x121xf32>
    %cst_24 = arith.constant dense<0.000000e+00> : vector<16x121xf32>
    %53 = tpu.matmul %38, %52, %cst_24 {dimension_numbers = #tpu.dot_dimension_numbers<[1], [0], [0], [1], [0, 0, 1, 1], [], []>} : vector<16x72xf32>, vector<72x121xf32>, vector<16x121xf32> -> vector<16x121xf32>
    %54 = vector.broadcast %39 : vector<16x1xf32> to vector<16x121xf32>
    %55 = arith.addf %53, %54 : vector<16x121xf32>
    %56 = vector.broadcast %40 : vector<1x121xf32> to vector<16x121xf32>
    %57 = arith.mulf %55, %56 : vector<16x121xf32>
    %cst_25 = arith.constant 0.000000e+00 : f32
    %58 = vector.broadcast %cst_25 : f32 to vector<16x121xf32>
    %59 = arith.cmpf oge, %57, %58 : vector<16x121xf32>
    %cst_26 = arith.constant 0.00999999977 : f32
    %60 = vector.broadcast %cst_26 : f32 to vector<16x121xf32>
    %61 = arith.mulf %60, %57 : vector<16x121xf32>
    %62 = arith.select %59, %57, %61 : vector<16x121xi1>, vector<16x121xf32>
    %c0_27 = arith.constant 0 : index
    %c0_28 = arith.constant 0 : index
    %63 = vector.load %arg6[%c0_27, %c0_28] : memref<121x36xbf16, #tpu.memory_space<vmem>>, vector<121x36xbf16>
    %64 = arith.extf %63 : vector<121x36xbf16> to vector<121x36xf32>
    %cst_29 = arith.constant dense<0.000000e+00> : vector<16x36xf32>
    %65 = tpu.matmul %62, %64, %cst_29 {dimension_numbers = #tpu.dot_dimension_numbers<[1], [0], [0], [1], [0, 0, 1, 1], [], []>} : vector<16x121xf32>, vector<121x36xf32>, vector<16x36xf32> -> vector<16x36xf32>
    %c32 = arith.constant 32 : index
    %c0_30 = arith.constant 0 : index
    %66 = vector.load %arg2[%c32, %c0_30] : memref<112x288xf32, #tpu.memory_space<vmem>>, vector<32x144xf32>
    %c32_31 = arith.constant 32 : index
    %c0_32 = arith.constant 0 : index
    %67 = vector.load %arg3[%c32_31, %c0_32] : memref<112x1xf32, #tpu.memory_space<vmem>>, vector<32x1xf32>
    %c3 = arith.constant 3 : index
    %c0_33 = arith.constant 0 : index
    %68 = vector.load %arg4[%c3, %c0_33] : memref<9x400xf32, #tpu.memory_space<vmem>>, vector<1x36xf32>
    %cst_34 = arith.constant 0.000000e+00 : f32
    %69 = vector.broadcast %cst_34 : f32 to vector<16x7xf32>
    %70 = tpu.concatenate %69, %65, %69 in 1 : vector<16x7xf32>, vector<16x36xf32>, vector<16x7xf32> -> vector<16x50xf32>
    %71 = vector.extract_strided_slice %70 {offsets = [0, 0], sizes = [16, 36], strides = [1, 1]} : vector<16x50xf32> to vector<16x36xf32>
    %72 = vector.extract_strided_slice %70 {offsets = [0, 1], sizes = [16, 36], strides = [1, 1]} : vector<16x50xf32> to vector<16x36xf32>
    %73 = vector.extract_strided_slice %70 {offsets = [0, 2], sizes = [16, 36], strides = [1, 1]} : vector<16x50xf32> to vector<16x36xf32>
    %74 = vector.extract_strided_slice %70 {offsets = [0, 6], sizes = [16, 36], strides = [1, 1]} : vector<16x50xf32> to vector<16x36xf32>
    %75 = vector.extract_strided_slice %70 {offsets = [0, 7], sizes = [16, 36], strides = [1, 1]} : vector<16x50xf32> to vector<16x36xf32>
    %76 = vector.extract_strided_slice %70 {offsets = [0, 8], sizes = [16, 36], strides = [1, 1]} : vector<16x50xf32> to vector<16x36xf32>
    %77 = vector.extract_strided_slice %70 {offsets = [0, 12], sizes = [16, 36], strides = [1, 1]} : vector<16x50xf32> to vector<16x36xf32>
    %78 = vector.extract_strided_slice %70 {offsets = [0, 13], sizes = [16, 36], strides = [1, 1]} : vector<16x50xf32> to vector<16x36xf32>
    %79 = vector.extract_strided_slice %70 {offsets = [0, 14], sizes = [16, 36], strides = [1, 1]} : vector<16x50xf32> to vector<16x36xf32>
    %80 = tpu.concatenate %71, %72, %73, %74, %75, %76, %77, %78, %79 in 0 : vector<16x36xf32>, vector<16x36xf32>, vector<16x36xf32>, vector<16x36xf32>, vector<16x36xf32>, vector<16x36xf32>, vector<16x36xf32>, vector<16x36xf32>, vector<16x36xf32> -> vector<144x36xf32>
    %cst_35 = arith.constant dense<0.000000e+00> : vector<32x36xf32>
    %81 = tpu.matmul %66, %80, %cst_35 {dimension_numbers = #tpu.dot_dimension_numbers<[1], [0], [0], [1], [0, 0, 1, 1], [], []>} : vector<32x144xf32>, vector<144x36xf32>, vector<32x36xf32> -> vector<32x36xf32>
    %82 = vector.broadcast %67 : vector<32x1xf32> to vector<32x36xf32>
    %83 = arith.addf %81, %82 : vector<32x36xf32>
    %84 = vector.broadcast %68 : vector<1x36xf32> to vector<32x36xf32>
    %85 = arith.mulf %83, %84 : vector<32x36xf32>
    %cst_36 = arith.constant 0.000000e+00 : f32
    %86 = vector.broadcast %cst_36 : f32 to vector<32x36xf32>
    %87 = arith.cmpf oge, %85, %86 : vector<32x36xf32>
    %cst_37 = arith.constant 0.00999999977 : f32
    %88 = vector.broadcast %cst_37 : f32 to vector<32x36xf32>
    %89 = arith.mulf %88, %85 : vector<32x36xf32>
    %90 = arith.select %87, %85, %89 : vector<32x36xi1>, vector<32x36xf32>
    %c64 = arith.constant 64 : index
    %c0_38 = arith.constant 0 : index
    %91 = vector.load %arg2[%c64, %c0_38] : memref<112x288xf32, #tpu.memory_space<vmem>>, vector<4x288xf32>
    %c64_39 = arith.constant 64 : index
    %c0_40 = arith.constant 0 : index
    %92 = vector.load %arg3[%c64_39, %c0_40] : memref<112x1xf32, #tpu.memory_space<vmem>>, vector<4x1xf32>
    %c4 = arith.constant 4 : index
    %c0_41 = arith.constant 0 : index
    %93 = vector.load %arg4[%c4, %c0_41] : memref<9x400xf32, #tpu.memory_space<vmem>>, vector<1x36xf32>
    %cst_42 = arith.constant 0.000000e+00 : f32
    %94 = vector.broadcast %cst_42 : f32 to vector<32x7xf32>
    %95 = tpu.concatenate %94, %90, %94 in 1 : vector<32x7xf32>, vector<32x36xf32>, vector<32x7xf32> -> vector<32x50xf32>
    %96 = vector.extract_strided_slice %95 {offsets = [0, 0], sizes = [32, 36], strides = [1, 1]} : vector<32x50xf32> to vector<32x36xf32>
    %97 = vector.extract_strided_slice %95 {offsets = [0, 1], sizes = [32, 36], strides = [1, 1]} : vector<32x50xf32> to vector<32x36xf32>
    %98 = vector.extract_strided_slice %95 {offsets = [0, 2], sizes = [32, 36], strides = [1, 1]} : vector<32x50xf32> to vector<32x36xf32>
    %99 = vector.extract_strided_slice %95 {offsets = [0, 6], sizes = [32, 36], strides = [1, 1]} : vector<32x50xf32> to vector<32x36xf32>
    %100 = vector.extract_strided_slice %95 {offsets = [0, 7], sizes = [32, 36], strides = [1, 1]} : vector<32x50xf32> to vector<32x36xf32>
    %101 = vector.extract_strided_slice %95 {offsets = [0, 8], sizes = [32, 36], strides = [1, 1]} : vector<32x50xf32> to vector<32x36xf32>
    %102 = vector.extract_strided_slice %95 {offsets = [0, 12], sizes = [32, 36], strides = [1, 1]} : vector<32x50xf32> to vector<32x36xf32>
    %103 = vector.extract_strided_slice %95 {offsets = [0, 13], sizes = [32, 36], strides = [1, 1]} : vector<32x50xf32> to vector<32x36xf32>
    %104 = vector.extract_strided_slice %95 {offsets = [0, 14], sizes = [32, 36], strides = [1, 1]} : vector<32x50xf32> to vector<32x36xf32>
    %105 = tpu.concatenate %96, %97, %98, %99, %100, %101, %102, %103, %104 in 0 : vector<32x36xf32>, vector<32x36xf32>, vector<32x36xf32>, vector<32x36xf32>, vector<32x36xf32>, vector<32x36xf32>, vector<32x36xf32>, vector<32x36xf32>, vector<32x36xf32> -> vector<288x36xf32>
    %cst_43 = arith.constant dense<0.000000e+00> : vector<4x36xf32>
    %106 = tpu.matmul %91, %105, %cst_43 {dimension_numbers = #tpu.dot_dimension_numbers<[1], [0], [0], [1], [0, 0, 1, 1], [], []>} : vector<4x288xf32>, vector<288x36xf32>, vector<4x36xf32> -> vector<4x36xf32>
    %107 = vector.broadcast %92 : vector<4x1xf32> to vector<4x36xf32>
    %108 = arith.addf %106, %107 : vector<4x36xf32>
    %109 = vector.broadcast %93 : vector<1x36xf32> to vector<4x36xf32>
    %110 = arith.mulf %108, %109 : vector<4x36xf32>
    %c72 = arith.constant 72 : index
    %c0_44 = arith.constant 0 : index
    %111 = vector.load %arg2[%c72, %c0_44] : memref<112x288xf32, #tpu.memory_space<vmem>>, vector<8x36xf32>
    %c72_45 = arith.constant 72 : index
    %c0_46 = arith.constant 0 : index
    %112 = vector.load %arg3[%c72_45, %c0_46] : memref<112x1xf32, #tpu.memory_space<vmem>>, vector<8x1xf32>
    %c5 = arith.constant 5 : index
    %c0_47 = arith.constant 0 : index
    %113 = vector.load %arg4[%c5, %c0_47] : memref<9x400xf32, #tpu.memory_space<vmem>>, vector<1x36xf32>
    %cst_48 = arith.constant 0.000000e+00 : f32
    %114 = vector.broadcast %cst_48 : f32 to vector<4x7xf32>
    %115 = tpu.concatenate %114, %110, %114 in 1 : vector<4x7xf32>, vector<4x36xf32>, vector<4x7xf32> -> vector<4x50xf32>
    %116 = vector.extract_strided_slice %115 {offsets = [0, 0], sizes = [4, 36], strides = [1, 1]} : vector<4x50xf32> to vector<4x36xf32>
    %117 = vector.extract_strided_slice %115 {offsets = [0, 1], sizes = [4, 36], strides = [1, 1]} : vector<4x50xf32> to vector<4x36xf32>
    %118 = vector.extract_strided_slice %115 {offsets = [0, 2], sizes = [4, 36], strides = [1, 1]} : vector<4x50xf32> to vector<4x36xf32>
    %119 = vector.extract_strided_slice %115 {offsets = [0, 6], sizes = [4, 36], strides = [1, 1]} : vector<4x50xf32> to vector<4x36xf32>
    %120 = vector.extract_strided_slice %115 {offsets = [0, 7], sizes = [4, 36], strides = [1, 1]} : vector<4x50xf32> to vector<4x36xf32>
    %121 = vector.extract_strided_slice %115 {offsets = [0, 8], sizes = [4, 36], strides = [1, 1]} : vector<4x50xf32> to vector<4x36xf32>
    %122 = vector.extract_strided_slice %115 {offsets = [0, 12], sizes = [4, 36], strides = [1, 1]} : vector<4x50xf32> to vector<4x36xf32>
    %123 = vector.extract_strided_slice %115 {offsets = [0, 13], sizes = [4, 36], strides = [1, 1]} : vector<4x50xf32> to vector<4x36xf32>
    %124 = vector.extract_strided_slice %115 {offsets = [0, 14], sizes = [4, 36], strides = [1, 1]} : vector<4x50xf32> to vector<4x36xf32>
    %125 = tpu.concatenate %116, %117, %118, %119, %120, %121, %122, %123, %124 in 0 : vector<4x36xf32>, vector<4x36xf32>, vector<4x36xf32>, vector<4x36xf32>, vector<4x36xf32>, vector<4x36xf32>, vector<4x36xf32>, vector<4x36xf32>, vector<4x36xf32> -> vector<36x36xf32>
    %cst_49 = arith.constant dense<0.000000e+00> : vector<8x36xf32>
    %126 = tpu.matmul %111, %125, %cst_49 {dimension_numbers = #tpu.dot_dimension_numbers<[1], [0], [0], [1], [0, 0, 1, 1], [], []>} : vector<8x36xf32>, vector<36x36xf32>, vector<8x36xf32> -> vector<8x36xf32>
    %127 = vector.broadcast %112 : vector<8x1xf32> to vector<8x36xf32>
    %128 = arith.addf %126, %127 : vector<8x36xf32>
    %129 = vector.broadcast %113 : vector<1x36xf32> to vector<8x36xf32>
    %130 = arith.mulf %128, %129 : vector<8x36xf32>
    %cst_50 = arith.constant 0.000000e+00 : f32
    %131 = vector.broadcast %cst_50 : f32 to vector<8x36xf32>
    %132 = arith.cmpf oge, %130, %131 : vector<8x36xf32>
    %cst_51 = arith.constant 0.00999999977 : f32
    %133 = vector.broadcast %cst_51 : f32 to vector<8x36xf32>
    %134 = arith.mulf %133, %130 : vector<8x36xf32>
    %135 = arith.select %132, %130, %134 : vector<8x36xi1>, vector<8x36xf32>
    %c0_52 = arith.constant 0 : index
    %c0_53 = arith.constant 0 : index
    %136 = vector.load %arg7[%c0_52, %c0_53] : memref<36x100xbf16, #tpu.memory_space<vmem>>, vector<36x100xbf16>
    %137 = arith.extf %136 : vector<36x100xbf16> to vector<36x100xf32>
    %cst_54 = arith.constant dense<0.000000e+00> : vector<8x100xf32>
    %138 = tpu.matmul %135, %137, %cst_54 {dimension_numbers = #tpu.dot_dimension_numbers<[1], [0], [0], [1], [0, 0, 1, 1], [], []>} : vector<8x36xf32>, vector<36x100xf32>, vector<8x100xf32> -> vector<8x100xf32>
    %c80 = arith.constant 80 : index
    %c0_55 = arith.constant 0 : index
    %139 = vector.load %arg2[%c80, %c0_55] : memref<112x288xf32, #tpu.memory_space<vmem>>, vector<16x72xf32>
    %c80_56 = arith.constant 80 : index
    %c0_57 = arith.constant 0 : index
    %140 = vector.load %arg3[%c80_56, %c0_57] : memref<112x1xf32, #tpu.memory_space<vmem>>, vector<16x1xf32>
    %c6 = arith.constant 6 : index
    %c0_58 = arith.constant 0 : index
    %141 = vector.load %arg4[%c6, %c0_58] : memref<9x400xf32, #tpu.memory_space<vmem>>, vector<1x100xf32>
    %cst_59 = arith.constant 0.000000e+00 : f32
    %142 = vector.broadcast %cst_59 : f32 to vector<8x11xf32>
    %143 = tpu.concatenate %142, %138, %142 in 1 : vector<8x11xf32>, vector<8x100xf32>, vector<8x11xf32> -> vector<8x122xf32>
    %144 = vector.extract_strided_slice %143 {offsets = [0, 0], sizes = [8, 100], strides = [1, 1]} : vector<8x122xf32> to vector<8x100xf32>
    %145 = vector.extract_strided_slice %143 {offsets = [0, 1], sizes = [8, 100], strides = [1, 1]} : vector<8x122xf32> to vector<8x100xf32>
    %146 = vector.extract_strided_slice %143 {offsets = [0, 2], sizes = [8, 100], strides = [1, 1]} : vector<8x122xf32> to vector<8x100xf32>
    %147 = vector.extract_strided_slice %143 {offsets = [0, 10], sizes = [8, 100], strides = [1, 1]} : vector<8x122xf32> to vector<8x100xf32>
    %148 = vector.extract_strided_slice %143 {offsets = [0, 11], sizes = [8, 100], strides = [1, 1]} : vector<8x122xf32> to vector<8x100xf32>
    %149 = vector.extract_strided_slice %143 {offsets = [0, 12], sizes = [8, 100], strides = [1, 1]} : vector<8x122xf32> to vector<8x100xf32>
    %150 = vector.extract_strided_slice %143 {offsets = [0, 20], sizes = [8, 100], strides = [1, 1]} : vector<8x122xf32> to vector<8x100xf32>
    %151 = vector.extract_strided_slice %143 {offsets = [0, 21], sizes = [8, 100], strides = [1, 1]} : vector<8x122xf32> to vector<8x100xf32>
    %152 = vector.extract_strided_slice %143 {offsets = [0, 22], sizes = [8, 100], strides = [1, 1]} : vector<8x122xf32> to vector<8x100xf32>
    %153 = tpu.concatenate %144, %145, %146, %147, %148, %149, %150, %151, %152 in 0 : vector<8x100xf32>, vector<8x100xf32>, vector<8x100xf32>, vector<8x100xf32>, vector<8x100xf32>, vector<8x100xf32>, vector<8x100xf32>, vector<8x100xf32>, vector<8x100xf32> -> vector<72x100xf32>
    %cst_60 = arith.constant dense<0.000000e+00> : vector<16x100xf32>
    %154 = tpu.matmul %139, %153, %cst_60 {dimension_numbers = #tpu.dot_dimension_numbers<[1], [0], [0], [1], [0, 0, 1, 1], [], []>} : vector<16x72xf32>, vector<72x100xf32>, vector<16x100xf32> -> vector<16x100xf32>
    %155 = vector.broadcast %140 : vector<16x1xf32> to vector<16x100xf32>
    %156 = arith.addf %154, %155 : vector<16x100xf32>
    %157 = vector.broadcast %141 : vector<1x100xf32> to vector<16x100xf32>
    %158 = arith.mulf %156, %157 : vector<16x100xf32>
    %cst_61 = arith.constant 0.000000e+00 : f32
    %159 = vector.broadcast %cst_61 : f32 to vector<16x100xf32>
    %160 = arith.cmpf oge, %158, %159 : vector<16x100xf32>
    %cst_62 = arith.constant 0.00999999977 : f32
    %161 = vector.broadcast %cst_62 : f32 to vector<16x100xf32>
    %162 = arith.mulf %161, %158 : vector<16x100xf32>
    %163 = arith.select %160, %158, %162 : vector<16x100xi1>, vector<16x100xf32>
    %c0_63 = arith.constant 0 : index
    %c0_64 = arith.constant 0 : index
    %164 = vector.load %arg8[%c0_63, %c0_64] : memref<100x324xbf16, #tpu.memory_space<vmem>>, vector<100x324xbf16>
    %165 = arith.extf %164 : vector<100x324xbf16> to vector<100x324xf32>
    %cst_65 = arith.constant dense<0.000000e+00> : vector<16x324xf32>
    %166 = tpu.matmul %163, %165, %cst_65 {dimension_numbers = #tpu.dot_dimension_numbers<[1], [0], [0], [1], [0, 0, 1, 1], [], []>} : vector<16x100xf32>, vector<100x324xf32>, vector<16x324xf32> -> vector<16x324xf32>
    %c96 = arith.constant 96 : index
    %c0_66 = arith.constant 0 : index
    %167 = vector.load %arg2[%c96, %c0_66] : memref<112x288xf32, #tpu.memory_space<vmem>>, vector<8x144xf32>
    %c96_67 = arith.constant 96 : index
    %c0_68 = arith.constant 0 : index
    %168 = vector.load %arg3[%c96_67, %c0_68] : memref<112x1xf32, #tpu.memory_space<vmem>>, vector<8x1xf32>
    %c7 = arith.constant 7 : index
    %c0_69 = arith.constant 0 : index
    %169 = vector.load %arg4[%c7, %c0_69] : memref<9x400xf32, #tpu.memory_space<vmem>>, vector<1x324xf32>
    %cst_70 = arith.constant 0.000000e+00 : f32
    %170 = vector.broadcast %cst_70 : f32 to vector<16x19xf32>
    %171 = tpu.concatenate %170, %166, %170 in 1 : vector<16x19xf32>, vector<16x324xf32>, vector<16x19xf32> -> vector<16x362xf32>
    %172 = vector.extract_strided_slice %171 {offsets = [0, 0], sizes = [16, 324], strides = [1, 1]} : vector<16x362xf32> to vector<16x324xf32>
    %173 = vector.extract_strided_slice %171 {offsets = [0, 1], sizes = [16, 324], strides = [1, 1]} : vector<16x362xf32> to vector<16x324xf32>
    %174 = vector.extract_strided_slice %171 {offsets = [0, 2], sizes = [16, 324], strides = [1, 1]} : vector<16x362xf32> to vector<16x324xf32>
    %175 = vector.extract_strided_slice %171 {offsets = [0, 18], sizes = [16, 324], strides = [1, 1]} : vector<16x362xf32> to vector<16x324xf32>
    %176 = vector.extract_strided_slice %171 {offsets = [0, 19], sizes = [16, 324], strides = [1, 1]} : vector<16x362xf32> to vector<16x324xf32>
    %177 = vector.extract_strided_slice %171 {offsets = [0, 20], sizes = [16, 324], strides = [1, 1]} : vector<16x362xf32> to vector<16x324xf32>
    %178 = vector.extract_strided_slice %171 {offsets = [0, 36], sizes = [16, 324], strides = [1, 1]} : vector<16x362xf32> to vector<16x324xf32>
    %179 = vector.extract_strided_slice %171 {offsets = [0, 37], sizes = [16, 324], strides = [1, 1]} : vector<16x362xf32> to vector<16x324xf32>
    %180 = vector.extract_strided_slice %171 {offsets = [0, 38], sizes = [16, 324], strides = [1, 1]} : vector<16x362xf32> to vector<16x324xf32>
    %181 = tpu.concatenate %172, %173, %174, %175, %176, %177, %178, %179, %180 in 0 : vector<16x324xf32>, vector<16x324xf32>, vector<16x324xf32>, vector<16x324xf32>, vector<16x324xf32>, vector<16x324xf32>, vector<16x324xf32>, vector<16x324xf32>, vector<16x324xf32> -> vector<144x324xf32>
    %cst_71 = arith.constant dense<0.000000e+00> : vector<8x324xf32>
    %182 = tpu.matmul %167, %181, %cst_71 {dimension_numbers = #tpu.dot_dimension_numbers<[1], [0], [0], [1], [0, 0, 1, 1], [], []>} : vector<8x144xf32>, vector<144x324xf32>, vector<8x324xf32> -> vector<8x324xf32>
    %183 = vector.broadcast %168 : vector<8x1xf32> to vector<8x324xf32>
    %184 = arith.addf %182, %183 : vector<8x324xf32>
    %185 = vector.broadcast %169 : vector<1x324xf32> to vector<8x324xf32>
    %186 = arith.mulf %184, %185 : vector<8x324xf32>
    %cst_72 = arith.constant 0.000000e+00 : f32
    %187 = vector.broadcast %cst_72 : f32 to vector<8x324xf32>
    %188 = arith.cmpf oge, %186, %187 : vector<8x324xf32>
    %cst_73 = arith.constant 0.00999999977 : f32
    %189 = vector.broadcast %cst_73 : f32 to vector<8x324xf32>
    %190 = arith.mulf %189, %186 : vector<8x324xf32>
    %191 = arith.select %188, %186, %190 : vector<8x324xi1>, vector<8x324xf32>
    %c104 = arith.constant 104 : index
    %c0_74 = arith.constant 0 : index
    %192 = vector.load %arg2[%c104, %c0_74] : memref<112x288xf32, #tpu.memory_space<vmem>>, vector<4x72xf32>
    %c104_75 = arith.constant 104 : index
    %c0_76 = arith.constant 0 : index
    %193 = vector.load %arg3[%c104_75, %c0_76] : memref<112x1xf32, #tpu.memory_space<vmem>>, vector<4x1xf32>
    %c8_77 = arith.constant 8 : index
    %c0_78 = arith.constant 0 : index
    %194 = vector.load %arg4[%c8_77, %c0_78] : memref<9x400xf32, #tpu.memory_space<vmem>>, vector<1x324xf32>
    %cst_79 = arith.constant 0.000000e+00 : f32
    %195 = vector.broadcast %cst_79 : f32 to vector<8x19xf32>
    %196 = tpu.concatenate %195, %191, %195 in 1 : vector<8x19xf32>, vector<8x324xf32>, vector<8x19xf32> -> vector<8x362xf32>
    %197 = vector.extract_strided_slice %196 {offsets = [0, 0], sizes = [8, 324], strides = [1, 1]} : vector<8x362xf32> to vector<8x324xf32>
    %198 = vector.extract_strided_slice %196 {offsets = [0, 1], sizes = [8, 324], strides = [1, 1]} : vector<8x362xf32> to vector<8x324xf32>
    %199 = vector.extract_strided_slice %196 {offsets = [0, 2], sizes = [8, 324], strides = [1, 1]} : vector<8x362xf32> to vector<8x324xf32>
    %200 = vector.extract_strided_slice %196 {offsets = [0, 18], sizes = [8, 324], strides = [1, 1]} : vector<8x362xf32> to vector<8x324xf32>
    %201 = vector.extract_strided_slice %196 {offsets = [0, 19], sizes = [8, 324], strides = [1, 1]} : vector<8x362xf32> to vector<8x324xf32>
    %202 = vector.extract_strided_slice %196 {offsets = [0, 20], sizes = [8, 324], strides = [1, 1]} : vector<8x362xf32> to vector<8x324xf32>
    %203 = vector.extract_strided_slice %196 {offsets = [0, 36], sizes = [8, 324], strides = [1, 1]} : vector<8x362xf32> to vector<8x324xf32>
    %204 = vector.extract_strided_slice %196 {offsets = [0, 37], sizes = [8, 324], strides = [1, 1]} : vector<8x362xf32> to vector<8x324xf32>
    %205 = vector.extract_strided_slice %196 {offsets = [0, 38], sizes = [8, 324], strides = [1, 1]} : vector<8x362xf32> to vector<8x324xf32>
    %206 = tpu.concatenate %197, %198, %199, %200, %201, %202, %203, %204, %205 in 0 : vector<8x324xf32>, vector<8x324xf32>, vector<8x324xf32>, vector<8x324xf32>, vector<8x324xf32>, vector<8x324xf32>, vector<8x324xf32>, vector<8x324xf32>, vector<8x324xf32> -> vector<72x324xf32>
    %cst_80 = arith.constant dense<0.000000e+00> : vector<4x324xf32>
    %207 = tpu.matmul %192, %206, %cst_80 {dimension_numbers = #tpu.dot_dimension_numbers<[1], [0], [0], [1], [0, 0, 1, 1], [], []>} : vector<4x72xf32>, vector<72x324xf32>, vector<4x324xf32> -> vector<4x324xf32>
    %208 = vector.broadcast %193 : vector<4x1xf32> to vector<4x324xf32>
    %209 = arith.addf %207, %208 : vector<4x324xf32>
    %210 = vector.broadcast %194 : vector<1x324xf32> to vector<4x324xf32>
    %211 = arith.mulf %209, %210 : vector<4x324xf32>
    %cst_81 = arith.constant 0.000000e+00 : f32
    %212 = vector.broadcast %cst_81 : f32 to vector<4x324xf32>
    %213 = tpu.concatenate %211, %212 in 0 : vector<4x324xf32>, vector<4x324xf32> -> vector<8x324xf32>
    %cst_82 = arith.constant 0.000000e+00 : f32
    %214 = vector.broadcast %cst_82 : f32 to vector<8x60xf32>
    %215 = tpu.concatenate %213, %214 in 1 : vector<8x324xf32>, vector<8x60xf32> -> vector<8x384xf32>
    %c0_83 = arith.constant 0 : index
    %c0_84 = arith.constant 0 : index
    %c0_85 = arith.constant 0 : index
    %216 = vector.load %arg9[%c0_83, %c0_84, %c0_85] : memref<1x8x384xf32, #tpu.memory_space<vmem>>, vector<1x8x384xf32>
    %217 = vector.shape_cast %216 : vector<1x8x384xf32> to vector<8x384xf32>
    %218 = vector.shape_cast %215 : vector<8x384xf32> to vector<1x8x384xf32>
    tpu.vector_store %arg9[%c0_83, %c0_84, %c0_85], %218 {strides = array<i32>} : memref<1x8x384xf32, #tpu.memory_space<vmem>>, vector<1x8x384xf32>,
    return
  }
  func.func @transform_0(%arg0: i32) -> (i32, i32, i32) {
    %c0_i32 = arith.constant 0 : i32
    %c0_i32_0 = arith.constant 0 : i32
    %c0_i32_1 = arith.constant 0 : i32
    return %arg0, %c0_i32, %c0_i32_0 : i32, i32, i32
  }
  func.func @transform_1(%arg0: i32) -> (i32, i32) {
    %c0_i32 = arith.constant 0 : i32
    %c0_i32_0 = arith.constant 0 : i32
    %c0_i32_1 = arith.constant 0 : i32
    return %c0_i32, %c0_i32_0 : i32, i32
  }
  func.func @transform_2(%arg0: i32) -> (i32, i32) {
    %c0_i32 = arith.constant 0 : i32
    %c0_i32_0 = arith.constant 0 : i32
    %c0_i32_1 = arith.constant 0 : i32
    return %c0_i32, %c0_i32_0 : i32, i32
  }
  func.func @transform_3(%arg0: i32) -> (i32, i32) {
    %c0_i32 = arith.constant 0 : i32
    %c0_i32_0 = arith.constant 0 : i32
    %c0_i32_1 = arith.constant 0 : i32
    return %c0_i32, %c0_i32_0 : i32, i32
  }
  func.func @transform_4(%arg0: i32) -> (i32, i32) {
    %c0_i32 = arith.constant 0 : i32
    %c0_i32_0 = arith.constant 0 : i32
    %c0_i32_1 = arith.constant 0 : i32
    return %c0_i32, %c0_i32_0 : i32, i32
  }
  func.func @transform_5(%arg0: i32) -> (i32, i32) {
    %c0_i32 = arith.constant 0 : i32
    %c0_i32_0 = arith.constant 0 : i32
    %c0_i32_1 = arith.constant 0 : i32
    return %c0_i32, %c0_i32_0 : i32, i32
  }
  func.func @transform_6(%arg0: i32) -> (i32, i32) {
    %c0_i32 = arith.constant 0 : i32
    %c0_i32_0 = arith.constant 0 : i32
    %c0_i32_1 = arith.constant 0 : i32
    return %c0_i32, %c0_i32_0 : i32, i32
  }
  func.func @transform_7(%arg0: i32) -> (i32, i32) {
    %c0_i32 = arith.constant 0 : i32
    %c0_i32_0 = arith.constant 0 : i32
    %c0_i32_1 = arith.constant 0 : i32
    return %c0_i32, %c0_i32_0 : i32, i32
  }
  func.func @transform_8(%arg0: i32) -> (i32, i32, i32) {
    %c0_i32 = arith.constant 0 : i32
    %c0_i32_0 = arith.constant 0 : i32
    %c0_i32_1 = arith.constant 0 : i32
    return %arg0, %c0_i32, %c0_i32_0 : i32, i32, i32
  }
}

</mosaic_0001>

<llo_original>
// kernel: autoencoder_forward.1
$region0: #{autoencoder_forward.1}
  #allocation0 [shape = 'u32[]', space=smem, size = 0x4, offset = 0x4, fixed_abs, tag = 'smem constant byte address 0x4 - core index']
  #allocation1 [shape = 'u32[144,128]{1,0:T(1,128)}', space=vmem, size = 0x12000, scoped, tag = 'internal scratch']
  %s0 = inlined_call_operand.vmem [shape: f32[2,4,400], index: 0, kind: input, shape index: {}]
  %s1 = inlined_call_operand.vmem [shape: f32[112,288], index: 1, kind: input, shape index: {}]
  %s2 = inlined_call_operand.vmem [shape: f32[112,1], index: 2, kind: input, shape index: {}]
  %s3 = inlined_call_operand.vmem [shape: f32[9,400], index: 3, kind: input, shape index: {}]
  %s4 = inlined_call_operand.vmem [shape: bf16[400,121], index: 4, kind: input, shape index: {}]
  %s5 = inlined_call_operand.vmem [shape: bf16[121,36], index: 5, kind: input, shape index: {}]
  %s6 = inlined_call_operand.vmem [shape: bf16[36,100], index: 6, kind: input, shape index: {}]
  %s7 = inlined_call_operand.vmem [shape: bf16[100,324], index: 7, kind: input, shape index: {}]
  %s8 = inlined_call_operand.vmem [shape: f32[2,8,384], index: 8, kind: output, shape index: {}]
  %s9 = sld [smem:[#allocation0]]
  $region65: #{autoencoder_forward.1} parent=0
    _
  %s11 = ssub.s32 1, %s9
  %s12 = scalar_select 0, %s11, %s9
  loop: start=0, step=1, limit=4
  $region2: #{autoencoder_forward.1} parent=0 // loop_pre_header
    _
  $region3: #{autoencoder_forward.1} parent=0 // loop_header
    %s14 = sphi 0, %s18
    %p15 = scmp.ge.s32.totalorder %s14, 4
    %s24 = sphi 0, %s26
    %s27 = sphi 0, %s24
    %s28 = sphi 0, %s27
    %s44 = sphi 0, %s28
    %s48 = sphi 0, %s48
    %s50 = sphi 0, %s48
    %s51 = sphi 0, %s50
    %s65 = sphi 0, %s51
    %s69 = sphi 0, %s69
    %s71 = sphi 0, %s69
    %s72 = sphi 0, %s71
    %s86 = sphi 0, %s72
    %s90 = sphi 0, %s90
    %s92 = sphi 0, %s90
    %s93 = sphi 0, %s92
    %s107 = sphi 0, %s93
    %s111 = sphi 0, %s111
    %s113 = sphi 0, %s111
    %s114 = sphi 0, %s113
    %s128 = sphi 0, %s114
    %s132 = sphi 0, %s132
    %s134 = sphi 0, %s132
    %s135 = sphi 0, %s134
    %s149 = sphi 0, %s135
    %s153 = sphi 0, %s153
    %s155 = sphi 0, %s153
    %s156 = sphi 0, %s155
    %s170 = sphi 0, %s156
    %s174 = sphi 0, %s174
    %s176 = sphi 0, %s174
    %s177 = sphi 0, %s176
    %s191 = sphi 0, %s177
    %s197 = sphi 0, %s199
    %s200 = sphi 0, %s197
    %s201 = sphi 0, %s200
    %s217 = sphi 0, %s201
  $region4: #{autoencoder_forward.1} parent=0 // loop_header_branch
    %17 = sbr.rel (%p15) target = $region8
  $region5: #{autoencoder_forward.1} parent=0 // loop_body
    %s19 = ssub.s32 %s14, 1
    %s20 = ssub.s32 %s14, 2
    %s21 = sadd.s32 %s14, 1
    %s22 = ssub.s32 %s14, %s21
    %p23 = scmp.eq.s32.totalorder %s22, 0
    %s25 = sadd.s32 %s24, 1
    %s26 = scalar_select %p23, %s24, %s25
    %p29 = pneg %p23
    %p30 = scmp.eq.s32.totalorder %s14, 1
    %p31 = por %p29, %p30
    %p32 = scmp.ne.s32.totalorder %s24, %s27
    %p33 = scmp.eq.s32.totalorder %s14, 0
    %p34 = por %p32, %p33
    %p35 = scmp.ne.s32.totalorder %s24, %s27
    %p36 = scmp.eq.s32.totalorder %s19, 1
    %p37 = por %p35, %p36
    %p38 = scmp.ne.s32.totalorder %s27, %s28
    %p39 = scmp.eq.s32.totalorder %s19, 0
    %p40 = por %p38, %p39
    %p41 = scmp.ne.s32.totalorder %s27, %s28
    %p42 = scmp.eq.s32.totalorder %s20, 1
    %p43 = por %p41, %p42
    %p45 = scmp.ne.s32.totalorder %s28, %s44
    %p46 = scmp.eq.s32.totalorder %s20, 0
    %p47 = por %p45, %p46
    %s49 = sadd.s32 %s48, 1
    %p52 = scmp.eq.s32.totalorder %s14, 1
    %p53 = scmp.ne.s32.totalorder %s48, %s50
    %p54 = scmp.eq.s32.totalorder %s14, 0
    %p55 = por %p53, %p54
    %p56 = scmp.ne.s32.totalorder %s48, %s50
    %p57 = scmp.eq.s32.totalorder %s19, 1
    %p58 = por %p56, %p57
    %p59 = scmp.ne.s32.totalorder %s50, %s51
    %p60 = scmp.eq.s32.totalorder %s19, 0
    %p61 = por %p59, %p60
    %p62 = scmp.ne.s32.totalorder %s50, %s51
    %p63 = scmp.eq.s32.totalorder %s20, 1
    %p64 = por %p62, %p63
    %p66 = scmp.ne.s32.totalorder %s51, %s65
    %p67 = scmp.eq.s32.totalorder %s20, 0
    %p68 = por %p66, %p67
    %s70 = sadd.s32 %s69, 1
    %p73 = scmp.eq.s32.totalorder %s14, 1
    %p74 = scmp.ne.s32.totalorder %s69, %s71
    %p75 = scmp.eq.s32.totalorder %s14, 0
    %p76 = por %p74, %p75
    %p77 = scmp.ne.s32.totalorder %s69, %s71
    %p78 = scmp.eq.s32.totalorder %s19, 1
    %p79 = por %p77, %p78
    %p80 = scmp.ne.s32.totalorder %s71, %s72
    %p81 = scmp.eq.s32.totalorder %s19, 0
    %p82 = por %p80, %p81
    %p83 = scmp.ne.s32.totalorder %s71, %s72
    %p84 = scmp.eq.s32.totalorder %s20, 1
    %p85 = por %p83, %p84
    %p87 = scmp.ne.s32.totalorder %s72, %s86
    %p88 = scmp.eq.s32.totalorder %s20, 0
    %p89 = por %p87, %p88
    %s91 = sadd.s32 %s90, 1
    %p94 = scmp.eq.s32.totalorder %s14, 1
    %p95 = scmp.ne.s32.totalorder %s90, %s92
    %p96 = scmp.eq.s32.totalorder %s14, 0
    %p97 = por %p95, %p96
    %p98 = scmp.ne.s32.totalorder %s90, %s92
    %p99 = scmp.eq.s32.totalorder %s19, 1
    %p100 = por %p98, %p99
    %p101 = scmp.ne.s32.totalorder %s92, %s93
    %p102 = scmp.eq.s32.totalorder %s19, 0
    %p103 = por %p101, %p102
    %p104 = scmp.ne.s32.totalorder %s92, %s93
    %p105 = scmp.eq.s32.totalorder %s20, 1
    %p106 = por %p104, %p105
    %p108 = scmp.ne.s32.totalorder %s93, %s107
    %p109 = scmp.eq.s32.totalorder %s20, 0
    %p110 = por %p108, %p109
    %s112 = sadd.s32 %s111, 1
    %p115 = scmp.eq.s32.totalorder %s14, 1
    %p116 = scmp.ne.s32.totalorder %s111, %s113
    %p117 = scmp.eq.s32.totalorder %s14, 0
    %p118 = por %p116, %p117
    %p119 = scmp.ne.s32.totalorder %s111, %s113
    %p120 = scmp.eq.s32.totalorder %s19, 1
    %p121 = por %p119, %p120
    %p122 = scmp.ne.s32.totalorder %s113, %s114
    %p123 = scmp.eq.s32.totalorder %s19, 0
    %p124 = por %p122, %p123
    %p125 = scmp.ne.s32.totalorder %s113, %s114
    %p126 = scmp.eq.s32.totalorder %s20, 1
    %p127 = por %p125, %p126
    %p129 = scmp.ne.s32.totalorder %s114, %s128
    %p130 = scmp.eq.s32.totalorder %s20, 0
    %p131 = por %p129, %p130
    %s133 = sadd.s32 %s132, 1
    %p136 = scmp.eq.s32.totalorder %s14, 1
    %p137 = scmp.ne.s32.totalorder %s132, %s134
    %p138 = scmp.eq.s32.totalorder %s14, 0
    %p139 = por %p137, %p138
    %p140 = scmp.ne.s32.totalorder %s132, %s134
    %p141 = scmp.eq.s32.totalorder %s19, 1
    %p142 = por %p140, %p141
    %p143 = scmp.ne.s32.totalorder %s134, %s135
    %p144 = scmp.eq.s32.totalorder %s19, 0
    %p145 = por %p143, %p144
    %p146 = scmp.ne.s32.totalorder %s134, %s135
    %p147 = scmp.eq.s32.totalorder %s20, 1
    %p148 = por %p146, %p147
    %p150 = scmp.ne.s32.totalorder %s135, %s149
    %p151 = scmp.eq.s32.totalorder %s20, 0
    %p152 = por %p150, %p151
    %s154 = sadd.s32 %s153, 1
    %p157 = scmp.eq.s32.totalorder %s14, 1
    %p158 = scmp.ne.s32.totalorder %s153, %s155
    %p159 = scmp.eq.s32.totalorder %s14, 0
    %p160 = por %p158, %p159
    %p161 = scmp.ne.s32.totalorder %s153, %s155
    %p162 = scmp.eq.s32.totalorder %s19, 1
    %p163 = por %p161, %p162
    %p164 = scmp.ne.s32.totalorder %s155, %s156
    %p165 = scmp.eq.s32.totalorder %s19, 0
    %p166 = por %p164, %p165
    %p167 = scmp.ne.s32.totalorder %s155, %s156
    %p168 = scmp.eq.s32.totalorder %s20, 1
    %p169 = por %p167, %p168
    %p171 = scmp.ne.s32.totalorder %s156, %s170
    %p172 = scmp.eq.s32.totalorder %s20, 0
    %p173 = por %p171, %p172
    %s175 = sadd.s32 %s174, 1
    %p178 = scmp.eq.s32.totalorder %s14, 1
    %p179 = scmp.ne.s32.totalorder %s174, %s176
    %p180 = scmp.eq.s32.totalorder %s14, 0
    %p181 = por %p179, %p180
    %p182 = scmp.ne.s32.totalorder %s174, %s176
    %p183 = scmp.eq.s32.totalorder %s19, 1
    %p184 = por %p182, %p183
    %p185 = scmp.ne.s32.totalorder %s176, %s177
    %p186 = scmp.eq.s32.totalorder %s19, 0
    %p187 = por %p185, %p186
    %p188 = scmp.ne.s32.totalorder %s176, %s177
    %p189 = scmp.eq.s32.totalorder %s20, 1
    %p190 = por %p188, %p189
    %p192 = scmp.ne.s32.totalorder %s177, %s191
    %p193 = scmp.eq.s32.totalorder %s20, 0
    %p194 = por %p192, %p193
    %s195 = ssub.s32 %s14, %s21
    %p196 = scmp.eq.s32.totalorder %s195, 0
    %s198 = sadd.s32 %s197, 1
    %s199 = scalar_select %p196, %s197, %s198
    %p202 = pneg %p196
    %p203 = scmp.eq.s32.totalorder %s14, 1
    %p204 = por %p202, %p203
    %p205 = scmp.ne.s32.totalorder %s197, %s200
    %p206 = scmp.eq.s32.totalorder %s14, 0
    %p207 = por %p205, %p206
    %p208 = scmp.ne.s32.totalorder %s197, %s200
    %p209 = scmp.eq.s32.totalorder %s19, 1
    %p210 = por %p208, %p209
    %p211 = scmp.ne.s32.totalorder %s200, %s201
    %p212 = scmp.eq.s32.totalorder %s19, 0
    %p213 = por %p211, %p212
    %p214 = scmp.ne.s32.totalorder %s200, %s201
    %p215 = scmp.eq.s32.totalorder %s20, 1
    %p216 = por %p214, %p215
    %p218 = scmp.ne.s32.totalorder %s201, %s217
    %p219 = scmp.eq.s32.totalorder %s20, 0
    %p220 = por %p218, %p219
    %p221 = scmp.le.s32.totalorder 1, %s14
    %p222 = scmp.lt.s32.totalorder %s14, 3
    %p223 = pnand %p221, %p222
    %p224 = pneg %p223
    // Predicated region
    $region9: #{autoencoder_forward.1} parent=5 // pred_check
      _
    $region10: #{autoencoder_forward.1} parent=5 // pred_check_branch
      %226 = sbr.rel (%p223) target = $region12
    $region11: #{autoencoder_forward.1} parent=5 // pred_region
      %s227 = ssub.s32 %s14, 1
      // Predicated region
      $region13: #{autoencoder_forward.1} parent=11 // pred_check
        %p228 = pneg %p61
      $region14: #{autoencoder_forward.1} parent=11 // pred_check_branch
        %230 = sbr.rel (%p228) target = $region16
      $region15: #{autoencoder_forward.1} parent=11 // pred_region
        _
      $region16: #{autoencoder_forward.1} parent=11 // pred_fallthru
        _
      // Predicated region
      $region17: #{autoencoder_forward.1} parent=11 // pred_check
        %p231 = pneg %p82
      $region18: #{autoencoder_forward.1} parent=11 // pred_check_branch
        %233 = sbr.rel (%p231) target = $region20
      $region19: #{autoencoder_forward.1} parent=11 // pred_region
        _
      $region20: #{autoencoder_forward.1} parent=11 // pred_fallthru
        _
      // Predicated region
      $region21: #{autoencoder_forward.1} parent=11 // pred_check
        %p234 = pneg %p103
      $region22: #{autoencoder_forward.1} parent=11 // pred_check_branch
        %236 = sbr.rel (%p234) target = $region24
      $region23: #{autoencoder_forward.1} parent=11 // pred_region
        _
      $region24: #{autoencoder_forward.1} parent=11 // pred_fallthru
        _
      // Predicated region
      $region25: #{autoencoder_forward.1} parent=11 // pred_check
        %p237 = pneg %p124
      $region26: #{autoencoder_forward.1} parent=11 // pred_check_branch
        %239 = sbr.rel (%p237) target = $region28
      $region27: #{autoencoder_forward.1} parent=11 // pred_region
        _
      $region28: #{autoencoder_forward.1} parent=11 // pred_fallthru
        _
      // Predicated region
      $region29: #{autoencoder_forward.1} parent=11 // pred_check
        %p240 = pneg %p145
      $region30: #{autoencoder_forward.1} parent=11 // pred_check_branch
        %242 = sbr.rel (%p240) target = $region32
      $region31: #{autoencoder_forward.1} parent=11 // pred_region
        _
      $region32: #{autoencoder_forward.1} parent=11 // pred_fallthru
        _
      // Predicated region
      $region33: #{autoencoder_forward.1} parent=11 // pred_check
        %p243 = pneg %p166
      $region34: #{autoencoder_forward.1} parent=11 // pred_check_branch
        %245 = sbr.rel (%p243) target = $region36
      $region35: #{autoencoder_forward.1} parent=11 // pred_region
        _
      $region36: #{autoencoder_forward.1} parent=11 // pred_fallthru
        _
      // Predicated region
      $region37: #{autoencoder_forward.1} parent=11 // pred_check
        %p246 = pneg %p187
      $region38: #{autoencoder_forward.1} parent=11 // pred_check_branch
        %248 = sbr.rel (%p246) target = $region40
      $region39: #{autoencoder_forward.1} parent=11 // pred_region
        _
      $region40: #{autoencoder_forward.1} parent=11 // pred_fallthru
        _
    $region12: #{autoencoder_forward.1} parent=5 // pred_fallthru
      _
    %p249 = scmp.lt.s32.totalorder %s14, 2
    // Predicated region
    $region41: #{autoencoder_forward.1} parent=5 // pred_check
      %p250 = pneg %p249
    $region42: #{autoencoder_forward.1} parent=5 // pred_check_branch
      %252 = sbr.rel (%p250) target = $region44
    $region43: #{autoencoder_forward.1} parent=5 // pred_region
      // Predicated region
      $region45: #{autoencoder_forward.1} parent=43 // pred_check
        %p253 = pneg %p34
      $region46: #{autoencoder_forward.1} parent=43 // pred_check_branch
        %255 = sbr.rel (%p253) target = $region48
      $region47: #{autoencoder_forward.1} parent=43 // pred_region
        %p256 = scmp.lt.s32.totalorder %s14, 1
        %s257 = scalar_select %p256, %s14, 1
        %s258 = smul.addr %s257, 4
        %s259 = smul.addr %s258, 4
        %s260 = scalar_lea.vmem %s0, %s259
      $region48: #{autoencoder_forward.1} parent=43 // pred_fallthru
        _
    $region44: #{autoencoder_forward.1} parent=5 // pred_fallthru
      _
    %p261 = scmp.le.s32.totalorder 1, %s14
    %p262 = scmp.lt.s32.totalorder %s14, 3
    %p263 = pnand %p261, %p262
    %p264 = pneg %p263
    // Predicated region
    $region49: #{autoencoder_forward.1} parent=5 // pred_check
      _
    $region50: #{autoencoder_forward.1} parent=5 // pred_check_branch
      %266 = sbr.rel (%p263) target = $region52
    $region51: #{autoencoder_forward.1} parent=5 // pred_region
      %s267 = ssub.s32 %s14, 1
      %p268 = scmp.lt.s32.totalorder %s19, 1
      %s269 = scalar_select %p268, %s19, 1
      %s270 = smul.addr %s269, 4
      %s271 = smul.addr %s270, 4
      %s272 = scalar_lea.vmem %s0, %s271
      %p273 = pneg %p40
      %p274 = pneg %p37
      %p275 = pneg %p61
      %p276 = pneg %p58
      %p277 = pneg %p82
      %p278 = pneg %p79
      %p279 = pneg %p103
      %p280 = pneg %p100
      %p281 = pneg %p124
      %p282 = pneg %p121
      %p283 = pneg %p145
      %p284 = pneg %p142
      %p285 = pneg %p166
      %p286 = pneg %p163
      %p287 = pneg %p187
      %p288 = pneg %p184
      %p289 = pneg %p213
      %p290 = pneg %p210
      %p291 = scmp.lt.s32.totalorder %s19, 1
      %s292 = scalar_select %p291, %s19, 1
      %s293 = smul.addr %s292, 3
      %s294 = smul.addr %s293, 8
      %s295 = scalar_lea.vmem %s8, %s294
      %p296 = scmp.lt.s32.totalorder %s19, 1
      %s297 = scalar_select %p296, %s19, 1
      %s298 = smul.addr %s297, 4
      %s299 = smul.addr %s298, 4
      %s300 = scalar_lea.vmem %s0, %s299
      %p301 = scmp.lt.s32.totalorder %s19, 1
      %s302 = scalar_select %p301, %s19, 1
      %s303 = smul.addr %s302, 3
      %s304 = smul.addr %s303, 8
      %s305 = scalar_lea.vmem %s8, %s304
      %v306 = vld [vmem:[%s300] sm:$0xff]
      %v307 = vld [vmem:[%s300 + $0x8] sm:$0xff]
      %v308 = vld [vmem:[%s1] sm:$0xff]
      %v309 = vld [vmem:[%s2] sm:$0xff]
      %v310 = vld [vmem:[%s3] ss:$8 sm:$0xf]
      %312 = vset.pattern.permute.xlu0 0
      %313 = vperm.xlu0 %312, %v309
      %v314 = vpop.permute.xlu0 %313
      %v318 = vcombine.high %v306, %v306
      %v319 = vcombine.high %v307, %v307
      %vm320 = vcmask 31744
      %v322 = vsel %vm320, %v308, 0
      %vm324 = vcmask 1043456
      %v325 = vsel %vm324, %v306, 0
      %v327 = vsel %vm324, %v318, 0
      %v329 = vsel %vm324, %v307, 0
      %v331 = vsel %vm324, %v319, 0
      %333 = vmatprep.subr.mxu0 0.0
      %334 = vmatpush1.msra.mxu0 0.0
      %335 = vmatprep.subr.mxu0 0.0
      %336 = vmatpush1.msra.mxu0 0.0
      %337 = vmatprep.subr.mxu0 0.0
      %338 = vmatpush1.msra.mxu0 0.0
      %339 = vmatprep.subr.mxu0 0.0
      %340 = vmatpush1.msra.mxu0 0.0
      %341 = vmatprep.subr.mxu0 0.0
      %342 = vmatpush1.msra.mxu0 0.0
      %343 = vmatprep.subr.mxu0 0.0
      %344 = vmatpush1.msra.mxu0 0.0
      %345 = vmatprep.subr.mxu0 0.0
      %346 = vmatpush1.msra.mxu0 0.0
      %347 = vmatprep.subr.mxu0 0.0
      %348 = vmatpush1.msra.mxu0 0.0
      %349 = vmatprep.subr.mxu0 0.0
      %350 = vmatpush1.msra.mxu0 0.0
      %351 = vmatprep.subr.mxu0 0.0
      %352 = vmatpush1.msra.mxu0 0.0
      %353 = vmatprep.subr.mxu0 0.0
      %354 = vmatpush1.msra.mxu0 0.0
      %355 = vmatprep.subr.mxu0 0.0
      %356 = vmatpush1.msra.mxu0 0.0
      %357 = vmatprep.subr.mxu0 0.0
      %358 = vmatpush1.msra.mxu0 0.0
      %359 = vmatprep.subr.mxu0 0.0
      %360 = vmatpush1.msra.mxu0 0.0
      %361 = vmatprep.subr.mxu0 0.0
      %362 = vmatpush1.msra.mxu0 0.0
      %363 = vmatprep.subr.mxu0 %v327
      %364 = vmatpush1.msra.mxu0 %v325
      %365 = vmatprep.subr.mxu0 0.0
      %366 = vmatpush2.msra.mxu0 0.0
      %367 = vmatprep.subr.mxu0 0.0
      %368 = vmatpush2.msra.mxu0 0.0
      %369 = vmatprep.subr.mxu0 0.0
      %370 = vmatpush2.msra.mxu0 0.0
      %371 = vmatprep.subr.mxu0 0.0
      %372 = vmatpush2.msra.mxu0 0.0
      %373 = vmatprep.subr.mxu0 0.0
      %374 = vmatpush2.msra.mxu0 0.0
      %375 = vmatprep.subr.mxu0 0.0
      %376 = vmatpush2.msra.mxu0 0.0
      %377 = vmatprep.subr.mxu0 0.0
      %378 = vmatpush2.msra.mxu0 0.0
      %379 = vmatprep.subr.mxu0 0.0
      %380 = vmatpush2.msra.mxu0 0.0
      %381 = vmatprep.subr.mxu0 0.0
      %382 = vmatpush2.msra.mxu0 0.0
      %383 = vmatprep.subr.mxu0 0.0
      %384 = vmatpush2.msra.mxu0 0.0
      %385 = vmatprep.subr.mxu0 0.0
      %386 = vmatpush2.msra.mxu0 0.0
      %387 = vmatprep.subr.mxu0 0.0
      %388 = vmatpush2.msra.mxu0 0.0
      %389 = vmatprep.subr.mxu0 0.0
      %390 = vmatpush2.msra.mxu0 0.0
      %391 = vmatprep.subr.mxu0 0.0
      %392 = vmatpush2.msra.mxu0 0.0
      %393 = vmatprep.subr.mxu0 0.0
      %394 = vmatpush2.msra.mxu0 0.0
      %395 = vmatprep.subr.mxu0 0.0
      %396 = vmatpush2.msra.mxu0 0.0
      %397 = vmatprep.mubr.f32.mxu0 0.0
      %398 = vmatmul.mubr.f32.gmra.mxu0 %v322
      %v399 = vpop.f32.mrf.mxu0
      %v400 = vadd.f32 %v314, %v399
      %v401 = vpop.f32.mrf.mxu0
      %v402 = vadd.f32 %v314, %v401
      %403 = vdwg.mxu0
      %404 = vmatprep.subr.mxu0 0.0
      %405 = vmatpush1.msra.mxu0 0.0
      %406 = vmatprep.subr.mxu0 0.0
      %407 = vmatpush1.msra.mxu0 0.0
      %408 = vmatprep.subr.mxu0 0.0
      %409 = vmatpush1.msra.mxu0 0.0
      %410 = vmatprep.subr.mxu0 0.0
      %411 = vmatpush1.msra.mxu0 0.0
      %412 = vmatprep.subr.mxu0 0.0
      %413 = vmatpush1.msra.mxu0 0.0
      %414 = vmatprep.subr.mxu0 0.0
      %415 = vmatpush1.msra.mxu0 0.0
      %416 = vmatprep.subr.mxu0 0.0
      %417 = vmatpush1.msra.mxu0 0.0
      %418 = vmatprep.subr.mxu0 0.0
      %419 = vmatpush1.msra.mxu0 0.0
      %420 = vmatprep.subr.mxu0 0.0
      %421 = vmatpush1.msra.mxu0 0.0
      %422 = vmatprep.subr.mxu0 0.0
      %423 = vmatpush1.msra.mxu0 0.0
      %424 = vmatprep.subr.mxu0 0.0
      %425 = vmatpush1.msra.mxu0 0.0
      %426 = vmatprep.subr.mxu0 0.0
      %427 = vmatpush1.msra.mxu0 0.0
      %428 = vmatprep.subr.mxu0 0.0
      %429 = vmatpush1.msra.mxu0 0.0
      %430 = vmatprep.subr.mxu0 0.0
      %431 = vmatpush1.msra.mxu0 0.0
      %432 = vmatprep.subr.mxu0 0.0
      %433 = vmatpush1.msra.mxu0 0.0
      %434 = vmatprep.subr.mxu0 %v331
      %435 = vmatpush1.msra.mxu0 %v329
      %436 = vmatprep.subr.mxu0 0.0
      %437 = vmatpush2.msra.mxu0 0.0
      %438 = vmatprep.subr.mxu0 0.0
      %439 = vmatpush2.msra.mxu0 0.0
      %440 = vmatprep.subr.mxu0 0.0
      %441 = vmatpush2.msra.mxu0 0.0
      %442 = vmatprep.subr.mxu0 0.0
      %443 = vmatpush2.msra.mxu0 0.0
      %444 = vmatprep.subr.mxu0 0.0
      %445 = vmatpush2.msra.mxu0 0.0
      %446 = vmatprep.subr.mxu0 0.0
      %447 = vmatpush2.msra.mxu0 0.0
      %448 = vmatprep.subr.mxu0 0.0
      %449 = vmatpush2.msra.mxu0 0.0
      %450 = vmatprep.subr.mxu0 0.0
      %451 = vmatpush2.msra.mxu0 0.0
      %452 = vmatprep.subr.mxu0 0.0
      %453 = vmatpush2.msra.mxu0 0.0
      %454 = vmatprep.subr.mxu0 0.0
      %455 = vmatpush2.msra.mxu0 0.0
      %456 = vmatprep.subr.mxu0 0.0
      %457 = vmatpush2.msra.mxu0 0.0
      %458 = vmatprep.subr.mxu0 0.0
      %459 = vmatpush2.msra.mxu0 0.0
      %460 = vmatprep.subr.mxu0 0.0
      %461 = vmatpush2.msra.mxu0 0.0
      %462 = vmatprep.subr.mxu0 0.0
      %463 = vmatpush2.msra.mxu0 0.0
      %464 = vmatprep.subr.mxu0 0.0
      %465 = vmatpush2.msra.mxu0 0.0
      %466 = vmatprep.subr.mxu0 0.0
      %467 = vmatpush2.msra.mxu0 0.0
      %468 = vmatprep.mubr.f32.mxu0 0.0
      %469 = vmatmul.mubr.f32.gmra.mxu0 %v322
      %v470 = vpop.f32.mrf.mxu0
      %v471 = vadd.f32 %v314, %v470
      %v472 = vpop.f32.mrf.mxu0
      %v473 = vadd.f32 %v314, %v472
      %474 = vdwg.mxu0
      %v476 = vlaneseq
      %v477 = vshrl.u32 %v476, 7
      %v478 = vsub.s32 0, %v477
      %v479 = vrot.slane %v310, %v478
      %v480 = vlaneseq
      %v481 = vshrl.u32 %v480, 7
      %v482 = vsub.s32 1, %v481
      %v483 = vrot.slane %v310, %v482
      %v484 = vlaneseq
      %v485 = vshrl.u32 %v484, 7
      %v486 = vsub.s32 2, %v485
      %v487 = vrot.slane %v310, %v486
      %v488 = vlaneseq
      %v489 = vshrl.u32 %v488, 7
      %v490 = vsub.s32 3, %v489
      %v491 = vrot.slane %v310, %v490
      %v496 = vmul.f32 %v400, %v479
      %v497 = vmul.f32 %v402, %v483
      %v498 = vmul.f32 %v471, %v487
      %v499 = vmul.f32 %v473, %v491
      %v500 = vld [vmem:[%s1 + $0x18] sm:$0xff]
      %v501 = vld [vmem:[%s2 + $0x8] sm:$0xff]
      %s502 = scalar_lea.vmem %s3, 1
      %v503 = vld [vmem:[%s502] ss:$8 sm:$0xf]
      %508 = vrot.lane.b32.xlu0 %v496, 21
      %v509 = vpop.permute.xlu0 %508
      %510 = vrot.lane.b32.xlu0 %v497, 21
      %v511 = vpop.permute.xlu0 %510
      %512 = vrot.lane.b32.xlu0 %v498, 21
      %v513 = vpop.permute.xlu0 %512
      %514 = vrot.lane.b32.xlu0 %v499, 21
      %v515 = vpop.permute.xlu0 %514
      %vm516 = vcmask 171008
      %v517 = vsel %vm516, %v509, %v511
      %v518 = vsel %vm516, %v511, %v513
      %v519 = vsel %vm516, %v513, %v515
      %v524 = vsel %vm516, 0.0, %v509
      %vm525 = vcmask 302080
      %v526 = vsel %vm525, %v519, 0.0
      %529 = vrot.lane.b32.xlu0 %v524, 127
      %v530 = vpop.permute.xlu0 %529
      %531 = vrot.lane.b32.xlu0 %v517, 127
      %v532 = vpop.permute.xlu0 %531
      %533 = vrot.lane.b32.xlu0 %v518, 127
      %v534 = vpop.permute.xlu0 %533
      %535 = vrot.lane.b32.xlu0 %v526, 127
      %v536 = vpop.permute.xlu0 %535
      %vm537 = vcmask 1039360
      %v538 = vsel %vm537, %v530, %v532
      %v539 = vsel %vm537, %v532, %v534
      %v540 = vsel %vm537, %v534, %v536
      %545 = vrot.lane.b32.xlu0 %v524, 126
      %v546 = vpop.permute.xlu0 %545
      %547 = vrot.lane.b32.xlu0 %v517, 126
      %v548 = vpop.permute.xlu0 %547
      %549 = vrot.lane.b32.xlu0 %v518, 126
      %v550 = vpop.permute.xlu0 %549
      %551 = vrot.lane.b32.xlu0 %v526, 126
      %v552 = vpop.permute.xlu0 %551
      %vm553 = vcmask 1031168
      %v554 = vsel %vm553, %v546, %v548
      %v555 = vsel %vm553, %v548, %v550
      %v556 = vsel %vm553, %v550, %v552
      %561 = vrot.lane.b32.xlu0 %v524, 108
      %v562 = vpop.permute.xlu0 %561
      %563 = vrot.lane.b32.xlu0 %v517, 108
      %v564 = vpop.permute.xlu0 %563
      %565 = vrot.lane.b32.xlu0 %v518, 108
      %v566 = vpop.permute.xlu0 %565
      %567 = vrot.lane.b32.xlu0 %v526, 108
      %v568 = vpop.permute.xlu0 %567
      %vm569 = vcmask 883712
      %v570 = vsel %vm569, %v562, %v564
      %v571 = vsel %vm569, %v564, %v566
      %v572 = vsel %vm569, %v566, %v568
      %577 = vrot.lane.b32.xlu0 %v524, 107
      %v578 = vpop.permute.xlu0 %577
      %579 = vrot.lane.b32.xlu0 %v517, 107
      %v580 = vpop.permute.xlu0 %579
      %581 = vrot.lane.b32.xlu0 %v518, 107
      %v582 = vpop.permute.xlu0 %581
      %583 = vrot.lane.b32.xlu0 %v526, 107
      %v584 = vpop.permute.xlu0 %583
      %vm585 = vcmask 875520
      %v586 = vsel %vm585, %v578, %v580
      %v587 = vsel %vm585, %v580, %v582
      %v588 = vsel %vm585, %v582, %v584
      %593 = vrot.lane.b32.xlu0 %v524, 106
      %v594 = vpop.permute.xlu0 %593
      %595 = vrot.lane.b32.xlu0 %v517, 106
      %v596 = vpop.permute.xlu0 %595
      %597 = vrot.lane.b32.xlu0 %v518, 106
      %v598 = vpop.permute.xlu0 %597
      %599 = vrot.lane.b32.xlu0 %v526, 106
      %v600 = vpop.permute.xlu0 %599
      %vm601 = vcmask 867328
      %v602 = vsel %vm601, %v594, %v596
      %v603 = vsel %vm601, %v596, %v598
      %v604 = vsel %vm601, %v598, %v600
      %609 = vrot.lane.b32.xlu0 %v524, 88
      %v610 = vpop.permute.xlu0 %609
      %611 = vrot.lane.b32.xlu0 %v517, 88
      %v612 = vpop.permute.xlu0 %611
      %613 = vrot.lane.b32.xlu0 %v518, 88
      %v614 = vpop.permute.xlu0 %613
      %615 = vrot.lane.b32.xlu0 %v526, 88
      %v616 = vpop.permute.xlu0 %615
      %vm617 = vcmask 719872
      %v618 = vsel %vm617, %v610, %v612
      %v619 = vsel %vm617, %v612, %v614
      %v620 = vsel %vm617, %v614, %v616
      %625 = vrot.lane.b32.xlu0 %v524, 87
      %v626 = vpop.permute.xlu0 %625
      %627 = vrot.lane.b32.xlu0 %v517, 87
      %v628 = vpop.permute.xlu0 %627
      %629 = vrot.lane.b32.xlu0 %v518, 87
      %v630 = vpop.permute.xlu0 %629
      %631 = vrot.lane.b32.xlu0 %v526, 87
      %v632 = vpop.permute.xlu0 %631
      %vm633 = vcmask 711680
      %v634 = vsel %vm633, %v626, %v628
      %v635 = vsel %vm633, %v628, %v630
      %v636 = vsel %vm633, %v630, %v632
      %641 = vrot.lane.b32.xlu0 %v524, 86
      %v642 = vpop.permute.xlu0 %641
      %643 = vrot.lane.b32.xlu0 %v517, 86
      %v644 = vpop.permute.xlu0 %643
      %645 = vrot.lane.b32.xlu0 %v518, 86
      %v646 = vpop.permute.xlu0 %645
      %647 = vrot.lane.b32.xlu0 %v526, 86
      %v648 = vpop.permute.xlu0 %647
      %vm649 = vcmask 703488
      %v650 = vsel %vm649, %v642, %v644
      %v651 = vsel %vm649, %v644, %v646
      %v652 = vsel %vm649, %v646, %v648
      %658 = vset.pattern.permute.xlu0 0
      %659 = vperm.xlu0 %658, %v501
      %v660 = vpop.permute.xlu0 %659
      %vm662 = vcmask 588800
      %v664 = vsel %vm662, %v500, 0
      %666 = vmatprep.subr.mxu0 0.0
      %667 = vmatpush1.msra.mxu0 0.0
      %668 = vmatprep.subr.mxu0 0.0
      %669 = vmatpush1.msra.mxu0 0.0
      %670 = vmatprep.subr.mxu0 0.0
      %671 = vmatpush1.msra.mxu0 0.0
      %672 = vmatprep.subr.mxu0 0.0
      %673 = vmatpush1.msra.mxu0 0.0
      %674 = vmatprep.subr.mxu0 0.0
      %675 = vmatpush1.msra.mxu0 0.0
      %676 = vmatprep.subr.mxu0 0.0
      %677 = vmatpush1.msra.mxu0 0.0
      %678 = vmatprep.subr.mxu0 0.0
      %679 = vmatpush1.msra.mxu0 0.0
      %680 = vmatprep.subr.mxu0 %v651
      %681 = vmatpush1.msra.mxu0 %v650
      %682 = vmatprep.subr.mxu0 %v635
      %683 = vmatpush1.msra.mxu0 %v634
      %684 = vmatprep.subr.mxu0 %v619
      %685 = vmatpush1.msra.mxu0 %v618
      %686 = vmatprep.subr.mxu0 %v603
      %687 = vmatpush1.msra.mxu0 %v602
      %688 = vmatprep.subr.mxu0 %v587
      %689 = vmatpush1.msra.mxu0 %v586
      %690 = vmatprep.subr.mxu0 %v571
      %691 = vmatpush1.msra.mxu0 %v570
      %692 = vmatprep.subr.mxu0 %v555
      %693 = vmatpush1.msra.mxu0 %v554
      %694 = vmatprep.subr.mxu0 %v539
      %695 = vmatpush1.msra.mxu0 %v538
      %696 = vmatprep.subr.mxu0 %v517
      %697 = vmatpush1.msra.mxu0 %v524
      %698 = vmatprep.subr.mxu0 0.0
      %699 = vmatpush2.msra.mxu0 0.0
      %700 = vmatprep.subr.mxu0 0.0
      %701 = vmatpush2.msra.mxu0 0.0
      %702 = vmatprep.subr.mxu0 0.0
      %703 = vmatpush2.msra.mxu0 0.0
      %704 = vmatprep.subr.mxu0 0.0
      %705 = vmatpush2.msra.mxu0 0.0
      %706 = vmatprep.subr.mxu0 0.0
      %707 = vmatpush2.msra.mxu0 0.0
      %708 = vmatprep.subr.mxu0 0.0
      %709 = vmatpush2.msra.mxu0 0.0
      %710 = vmatprep.subr.mxu0 0.0
      %711 = vmatpush2.msra.mxu0 0.0
      %712 = vmatprep.subr.mxu0 0.0
      %713 = vmatpush2.msra.mxu0 0.0
      %714 = vmatprep.subr.mxu0 0.0
      %715 = vmatpush2.msra.mxu0 0.0
      %716 = vmatprep.subr.mxu0 0.0
      %717 = vmatpush2.msra.mxu0 0.0
      %718 = vmatprep.subr.mxu0 0.0
      %719 = vmatpush2.msra.mxu0 0.0
      %720 = vmatprep.subr.mxu0 0.0
      %721 = vmatpush2.msra.mxu0 0.0
      %722 = vmatprep.subr.mxu0 0.0
      %723 = vmatpush2.msra.mxu0 0.0
      %724 = vmatprep.subr.mxu0 0.0
      %725 = vmatpush2.msra.mxu0 0.0
      %726 = vmatprep.subr.mxu0 0.0
      %727 = vmatpush2.msra.mxu0 0.0
      %728 = vmatprep.subr.mxu0 0.0
      %729 = vmatpush2.msra.mxu0 0.0
      %730 = vmatprep.mubr.f32.mxu0 0.0
      %731 = vmatmul.mubr.f32.gmra.mxu0 %v664
      %v732 = vpop.f32.mrf.mxu0
      %v733 = vadd.f32 %v660, %v732
      %v734 = vpop.f32.mrf.mxu0
      %v735 = vadd.f32 %v660, %v734
      %736 = vdwg.mxu0
      %737 = vmatprep.subr.mxu0 0.0
      %738 = vmatpush1.msra.mxu0 0.0
      %739 = vmatprep.subr.mxu0 0.0
      %740 = vmatpush1.msra.mxu0 0.0
      %741 = vmatprep.subr.mxu0 0.0
      %742 = vmatpush1.msra.mxu0 0.0
      %743 = vmatprep.subr.mxu0 0.0
      %744 = vmatpush1.msra.mxu0 0.0
      %745 = vmatprep.subr.mxu0 0.0
      %746 = vmatpush1.msra.mxu0 0.0
      %747 = vmatprep.subr.mxu0 0.0
      %748 = vmatpush1.msra.mxu0 0.0
      %749 = vmatprep.subr.mxu0 0.0
      %750 = vmatpush1.msra.mxu0 0.0
      %751 = vmatprep.subr.mxu0 %v648
      %752 = vmatpush1.msra.mxu0 %v652
      %753 = vmatprep.subr.mxu0 %v632
      %754 = vmatpush1.msra.mxu0 %v636
      %755 = vmatprep.subr.mxu0 %v616
      %756 = vmatpush1.msra.mxu0 %v620
      %757 = vmatprep.subr.mxu0 %v600
      %758 = vmatpush1.msra.mxu0 %v604
      %759 = vmatprep.subr.mxu0 %v584
      %760 = vmatpush1.msra.mxu0 %v588
      %761 = vmatprep.subr.mxu0 %v568
      %762 = vmatpush1.msra.mxu0 %v572
      %763 = vmatprep.subr.mxu0 %v552
      %764 = vmatpush1.msra.mxu0 %v556
      %765 = vmatprep.subr.mxu0 %v536
      %766 = vmatpush1.msra.mxu0 %v540
      %767 = vmatprep.subr.mxu0 %v526
      %768 = vmatpush1.msra.mxu0 %v518
      %769 = vmatprep.subr.mxu0 0.0
      %770 = vmatpush2.msra.mxu0 0.0
      %771 = vmatprep.subr.mxu0 0.0
      %772 = vmatpush2.msra.mxu0 0.0
      %773 = vmatprep.subr.mxu0 0.0
      %774 = vmatpush2.msra.mxu0 0.0
      %775 = vmatprep.subr.mxu0 0.0
      %776 = vmatpush2.msra.mxu0 0.0
      %777 = vmatprep.subr.mxu0 0.0
      %778 = vmatpush2.msra.mxu0 0.0
      %779 = vmatprep.subr.mxu0 0.0
      %780 = vmatpush2.msra.mxu0 0.0
      %781 = vmatprep.subr.mxu0 0.0
      %782 = vmatpush2.msra.mxu0 0.0
      %783 = vmatprep.subr.mxu0 0.0
      %784 = vmatpush2.msra.mxu0 0.0
      %785 = vmatprep.subr.mxu0 0.0
      %786 = vmatpush2.msra.mxu0 0.0
      %787 = vmatprep.subr.mxu0 0.0
      %788 = vmatpush2.msra.mxu0 0.0
      %789 = vmatprep.subr.mxu0 0.0
      %790 = vmatpush2.msra.mxu0 0.0
      %791 = vmatprep.subr.mxu0 0.0
      %792 = vmatpush2.msra.mxu0 0.0
      %793 = vmatprep.subr.mxu0 0.0
      %794 = vmatpush2.msra.mxu0 0.0
      %795 = vmatprep.subr.mxu0 0.0
      %796 = vmatpush2.msra.mxu0 0.0
      %797 = vmatprep.subr.mxu0 0.0
      %798 = vmatpush2.msra.mxu0 0.0
      %799 = vmatprep.subr.mxu0 0.0
      %800 = vmatpush2.msra.mxu0 0.0
      %801 = vmatprep.mubr.f32.mxu0 0.0
      %802 = vmatmul.mubr.f32.gmra.mxu0 %v664
      %v803 = vpop.f32.mrf.mxu0
      %v804 = vadd.f32 %v660, %v803
      %v805 = vpop.f32.mrf.mxu0
      %v806 = vadd.f32 %v660, %v805
      %807 = vdwg.mxu0
      %v809 = vlaneseq
      %v810 = vshrl.u32 %v809, 7
      %v811 = vsub.s32 0, %v810
      %v812 = vrot.slane %v503, %v811
      %v813 = vlaneseq
      %v814 = vshrl.u32 %v813, 7
      %v815 = vsub.s32 1, %v814
      %v816 = vrot.slane %v503, %v815
      %v817 = vlaneseq
      %v818 = vshrl.u32 %v817, 7
      %v819 = vsub.s32 2, %v818
      %v820 = vrot.slane %v503, %v819
      %v821 = vlaneseq
      %v822 = vshrl.u32 %v821, 7
      %v823 = vsub.s32 3, %v822
      %v824 = vrot.slane %v503, %v823
      %v829 = vmul.f32 %v733, %v812
      %v830 = vmul.f32 %v735, %v816
      %v831 = vmul.f32 %v804, %v820
      %v832 = vmul.f32 %v806, %v824
      %vm833 = vcmp.ge.f32.partialorder %v829, 0.0
      %vm834 = vcmp.ge.f32.partialorder %v830, 0.0
      %vm835 = vcmp.ge.f32.partialorder %v831, 0.0
      %vm836 = vcmp.ge.f32.partialorder %v832, 0.0
      %v837 = vmul.f32 %v829, 0.01
      %v838 = vmul.f32 %v830, 0.01
      %v839 = vmul.f32 %v831, 0.01
      %v840 = vmul.f32 %v832, 0.01
      %v841 = vsel %vm833, %v829, %v837
      %v842 = vsel %vm834, %v830, %v838
      %v843 = vsel %vm835, %v831, %v839
      %v844 = vsel %vm836, %v832, %v840
      %v845 = vld [vmem:[%s4] sm:$0xf]
      %v846 = vld [vmem:[%s4 + $0x4] sm:$0xf]
      %v847 = vld [vmem:[%s4 + $0x8] sm:$0xf]
      %v848 = vld [vmem:[%s4 + $0xc] sm:$0xf]
      %v849 = vld [vmem:[%s4 + $0x10] sm:$0xf]
      %v850 = vld [vmem:[%s4 + $0x14] sm:$0xf]
      %v851 = vld [vmem:[%s4 + $0x18] sm:$0xf]
      %v852 = vld [vmem:[%s4 + $0x1c] sm:$0xf]
      %v853 = vld [vmem:[%s4 + $0x20] sm:$0xf]
      %v854 = vld [vmem:[%s4 + $0x24] sm:$0xf]
      %v855 = vld [vmem:[%s4 + $0x28] sm:$0xf]
      %v856 = vld [vmem:[%s4 + $0x2c] sm:$0xf]
      %v857 = vld [vmem:[%s4 + $0x30] sm:$0xf]
      %v858 = vld [vmem:[%s4 + $0x34] sm:$0xf]
      %v859 = vld [vmem:[%s4 + $0x38] sm:$0xf]
      %v860 = vld [vmem:[%s4 + $0x3c] sm:$0xf]
      %v861 = vld [vmem:[%s4 + $0x40] sm:$0xf]
      %v862 = vld [vmem:[%s4 + $0x44] sm:$0xf]
      %v863 = vld [vmem:[%s4 + $0x48] sm:$0xf]
      %v864 = vld [vmem:[%s4 + $0x4c] sm:$0xf]
      %v865 = vld [vmem:[%s4 + $0x50] sm:$0xf]
      %v866 = vld [vmem:[%s4 + $0x54] sm:$0xf]
      %v867 = vld [vmem:[%s4 + $0x58] sm:$0xf]
      %v868 = vld [vmem:[%s4 + $0x5c] sm:$0xf]
      %v869 = vld [vmem:[%s4 + $0x60] sm:$0xf]
      %v870 = vld [vmem:[%s4 + $0x64] sm:$0xf]
      %v871 = vld [vmem:[%s4 + $0x68] sm:$0xf]
      %v872 = vld [vmem:[%s4 + $0x6c] sm:$0xf]
      %v873 = vld [vmem:[%s4 + $0x70] sm:$0xf]
      %v874 = vld [vmem:[%s4 + $0x74] sm:$0xf]
      %v875 = vld [vmem:[%s4 + $0x78] sm:$0xf]
      %v876 = vld [vmem:[%s4 + $0x7c] sm:$0xf]
      %v877 = vld [vmem:[%s4 + $0x80] sm:$0xf]
      %v878 = vld [vmem:[%s4 + $0x84] sm:$0xf]
      %v879 = vld [vmem:[%s4 + $0x88] sm:$0xf]
      %v880 = vld [vmem:[%s4 + $0x8c] sm:$0xf]
      %v881 = vld [vmem:[%s4 + $0x90] sm:$0xf]
      %v882 = vld [vmem:[%s4 + $0x94] sm:$0xf]
      %v883 = vld [vmem:[%s4 + $0x98] sm:$0xf]
      %v884 = vld [vmem:[%s4 + $0x9c] sm:$0xf]
      %v885 = vld [vmem:[%s4 + $0xa0] sm:$0xf]
      %v886 = vld [vmem:[%s4 + $0xa4] sm:$0xf]
      %v887 = vld [vmem:[%s4 + $0xa8] sm:$0xf]
      %v888 = vld [vmem:[%s4 + $0xac] sm:$0xf]
      %v889 = vld [vmem:[%s4 + $0xb0] sm:$0xf]
      %v890 = vld [vmem:[%s4 + $0xb4] sm:$0xf]
      %v891 = vld [vmem:[%s4 + $0xb8] sm:$0xf]
      %v892 = vld [vmem:[%s4 + $0xbc] sm:$0xf]
      %v893 = vld [vmem:[%s4 + $0xc0] sm:$0xf]
      %v894 = vld [vmem:[%s4 + $0xc4] sm:$0xf]
      %v895 = vunpack.c.l.bf16 %v845
      %v896 = vunpack.c.l.bf16 %v846
      %v897 = vunpack.c.l.bf16 %v847
      %v898 = vunpack.c.l.bf16 %v848
      %v899 = vunpack.c.l.bf16 %v849
      %v900 = vunpack.c.l.bf16 %v850
      %v901 = vunpack.c.l.bf16 %v851
      %v902 = vunpack.c.l.bf16 %v852
      %v903 = vunpack.c.l.bf16 %v853
      %v904 = vunpack.c.l.bf16 %v854
      %v905 = vunpack.c.l.bf16 %v855
      %v906 = vunpack.c.l.bf16 %v856
      %v907 = vunpack.c.l.bf16 %v857
      %v908 = vunpack.c.l.bf16 %v858
      %v909 = vunpack.c.l.bf16 %v859
      %v910 = vunpack.c.l.bf16 %v860
      %v911 = vunpack.c.l.bf16 %v861
      %v912 = vunpack.c.l.bf16 %v862
      %v913 = vunpack.c.l.bf16 %v863
      %v914 = vunpack.c.l.bf16 %v864
      %v915 = vunpack.c.l.bf16 %v865
      %v916 = vunpack.c.l.bf16 %v866
      %v917 = vunpack.c.l.bf16 %v867
      %v918 = vunpack.c.l.bf16 %v868
      %v919 = vunpack.c.l.bf16 %v869
      %v920 = vunpack.c.l.bf16 %v870
      %v921 = vunpack.c.l.bf16 %v871
      %v922 = vunpack.c.l.bf16 %v872
      %v923 = vunpack.c.l.bf16 %v873
      %v924 = vunpack.c.l.bf16 %v874
      %v925 = vunpack.c.l.bf16 %v875
      %v926 = vunpack.c.l.bf16 %v876
      %v927 = vunpack.c.l.bf16 %v877
      %v928 = vunpack.c.l.bf16 %v878
      %v929 = vunpack.c.l.bf16 %v879
      %v930 = vunpack.c.l.bf16 %v880
      %v931 = vunpack.c.l.bf16 %v881
      %v932 = vunpack.c.l.bf16 %v882
      %v933 = vunpack.c.l.bf16 %v883
      %v934 = vunpack.c.l.bf16 %v884
      %v935 = vunpack.c.l.bf16 %v885
      %v936 = vunpack.c.l.bf16 %v886
      %v937 = vunpack.c.l.bf16 %v887
      %v938 = vunpack.c.l.bf16 %v888
      %v939 = vunpack.c.l.bf16 %v889
      %v940 = vunpack.c.l.bf16 %v890
      %v941 = vunpack.c.l.bf16 %v891
      %v942 = vunpack.c.l.bf16 %v892
      %v943 = vunpack.c.l.bf16 %v893
      %v944 = vunpack.c.l.bf16 %v894
      %vm945 = vcmask 130048
      %v947 = vsel %vm945, %v844, 0
      %949 = vmatprep.subr.mxu0 0.0
      %950 = vmatpush1.msra.mxu0 %v910
      %951 = vmatprep.subr.mxu0 0.0
      %952 = vmatpush1.msra.mxu0 %v909
      %953 = vmatprep.subr.mxu0 0.0
      %954 = vmatpush1.msra.mxu0 %v908
      %955 = vmatprep.subr.mxu0 0.0
      %956 = vmatpush1.msra.mxu0 %v907
      %957 = vmatprep.subr.mxu0 0.0
      %958 = vmatpush1.msra.mxu0 %v906
      %959 = vmatprep.subr.mxu0 0.0
      %960 = vmatpush1.msra.mxu0 %v905
      %961 = vmatprep.subr.mxu0 0.0
      %962 = vmatpush1.msra.mxu0 %v904
      %963 = vmatprep.subr.mxu0 0.0
      %964 = vmatpush1.msra.mxu0 %v903
      %965 = vmatprep.subr.mxu0 0.0
      %966 = vmatpush1.msra.mxu0 %v902
      %967 = vmatprep.subr.mxu0 0.0
      %968 = vmatpush1.msra.mxu0 %v901
      %969 = vmatprep.subr.mxu0 0.0
      %970 = vmatpush1.msra.mxu0 %v900
      %971 = vmatprep.subr.mxu0 0.0
      %972 = vmatpush1.msra.mxu0 %v899
      %973 = vmatprep.subr.mxu0 0.0
      %974 = vmatpush1.msra.mxu0 %v898
      %975 = vmatprep.subr.mxu0 0.0
      %976 = vmatpush1.msra.mxu0 %v897
      %977 = vmatprep.subr.mxu0 0.0
      %978 = vmatpush1.msra.mxu0 %v896
      %979 = vmatprep.subr.mxu0 0.0
      %980 = vmatpush1.msra.mxu0 %v895
      %981 = vmatprep.subr.mxu0 0.0
      %982 = vmatpush2.msra.mxu0 %v926
      %983 = vmatprep.subr.mxu0 0.0
      %984 = vmatpush2.msra.mxu0 %v925
      %985 = vmatprep.subr.mxu0 0.0
      %986 = vmatpush2.msra.mxu0 %v924
      %987 = vmatprep.subr.mxu0 0.0
      %988 = vmatpush2.msra.mxu0 %v923
      %989 = vmatprep.subr.mxu0 0.0
      %990 = vmatpush2.msra.mxu0 %v922
      %991 = vmatprep.subr.mxu0 0.0
      %992 = vmatpush2.msra.mxu0 %v921
      %993 = vmatprep.subr.mxu0 0.0
      %994 = vmatpush2.msra.mxu0 %v920
      %995 = vmatprep.subr.mxu0 0.0
      %996 = vmatpush2.msra.mxu0 %v919
      %997 = vmatprep.subr.mxu0 0.0
      %998 = vmatpush2.msra.mxu0 %v918
      %999 = vmatprep.subr.mxu0 0.0
      %1000 = vmatpush2.msra.mxu0 %v917
      %1001 = vmatprep.subr.mxu0 0.0
      %1002 = vmatpush2.msra.mxu0 %v916
      %1003 = vmatprep.subr.mxu0 0.0
      %1004 = vmatpush2.msra.mxu0 %v915
      %1005 = vmatprep.subr.mxu0 0.0
      %1006 = vmatpush2.msra.mxu0 %v914
      %1007 = vmatprep.subr.mxu0 0.0
      %1008 = vmatpush2.msra.mxu0 %v913
      %1009 = vmatprep.subr.mxu0 0.0
      %1010 = vmatpush2.msra.mxu0 %v912
      %1011 = vmatprep.subr.mxu0 0.0
      %1012 = vmatpush2.msra.mxu0 %v911
      %1013 = vmatprep.mubr.f32.mxu0 %v842
      %1014 = vmatmul.mubr.f32.gmra.mxu0 %v841
      %v1015 = vpop.f32.mrf.mxu0
      %v1016 = vadd.f32 0.0, %v1015
      %v1017 = vpop.f32.mrf.mxu0
      %1018 = vdwg.mxu0
      %1019 = vmatprep.subr.mxu0 0.0
      %1020 = vmatpush1.msra.mxu0 %v942
      %1021 = vmatprep.subr.mxu0 0.0
      %1022 = vmatpush1.msra.mxu0 %v941
      %1023 = vmatprep.subr.mxu0 0.0
      %1024 = vmatpush1.msra.mxu0 %v940
      %1025 = vmatprep.subr.mxu0 0.0
      %1026 = vmatpush1.msra.mxu0 %v939
      %1027 = vmatprep.subr.mxu0 0.0
      %1028 = vmatpush1.msra.mxu0 %v938
      %1029 = vmatprep.subr.mxu0 0.0
      %1030 = vmatpush1.msra.mxu0 %v937
      %1031 = vmatprep.subr.mxu0 0.0
      %1032 = vmatpush1.msra.mxu0 %v936
      %1033 = vmatprep.subr.mxu0 0.0
      %1034 = vmatpush1.msra.mxu0 %v935
      %1035 = vmatprep.subr.mxu0 0.0
      %1036 = vmatpush1.msra.mxu0 %v934
      %1037 = vmatprep.subr.mxu0 0.0
      %1038 = vmatpush1.msra.mxu0 %v933
      %1039 = vmatprep.subr.mxu0 0.0
      %1040 = vmatpush1.msra.mxu0 %v932
      %1041 = vmatprep.subr.mxu0 0.0
      %1042 = vmatpush1.msra.mxu0 %v931
      %1043 = vmatprep.subr.mxu0 0.0
      %1044 = vmatpush1.msra.mxu0 %v930
      %1045 = vmatprep.subr.mxu0 0.0
      %1046 = vmatpush1.msra.mxu0 %v929
      %1047 = vmatprep.subr.mxu0 0.0
      %1048 = vmatpush1.msra.mxu0 %v928
      %1049 = vmatprep.subr.mxu0 0.0
      %1050 = vmatpush1.msra.mxu0 %v927
      %1051 = vmatprep.subr.mxu0 0.0
      %1052 = vmatpush2.msra.mxu0 0.0
      %1053 = vmatprep.subr.mxu0 0.0
      %1054 = vmatpush2.msra.mxu0 0.0
      %1055 = vmatprep.subr.mxu0 0.0
      %1056 = vmatpush2.msra.mxu0 0.0
      %1057 = vmatprep.subr.mxu0 0.0
      %1058 = vmatpush2.msra.mxu0 0.0
      %1059 = vmatprep.subr.mxu0 0.0
      %1060 = vmatpush2.msra.mxu0 0.0
      %1061 = vmatprep.subr.mxu0 0.0
      %1062 = vmatpush2.msra.mxu0 0.0
      %1063 = vmatprep.subr.mxu0 0.0
      %1064 = vmatpush2.msra.mxu0 0.0
      %1065 = vmatprep.subr.mxu0 0.0
      %1066 = vmatpush2.msra.mxu0 0.0
      %1067 = vmatprep.subr.mxu0 0.0
      %1068 = vmatpush2.msra.mxu0 0.0
      %1069 = vmatprep.subr.mxu0 0.0
      %1070 = vmatpush2.msra.mxu0 0.0
      %1071 = vmatprep.subr.mxu0 0.0
      %1072 = vmatpush2.msra.mxu0 0.0
      %1073 = vmatprep.subr.mxu0 0.0
      %1074 = vmatpush2.msra.mxu0 0.0
      %1075 = vmatprep.subr.mxu0 0.0
      %1076 = vmatpush2.msra.mxu0 0.0
      %1077 = vmatprep.subr.mxu0 0.0
      %1078 = vmatpush2.msra.mxu0 0.0
      %1079 = vmatprep.subr.mxu0 0.0
      %1080 = vmatpush2.msra.mxu0 %v944
      %1081 = vmatprep.subr.mxu0 0.0
      %1082 = vmatpush2.msra.mxu0 %v943
      %1083 = vmatprep.mubr.f32.mxu0 %v947
      %1084 = vmatmul.mubr.f32.gmra.mxu0 %v843
      %v1085 = vpop.f32.mrf.mxu0
      %v1086 = vadd.f32 %v1016, %v1085
      %v1087 = vpop.f32.mrf.mxu0
      %1088 = vdwg.mxu0
      %v1089 = vld [vmem:[%s1 + $0x30] sm:$0xff]
      %v1090 = vld [vmem:[%s1 + $0x48] sm:$0xff]
      %v1091 = vld [vmem:[%s2 + $0x10] sm:$0xff]
      %v1092 = vld [vmem:[%s2 + $0x18] sm:$0xff]
      %v1093 = vld [vmem:[%s3 + $0x2] ss:$0 sm:$0xff]
      %1095 = vrot.lane.b32.xlu0 %v1086, 12
      %v1096 = vpop.permute.xlu0 %1095
      %vm1098 = vcmask 97280
      %v1099 = vsel %vm1098, 0.0, %v1096
      %vm1100 = vcmask 39936
      %v1101 = vsel %vm1100, %v1096, 0.0
      %1103 = vrot.lane.b32.xlu0 %v1099, 127
      %v1104 = vpop.permute.xlu0 %1103
      %1106 = vrot.lane.b32.xlu0 %v1099, 126
      %v1107 = vpop.permute.xlu0 %1106
      %1110 = vrot.lane.b32.xlu0 %v1099, 117
      %v1111 = vpop.permute.xlu0 %1110
      %1112 = vrot.lane.b32.xlu0 %v1101, 117
      %v1113 = vpop.permute.xlu0 %1112
      %vm1114 = vcmask 957440
      %v1115 = vsel %vm1114, %v1111, %v1113
      %1117 = vrot.lane.b32.xlu0 %v1099, 116
      %v1118 = vpop.permute.xlu0 %1117
      %1119 = vrot.lane.b32.xlu0 %v1101, 116
      %v1120 = vpop.permute.xlu0 %1119
      %vm1121 = vcmask 949248
      %v1122 = vsel %vm1121, %v1118, %v1120
      %1124 = vrot.lane.b32.xlu0 %v1099, 115
      %v1125 = vpop.permute.xlu0 %1124
      %1126 = vrot.lane.b32.xlu0 %v1101, 115
      %v1127 = vpop.permute.xlu0 %1126
      %vm1128 = vcmask 941056
      %v1129 = vsel %vm1128, %v1125, %v1127
      %1131 = vrot.lane.b32.xlu0 %v1099, 106
      %v1132 = vpop.permute.xlu0 %1131
      %1133 = vrot.lane.b32.xlu0 %v1101, 106
      %v1134 = vpop.permute.xlu0 %1133
      %v1135 = vsel %vm601, %v1132, %v1134
      %1137 = vrot.lane.b32.xlu0 %v1099, 105
      %v1138 = vpop.permute.xlu0 %1137
      %1139 = vrot.lane.b32.xlu0 %v1101, 105
      %v1140 = vpop.permute.xlu0 %1139
      %vm1141 = vcmask 859136
      %v1142 = vsel %vm1141, %v1138, %v1140
      %1144 = vrot.lane.b32.xlu0 %v1099, 104
      %v1145 = vpop.permute.xlu0 %1144
      %1146 = vrot.lane.b32.xlu0 %v1101, 104
      %v1147 = vpop.permute.xlu0 %1146
      %vm1148 = vcmask 850944
      %v1149 = vsel %vm1148, %v1145, %v1147
      %1152 = vset.pattern.permute.xlu0 0
      %1153 = vperm.xlu0 %1152, %v1091
      %v1154 = vpop.permute.xlu0 %1153
      %1157 = vset.pattern.permute.xlu0 0
      %1158 = vperm.xlu0 %1157, %v1092
      %v1159 = vpop.permute.xlu0 %1158
      %v1162 = vsel %vm662, %v1089, 0
      %v1165 = vsel %vm662, %v1090, 0
      %1167 = vmatprep.subr.mxu0 0.0
      %1168 = vmatpush1.msra.mxu0 0.0
      %1169 = vmatprep.subr.mxu0 0.0
      %1170 = vmatpush1.msra.mxu0 0.0
      %1171 = vmatprep.subr.mxu0 0.0
      %1172 = vmatpush1.msra.mxu0 0.0
      %1173 = vmatprep.subr.mxu0 0.0
      %1174 = vmatpush1.msra.mxu0 0.0
      %1175 = vmatprep.subr.mxu0 0.0
      %1176 = vmatpush1.msra.mxu0 0.0
      %1177 = vmatprep.subr.mxu0 0.0
      %1178 = vmatpush1.msra.mxu0 0.0
      %1179 = vmatprep.subr.mxu0 0.0
      %1180 = vmatpush1.msra.mxu0 0.0
      %1181 = vmatprep.subr.mxu0 0.0
      %1182 = vmatpush1.msra.mxu0 %v1149
      %1183 = vmatprep.subr.mxu0 0.0
      %1184 = vmatpush1.msra.mxu0 %v1142
      %1185 = vmatprep.subr.mxu0 0.0
      %1186 = vmatpush1.msra.mxu0 %v1135
      %1187 = vmatprep.subr.mxu0 0.0
      %1188 = vmatpush1.msra.mxu0 %v1129
      %1189 = vmatprep.subr.mxu0 0.0
      %1190 = vmatpush1.msra.mxu0 %v1122
      %1191 = vmatprep.subr.mxu0 0.0
      %1192 = vmatpush1.msra.mxu0 %v1115
      %1193 = vmatprep.subr.mxu0 0.0
      %1194 = vmatpush1.msra.mxu0 %v1107
      %1195 = vmatprep.subr.mxu0 0.0
      %1196 = vmatpush1.msra.mxu0 %v1104
      %1197 = vmatprep.subr.mxu0 0.0
      %1198 = vmatpush1.msra.mxu0 %v1099
      %1199 = vmatprep.subr.mxu0 0.0
      %1200 = vmatpush2.msra.mxu0 0.0
      %1201 = vmatprep.subr.mxu0 0.0
      %1202 = vmatpush2.msra.mxu0 0.0
      %1203 = vmatprep.subr.mxu0 0.0
      %1204 = vmatpush2.msra.mxu0 0.0
      %1205 = vmatprep.subr.mxu0 0.0
      %1206 = vmatpush2.msra.mxu0 0.0
      %1207 = vmatprep.subr.mxu0 0.0
      %1208 = vmatpush2.msra.mxu0 0.0
      %1209 = vmatprep.subr.mxu0 0.0
      %1210 = vmatpush2.msra.mxu0 0.0
      %1211 = vmatprep.subr.mxu0 0.0
      %1212 = vmatpush2.msra.mxu0 0.0
      %1213 = vmatprep.subr.mxu0 0.0
      %1214 = vmatpush2.msra.mxu0 0.0
      %1215 = vmatprep.subr.mxu0 0.0
      %1216 = vmatpush2.msra.mxu0 0.0
      %1217 = vmatprep.subr.mxu0 0.0
      %1218 = vmatpush2.msra.mxu0 0.0
      %1219 = vmatprep.subr.mxu0 0.0
      %1220 = vmatpush2.msra.mxu0 0.0
      %1221 = vmatprep.subr.mxu0 0.0
      %1222 = vmatpush2.msra.mxu0 0.0
      %1223 = vmatprep.subr.mxu0 0.0
      %1224 = vmatpush2.msra.mxu0 0.0
      %1225 = vmatprep.subr.mxu0 0.0
      %1226 = vmatpush2.msra.mxu0 0.0
      %1227 = vmatprep.subr.mxu0 0.0
      %1228 = vmatpush2.msra.mxu0 0.0
      %1229 = vmatprep.subr.mxu0 0.0
      %1230 = vmatpush2.msra.mxu0 0.0
      %1231 = vmatprep.mubr.f32.mxu0 0.0
      %1232 = vmatmul.mubr.f32.gmra.mxu0 %v1162
      %v1233 = vpop.f32.mrf.mxu0
      %v1234 = vadd.f32 %v1154, %v1233
      %v1235 = vpop.f32.mrf.mxu0
      %1236 = vmatprep.mubr.f32.mxu0 0.0
      %1237 = vmatmul.mubr.f32.gmra.mxu0 %v1165
      %v1238 = vpop.f32.mrf.mxu0
      %v1239 = vadd.f32 %v1159, %v1238
      %v1240 = vpop.f32.mrf.mxu0
      %1241 = vdwg.mxu0
      %v1242 = vmul.f32 %v1234, %v1093
      %v1243 = vmul.f32 %v1239, %v1093
      %vm1244 = vcmp.ge.f32.partialorder %v1242, 0.0
      %vm1245 = vcmp.ge.f32.partialorder %v1243, 0.0
      %v1246 = vmul.f32 %v1242, 0.01
      %v1247 = vmul.f32 %v1243, 0.01
      %v1248 = vsel %vm1244, %v1242, %v1246
      %v1249 = vsel %vm1245, %v1243, %v1247
      %v1250 = vld [vmem:[%s5] sm:$0xf]
      %v1251 = vld [vmem:[%s5 + $0x4] sm:$0xf]
      %v1252 = vld [vmem:[%s5 + $0x8] sm:$0xf]
      %v1253 = vld [vmem:[%s5 + $0xc] sm:$0xf]
      %v1254 = vld [vmem:[%s5 + $0x10] sm:$0xf]
      %v1255 = vld [vmem:[%s5 + $0x14] sm:$0xf]
      %v1256 = vld [vmem:[%s5 + $0x18] sm:$0xf]
      %v1257 = vld [vmem:[%s5 + $0x1c] sm:$0xf]
      %v1258 = vld [vmem:[%s5 + $0x20] sm:$0xf]
      %v1259 = vld [vmem:[%s5 + $0x24] sm:$0xf]
      %v1260 = vld [vmem:[%s5 + $0x28] sm:$0xf]
      %v1261 = vld [vmem:[%s5 + $0x2c] sm:$0xf]
      %v1262 = vld [vmem:[%s5 + $0x30] sm:$0xf]
      %v1263 = vld [vmem:[%s5 + $0x34] sm:$0xf]
      %v1264 = vld [vmem:[%s5 + $0x38] sm:$0xf]
      %v1265 = vld [vmem:[%s5 + $0x3c] sm:$0x1]
      %v1266 = vunpack.c.l.bf16 %v1250
      %v1267 = vunpack.c.l.bf16 %v1251
      %v1268 = vunpack.c.l.bf16 %v1252
      %v1269 = vunpack.c.l.bf16 %v1253
      %v1270 = vunpack.c.l.bf16 %v1254
      %v1271 = vunpack.c.l.bf16 %v1255
      %v1272 = vunpack.c.l.bf16 %v1256
      %v1273 = vunpack.c.l.bf16 %v1257
      %v1274 = vunpack.c.l.bf16 %v1258
      %v1275 = vunpack.c.l.bf16 %v1259
      %v1276 = vunpack.c.l.bf16 %v1260
      %v1277 = vunpack.c.l.bf16 %v1261
      %v1278 = vunpack.c.l.bf16 %v1262
      %v1279 = vunpack.c.l.bf16 %v1263
      %v1280 = vunpack.c.l.bf16 %v1264
      %v1281 = vunpack.c.l.bf16 %v1265
      %vm1282 = vcmask 990208
      %v1284 = vsel %vm1282, %v1248, 0
      %v1287 = vsel %vm1282, %v1249, 0
      %vm1289 = vcmask 1040384
      %v1291 = vsel %vm1289, %v1281, 0
      %1293 = vmatprep.subr.mxu0 0.0
      %1294 = vmatpush1.msra.mxu0 %v1291
      %1295 = vmatprep.subr.mxu0 0.0
      %1296 = vmatpush1.msra.mxu0 %v1280
      %1297 = vmatprep.subr.mxu0 0.0
      %1298 = vmatpush1.msra.mxu0 %v1279
      %1299 = vmatprep.subr.mxu0 0.0
      %1300 = vmatpush1.msra.mxu0 %v1278
      %1301 = vmatprep.subr.mxu0 0.0
      %1302 = vmatpush1.msra.mxu0 %v1277
      %1303 = vmatprep.subr.mxu0 0.0
      %1304 = vmatpush1.msra.mxu0 %v1276
      %1305 = vmatprep.subr.mxu0 0.0
      %1306 = vmatpush1.msra.mxu0 %v1275
      %1307 = vmatprep.subr.mxu0 0.0
      %1308 = vmatpush1.msra.mxu0 %v1274
      %1309 = vmatprep.subr.mxu0 0.0
      %1310 = vmatpush1.msra.mxu0 %v1273
      %1311 = vmatprep.subr.mxu0 0.0
      %1312 = vmatpush1.msra.mxu0 %v1272
      %1313 = vmatprep.subr.mxu0 0.0
      %1314 = vmatpush1.msra.mxu0 %v1271
      %1315 = vmatprep.subr.mxu0 0.0
      %1316 = vmatpush1.msra.mxu0 %v1270
      %1317 = vmatprep.subr.mxu0 0.0
      %1318 = vmatpush1.msra.mxu0 %v1269
      %1319 = vmatprep.subr.mxu0 0.0
      %1320 = vmatpush1.msra.mxu0 %v1268
      %1321 = vmatprep.subr.mxu0 0.0
      %1322 = vmatpush1.msra.mxu0 %v1267
      %1323 = vmatprep.subr.mxu0 0.0
      %1324 = vmatpush1.msra.mxu0 %v1266
      %1325 = vmatprep.subr.mxu0 0.0
      %1326 = vmatpush2.msra.mxu0 0.0
      %1327 = vmatprep.subr.mxu0 0.0
      %1328 = vmatpush2.msra.mxu0 0.0
      %1329 = vmatprep.subr.mxu0 0.0
      %1330 = vmatpush2.msra.mxu0 0.0
      %1331 = vmatprep.subr.mxu0 0.0
      %1332 = vmatpush2.msra.mxu0 0.0
      %1333 = vmatprep.subr.mxu0 0.0
      %1334 = vmatpush2.msra.mxu0 0.0
      %1335 = vmatprep.subr.mxu0 0.0
      %1336 = vmatpush2.msra.mxu0 0.0
      %1337 = vmatprep.subr.mxu0 0.0
      %1338 = vmatpush2.msra.mxu0 0.0
      %1339 = vmatprep.subr.mxu0 0.0
      %1340 = vmatpush2.msra.mxu0 0.0
      %1341 = vmatprep.subr.mxu0 0.0
      %1342 = vmatpush2.msra.mxu0 0.0
      %1343 = vmatprep.subr.mxu0 0.0
      %1344 = vmatpush2.msra.mxu0 0.0
      %1345 = vmatprep.subr.mxu0 0.0
      %1346 = vmatpush2.msra.mxu0 0.0
      %1347 = vmatprep.subr.mxu0 0.0
      %1348 = vmatpush2.msra.mxu0 0.0
      %1349 = vmatprep.subr.mxu0 0.0
      %1350 = vmatpush2.msra.mxu0 0.0
      %1351 = vmatprep.subr.mxu0 0.0
      %1352 = vmatpush2.msra.mxu0 0.0
      %1353 = vmatprep.subr.mxu0 0.0
      %1354 = vmatpush2.msra.mxu0 0.0
      %1355 = vmatprep.subr.mxu0 0.0
      %1356 = vmatpush2.msra.mxu0 0.0
      %1357 = vmatprep.mubr.f32.mxu0 0.0
      %1358 = vmatmul.mubr.f32.gmra.mxu0 %v1284
      %v1359 = vpop.f32.mrf.mxu0
      %v1360 = vadd.f32 0.0, %v1359
      %v1361 = vpop.f32.mrf.mxu0
      %1362 = vmatprep.mubr.f32.mxu0 0.0
      %1363 = vmatmul.mubr.f32.gmra.mxu0 %v1287
      %v1364 = vpop.f32.mrf.mxu0
      %v1365 = vadd.f32 0.0, %v1364
      %v1366 = vpop.f32.mrf.mxu0
      %1367 = vdwg.mxu0
      %v1368 = vld [vmem:[%s1 + $0x60] sm:$0xff]
      %v1369 = vld [vmem:[%s1 + $0x68] sm:$0xff]
      %v1370 = vld [vmem:[%s1 + $0x78] sm:$0xff]
      %v1371 = vld [vmem:[%s1 + $0x80] sm:$0xff]
      %v1372 = vld [vmem:[%s1 + $0x90] sm:$0xff]
      %v1373 = vld [vmem:[%s1 + $0x98] sm:$0xff]
      %v1374 = vld [vmem:[%s1 + $0xa8] sm:$0xff]
      %v1375 = vld [vmem:[%s1 + $0xb0] sm:$0xff]
      %v1376 = vld [vmem:[%s2 + $0x20] sm:$0xff]
      %v1377 = vld [vmem:[%s2 + $0x28] sm:$0xff]
      %v1378 = vld [vmem:[%s2 + $0x30] sm:$0xff]
      %v1379 = vld [vmem:[%s2 + $0x38] sm:$0xff]
      %v1380 = vld [vmem:[%s3 + $0x3] ss:$0 sm:$0xff]
      %1383 = vrot.lane.b32.xlu0 %v1360, 7
      %v1384 = vpop.permute.xlu0 %1383
      %1385 = vrot.lane.b32.xlu0 %v1365, 7
      %v1386 = vpop.permute.xlu0 %1385
      %vm1389 = vcmask 56320
      %v1390 = vsel %vm1389, 0.0, %v1384
      %v1391 = vsel %vm1389, 0.0, %v1386
      %vm1392 = vcmask 351232
      %v1393 = vsel %vm1392, %v1390, 0.0
      %v1394 = vsel %vm1392, %v1391, 0.0
      %1397 = vrot.lane.b32.xlu0 %v1393, 127
      %v1398 = vpop.permute.xlu0 %1397
      %1399 = vrot.lane.b32.xlu0 %v1394, 127
      %v1400 = vpop.permute.xlu0 %1399
      %1403 = vrot.lane.b32.xlu0 %v1393, 126
      %v1404 = vpop.permute.xlu0 %1403
      %1405 = vrot.lane.b32.xlu0 %v1394, 126
      %v1406 = vpop.permute.xlu0 %1405
      %1409 = vrot.lane.b32.xlu0 %v1393, 122
      %v1410 = vpop.permute.xlu0 %1409
      %1411 = vrot.lane.b32.xlu0 %v1394, 122
      %v1412 = vpop.permute.xlu0 %1411
      %1415 = vrot.lane.b32.xlu0 %v1393, 121
      %v1416 = vpop.permute.xlu0 %1415
      %1417 = vrot.lane.b32.xlu0 %v1394, 121
      %v1418 = vpop.permute.xlu0 %1417
      %1421 = vrot.lane.b32.xlu0 %v1393, 120
      %v1422 = vpop.permute.xlu0 %1421
      %1423 = vrot.lane.b32.xlu0 %v1394, 120
      %v1424 = vpop.permute.xlu0 %1423
      %1427 = vrot.lane.b32.xlu0 %v1393, 116
      %v1428 = vpop.permute.xlu0 %1427
      %1429 = vrot.lane.b32.xlu0 %v1394, 116
      %v1430 = vpop.permute.xlu0 %1429
      %1433 = vrot.lane.b32.xlu0 %v1393, 115
      %v1434 = vpop.permute.xlu0 %1433
      %1435 = vrot.lane.b32.xlu0 %v1394, 115
      %v1436 = vpop.permute.xlu0 %1435
      %1439 = vrot.lane.b32.xlu0 %v1393, 114
      %v1440 = vpop.permute.xlu0 %1439
      %1441 = vrot.lane.b32.xlu0 %v1394, 114
      %v1442 = vpop.permute.xlu0 %1441
      %1446 = vset.pattern.permute.xlu0 0
      %1447 = vperm.xlu0 %1446, %v1376
      %v1448 = vpop.permute.xlu0 %1447
      %1451 = vset.pattern.permute.xlu0 0
      %1452 = vperm.xlu0 %1451, %v1377
      %v1453 = vpop.permute.xlu0 %1452
      %1456 = vset.pattern.permute.xlu0 0
      %1457 = vperm.xlu0 %1456, %v1378
      %v1458 = vpop.permute.xlu0 %1457
      %1461 = vset.pattern.permute.xlu0 0
      %1462 = vperm.xlu0 %1461, %v1379
      %v1463 = vpop.permute.xlu0 %1462
      %v1466 = vsel %vm945, %v1369, 0
      %v1469 = vsel %vm945, %v1371, 0
      %v1472 = vsel %vm945, %v1373, 0
      %v1475 = vsel %vm945, %v1375, 0
      %1477 = vmatprep.subr.mxu0 0.0
      %1478 = vmatpush1.msra.mxu0 %v1436
      %1479 = vmatprep.subr.mxu0 0.0
      %1480 = vmatpush1.msra.mxu0 %v1434
      %1481 = vmatprep.subr.mxu0 0.0
      %1482 = vmatpush1.msra.mxu0 %v1430
      %1483 = vmatprep.subr.mxu0 0.0
      %1484 = vmatpush1.msra.mxu0 %v1428
      %1485 = vmatprep.subr.mxu0 0.0
      %1486 = vmatpush1.msra.mxu0 %v1424
      %1487 = vmatprep.subr.mxu0 0.0
      %1488 = vmatpush1.msra.mxu0 %v1422
      %1489 = vmatprep.subr.mxu0 0.0
      %1490 = vmatpush1.msra.mxu0 %v1418
      %1491 = vmatprep.subr.mxu0 0.0
      %1492 = vmatpush1.msra.mxu0 %v1416
      %1493 = vmatprep.subr.mxu0 0.0
      %1494 = vmatpush1.msra.mxu0 %v1412
      %1495 = vmatprep.subr.mxu0 0.0
      %1496 = vmatpush1.msra.mxu0 %v1410
      %1497 = vmatprep.subr.mxu0 0.0
      %1498 = vmatpush1.msra.mxu0 %v1406
      %1499 = vmatprep.subr.mxu0 0.0
      %1500 = vmatpush1.msra.mxu0 %v1404
      %1501 = vmatprep.subr.mxu0 0.0
      %1502 = vmatpush1.msra.mxu0 %v1400
      %1503 = vmatprep.subr.mxu0 0.0
      %1504 = vmatpush1.msra.mxu0 %v1398
      %1505 = vmatprep.subr.mxu0 0.0
      %1506 = vmatpush1.msra.mxu0 %v1394
      %1507 = vmatprep.subr.mxu0 0.0
      %1508 = vmatpush1.msra.mxu0 %v1393
      %1509 = vmatprep.subr.mxu0 0.0
      %1510 = vmatpush2.msra.mxu0 0.0
      %1511 = vmatprep.subr.mxu0 0.0
      %1512 = vmatpush2.msra.mxu0 0.0
      %1513 = vmatprep.subr.mxu0 0.0
      %1514 = vmatpush2.msra.mxu0 0.0
      %1515 = vmatprep.subr.mxu0 0.0
      %1516 = vmatpush2.msra.mxu0 0.0
      %1517 = vmatprep.subr.mxu0 0.0
      %1518 = vmatpush2.msra.mxu0 0.0
      %1519 = vmatprep.subr.mxu0 0.0
      %1520 = vmatpush2.msra.mxu0 0.0
      %1521 = vmatprep.subr.mxu0 0.0
      %1522 = vmatpush2.msra.mxu0 0.0
      %1523 = vmatprep.subr.mxu0 0.0
      %1524 = vmatpush2.msra.mxu0 0.0
      %1525 = vmatprep.subr.mxu0 0.0
      %1526 = vmatpush2.msra.mxu0 0.0
      %1527 = vmatprep.subr.mxu0 0.0
      %1528 = vmatpush2.msra.mxu0 0.0
      %1529 = vmatprep.subr.mxu0 0.0
      %1530 = vmatpush2.msra.mxu0 0.0
      %1531 = vmatprep.subr.mxu0 0.0
      %1532 = vmatpush2.msra.mxu0 0.0
      %1533 = vmatprep.subr.mxu0 0.0
      %1534 = vmatpush2.msra.mxu0 0.0
      %1535 = vmatprep.subr.mxu0 0.0
      %1536 = vmatpush2.msra.mxu0 0.0
      %1537 = vmatprep.subr.mxu0 0.0
      %1538 = vmatpush2.msra.mxu0 %v1442
      %1539 = vmatprep.subr.mxu0 0.0
      %1540 = vmatpush2.msra.mxu0 %v1440
      %1541 = vmatprep.mubr.f32.mxu0 %v1466
      %1542 = vmatmul.mubr.f32.gmra.mxu0 %v1368
      %v1543 = vpop.f32.mrf.mxu0
      %v1544 = vadd.f32 %v1448, %v1543
      %v1545 = vpop.f32.mrf.mxu0
      %1546 = vmatprep.mubr.f32.mxu0 %v1469
      %1547 = vmatmul.mubr.f32.gmra.mxu0 %v1370
      %v1548 = vpop.f32.mrf.mxu0
      %v1549 = vadd.f32 %v1453, %v1548
      %v1550 = vpop.f32.mrf.mxu0
      %1551 = vmatprep.mubr.f32.mxu0 %v1472
      %1552 = vmatmul.mubr.f32.gmra.mxu0 %v1372
      %v1553 = vpop.f32.mrf.mxu0
      %v1554 = vadd.f32 %v1458, %v1553
      %v1555 = vpop.f32.mrf.mxu0
      %1556 = vmatprep.mubr.f32.mxu0 %v1475
      %1557 = vmatmul.mubr.f32.gmra.mxu0 %v1374
      %v1558 = vpop.f32.mrf.mxu0
      %v1559 = vadd.f32 %v1463, %v1558
      %v1560 = vpop.f32.mrf.mxu0
      %1561 = vdwg.mxu0
      %v1562 = vmul.f32 %v1544, %v1380
      %v1563 = vmul.f32 %v1549, %v1380
      %v1564 = vmul.f32 %v1554, %v1380
      %v1565 = vmul.f32 %v1559, %v1380
      %vm1566 = vcmp.ge.f32.partialorder %v1562, 0.0
      %vm1567 = vcmp.ge.f32.partialorder %v1563, 0.0
      %vm1568 = vcmp.ge.f32.partialorder %v1564, 0.0
      %vm1569 = vcmp.ge.f32.partialorder %v1565, 0.0
      %v1570 = vmul.f32 %v1562, 0.01
      %v1571 = vmul.f32 %v1563, 0.01
      %v1572 = vmul.f32 %v1564, 0.01
      %v1573 = vmul.f32 %v1565, 0.01
      %v1574 = vsel %vm1566, %v1562, %v1570
      %v1575 = vsel %vm1567, %v1563, %v1571
      %v1576 = vsel %vm1568, %v1564, %v1572
      %v1577 = vsel %vm1569, %v1565, %v1573
      %v1578 = vld [vmem:[%s1 + $0xc0] sm:$0xf]
      %v1579 = vld [vmem:[%s1 + $0xc8] sm:$0xf]
      %v1580 = vld [vmem:[%s1 + $0xd0] sm:$0xf]
      %v1581 = vld [vmem:[%s2 + $0x40] sm:$0xf]
      %v1582 = vld [vmem:[%s3 + $0x4] ss:$0 sm:$0xff]
      %1587 = vrot.lane.b32.xlu0 %v1574, 7
      %v1588 = vpop.permute.xlu0 %1587
      %1589 = vrot.lane.b32.xlu0 %v1575, 7
      %v1590 = vpop.permute.xlu0 %1589
      %1591 = vrot.lane.b32.xlu0 %v1576, 7
      %v1592 = vpop.permute.xlu0 %1591
      %1593 = vrot.lane.b32.xlu0 %v1577, 7
      %v1594 = vpop.permute.xlu0 %1593
      %v1599 = vsel %vm1389, 0.0, %v1588
      %v1600 = vsel %vm1389, 0.0, %v1590
      %v1601 = vsel %vm1389, 0.0, %v1592
      %v1602 = vsel %vm1389, 0.0, %v1594
      %v1603 = vsel %vm1392, %v1599, 0.0
      %v1604 = vsel %vm1392, %v1600, 0.0
      %v1605 = vsel %vm1392, %v1601, 0.0
      %v1606 = vsel %vm1392, %v1602, 0.0
      %1611 = vrot.lane.b32.xlu0 %v1603, 127
      %v1612 = vpop.permute.xlu0 %1611
      %1613 = vrot.lane.b32.xlu0 %v1604, 127
      %v1614 = vpop.permute.xlu0 %1613
      %1615 = vrot.lane.b32.xlu0 %v1605, 127
      %v1616 = vpop.permute.xlu0 %1615
      %1617 = vrot.lane.b32.xlu0 %v1606, 127
      %v1618 = vpop.permute.xlu0 %1617
      %1623 = vrot.lane.b32.xlu0 %v1603, 126
      %v1624 = vpop.permute.xlu0 %1623
      %1625 = vrot.lane.b32.xlu0 %v1604, 126
      %v1626 = vpop.permute.xlu0 %1625
      %1627 = vrot.lane.b32.xlu0 %v1605, 126
      %v1628 = vpop.permute.xlu0 %1627
      %1629 = vrot.lane.b32.xlu0 %v1606, 126
      %v1630 = vpop.permute.xlu0 %1629
      %1635 = vrot.lane.b32.xlu0 %v1603, 122
      %v1636 = vpop.permute.xlu0 %1635
      %1637 = vrot.lane.b32.xlu0 %v1604, 122
      %v1638 = vpop.permute.xlu0 %1637
      %1639 = vrot.lane.b32.xlu0 %v1605, 122
      %v1640 = vpop.permute.xlu0 %1639
      %1641 = vrot.lane.b32.xlu0 %v1606, 122
      %v1642 = vpop.permute.xlu0 %1641
      %1647 = vrot.lane.b32.xlu0 %v1603, 121
      %v1648 = vpop.permute.xlu0 %1647
      %1649 = vrot.lane.b32.xlu0 %v1604, 121
      %v1650 = vpop.permute.xlu0 %1649
      %1651 = vrot.lane.b32.xlu0 %v1605, 121
      %v1652 = vpop.permute.xlu0 %1651
      %1653 = vrot.lane.b32.xlu0 %v1606, 121
      %v1654 = vpop.permute.xlu0 %1653
      %1659 = vrot.lane.b32.xlu0 %v1603, 120
      %v1660 = vpop.permute.xlu0 %1659
      %1661 = vrot.lane.b32.xlu0 %v1604, 120
      %v1662 = vpop.permute.xlu0 %1661
      %1663 = vrot.lane.b32.xlu0 %v1605, 120
      %v1664 = vpop.permute.xlu0 %1663
      %1665 = vrot.lane.b32.xlu0 %v1606, 120
      %v1666 = vpop.permute.xlu0 %1665
      %1671 = vrot.lane.b32.xlu0 %v1603, 116
      %v1672 = vpop.permute.xlu0 %1671
      %1673 = vrot.lane.b32.xlu0 %v1604, 116
      %v1674 = vpop.permute.xlu0 %1673
      %1675 = vrot.lane.b32.xlu0 %v1605, 116
      %v1676 = vpop.permute.xlu0 %1675
      %1677 = vrot.lane.b32.xlu0 %v1606, 116
      %v1678 = vpop.permute.xlu0 %1677
      %1683 = vrot.lane.b32.xlu0 %v1603, 115
      %v1684 = vpop.permute.xlu0 %1683
      %1685 = vrot.lane.b32.xlu0 %v1604, 115
      %v1686 = vpop.permute.xlu0 %1685
      %1687 = vrot.lane.b32.xlu0 %v1605, 115
      %v1688 = vpop.permute.xlu0 %1687
      %1689 = vrot.lane.b32.xlu0 %v1606, 115
      %v1690 = vpop.permute.xlu0 %1689
      %1695 = vrot.lane.b32.xlu0 %v1603, 114
      %v1696 = vpop.permute.xlu0 %1695
      %1697 = vrot.lane.b32.xlu0 %v1604, 114
      %v1698 = vpop.permute.xlu0 %1697
      %1699 = vrot.lane.b32.xlu0 %v1605, 114
      %v1700 = vpop.permute.xlu0 %1699
      %1701 = vrot.lane.b32.xlu0 %v1606, 114
      %v1702 = vpop.permute.xlu0 %1701
      %1708 = vset.pattern.permute.xlu0 0
      %1709 = vperm.xlu0 %1708, %v1581
      %v1710 = vpop.permute.xlu0 %1709
      %vm1712 = vcmask 261120
      %v1714 = vsel %vm1712, %v1580, 0
      %1716 = vmatprep.subr.mxu0 0.0
      %1717 = vmatpush1.msra.mxu0 %v1642
      %1718 = vmatprep.subr.mxu0 0.0
      %1719 = vmatpush1.msra.mxu0 %v1640
      %1720 = vmatprep.subr.mxu0 0.0
      %1721 = vmatpush1.msra.mxu0 %v1638
      %1722 = vmatprep.subr.mxu0 0.0
      %1723 = vmatpush1.msra.mxu0 %v1636
      %1724 = vmatprep.subr.mxu0 0.0
      %1725 = vmatpush1.msra.mxu0 %v1630
      %1726 = vmatprep.subr.mxu0 0.0
      %1727 = vmatpush1.msra.mxu0 %v1628
      %1728 = vmatprep.subr.mxu0 0.0
      %1729 = vmatpush1.msra.mxu0 %v1626
      %1730 = vmatprep.subr.mxu0 0.0
      %1731 = vmatpush1.msra.mxu0 %v1624
      %1732 = vmatprep.subr.mxu0 0.0
      %1733 = vmatpush1.msra.mxu0 %v1618
      %1734 = vmatprep.subr.mxu0 0.0
      %1735 = vmatpush1.msra.mxu0 %v1616
      %1736 = vmatprep.subr.mxu0 0.0
      %1737 = vmatpush1.msra.mxu0 %v1614
      %1738 = vmatprep.subr.mxu0 0.0
      %1739 = vmatpush1.msra.mxu0 %v1612
      %1740 = vmatprep.subr.mxu0 0.0
      %1741 = vmatpush1.msra.mxu0 %v1606
      %1742 = vmatprep.subr.mxu0 0.0
      %1743 = vmatpush1.msra.mxu0 %v1605
      %1744 = vmatprep.subr.mxu0 0.0
      %1745 = vmatpush1.msra.mxu0 %v1604
      %1746 = vmatprep.subr.mxu0 0.0
      %1747 = vmatpush1.msra.mxu0 %v1603
      %1748 = vmatprep.subr.mxu0 0.0
      %1749 = vmatpush2.msra.mxu0 %v1690
      %1750 = vmatprep.subr.mxu0 0.0
      %1751 = vmatpush2.msra.mxu0 %v1688
      %1752 = vmatprep.subr.mxu0 0.0
      %1753 = vmatpush2.msra.mxu0 %v1686
      %1754 = vmatprep.subr.mxu0 0.0
      %1755 = vmatpush2.msra.mxu0 %v1684
      %1756 = vmatprep.subr.mxu0 0.0
      %1757 = vmatpush2.msra.mxu0 %v1678
      %1758 = vmatprep.subr.mxu0 0.0
      %1759 = vmatpush2.msra.mxu0 %v1676
      %1760 = vmatprep.subr.mxu0 0.0
      %1761 = vmatpush2.msra.mxu0 %v1674
      %1762 = vmatprep.subr.mxu0 0.0
      %1763 = vmatpush2.msra.mxu0 %v1672
      %1764 = vmatprep.subr.mxu0 0.0
      %1765 = vmatpush2.msra.mxu0 %v1666
      %1766 = vmatprep.subr.mxu0 0.0
      %1767 = vmatpush2.msra.mxu0 %v1664
      %1768 = vmatprep.subr.mxu0 0.0
      %1769 = vmatpush2.msra.mxu0 %v1662
      %1770 = vmatprep.subr.mxu0 0.0
      %1771 = vmatpush2.msra.mxu0 %v1660
      %1772 = vmatprep.subr.mxu0 0.0
      %1773 = vmatpush2.msra.mxu0 %v1654
      %1774 = vmatprep.subr.mxu0 0.0
      %1775 = vmatpush2.msra.mxu0 %v1652
      %1776 = vmatprep.subr.mxu0 0.0
      %1777 = vmatpush2.msra.mxu0 %v1650
      %1778 = vmatprep.subr.mxu0 0.0
      %1779 = vmatpush2.msra.mxu0 %v1648
      %1780 = vmatprep.mubr.f32.mxu0 %v1579
      %1781 = vmatmul.mubr.f32.gmra.mxu0 %v1578
      %v1782 = vpop.f32.mrf.mxu0
      %v1783 = vadd.f32 %v1710, %v1782
      %v1784 = vpop.f32.mrf.mxu0
      %1785 = vdwg.mxu0
      %1786 = vmatprep.subr.mxu0 0.0
      %1787 = vmatpush1.msra.mxu0 0.0
      %1788 = vmatprep.subr.mxu0 0.0
      %1789 = vmatpush1.msra.mxu0 0.0
      %1790 = vmatprep.subr.mxu0 0.0
      %1791 = vmatpush1.msra.mxu0 0.0
      %1792 = vmatprep.subr.mxu0 0.0
      %1793 = vmatpush1.msra.mxu0 0.0
      %1794 = vmatprep.subr.mxu0 0.0
      %1795 = vmatpush1.msra.mxu0 0.0
      %1796 = vmatprep.subr.mxu0 0.0
      %1797 = vmatpush1.msra.mxu0 0.0
      %1798 = vmatprep.subr.mxu0 0.0
      %1799 = vmatpush1.msra.mxu0 0.0
      %1800 = vmatprep.subr.mxu0 0.0
      %1801 = vmatpush1.msra.mxu0 0.0
      %1802 = vmatprep.subr.mxu0 0.0
      %1803 = vmatpush1.msra.mxu0 0.0
      %1804 = vmatprep.subr.mxu0 0.0
      %1805 = vmatpush1.msra.mxu0 0.0
      %1806 = vmatprep.subr.mxu0 0.0
      %1807 = vmatpush1.msra.mxu0 0.0
      %1808 = vmatprep.subr.mxu0 0.0
      %1809 = vmatpush1.msra.mxu0 0.0
      %1810 = vmatprep.subr.mxu0 0.0
      %1811 = vmatpush1.msra.mxu0 %v1702
      %1812 = vmatprep.subr.mxu0 0.0
      %1813 = vmatpush1.msra.mxu0 %v1700
      %1814 = vmatprep.subr.mxu0 0.0
      %1815 = vmatpush1.msra.mxu0 %v1698
      %1816 = vmatprep.subr.mxu0 0.0
      %1817 = vmatpush1.msra.mxu0 %v1696
      %1818 = vmatprep.subr.mxu0 0.0
      %1819 = vmatpush2.msra.mxu0 0.0
      %1820 = vmatprep.subr.mxu0 0.0
      %1821 = vmatpush2.msra.mxu0 0.0
      %1822 = vmatprep.subr.mxu0 0.0
      %1823 = vmatpush2.msra.mxu0 0.0
      %1824 = vmatprep.subr.mxu0 0.0
      %1825 = vmatpush2.msra.mxu0 0.0
      %1826 = vmatprep.subr.mxu0 0.0
      %1827 = vmatpush2.msra.mxu0 0.0
      %1828 = vmatprep.subr.mxu0 0.0
      %1829 = vmatpush2.msra.mxu0 0.0
      %1830 = vmatprep.subr.mxu0 0.0
      %1831 = vmatpush2.msra.mxu0 0.0
      %1832 = vmatprep.subr.mxu0 0.0
      %1833 = vmatpush2.msra.mxu0 0.0
      %1834 = vmatprep.subr.mxu0 0.0
      %1835 = vmatpush2.msra.mxu0 0.0
      %1836 = vmatprep.subr.mxu0 0.0
      %1837 = vmatpush2.msra.mxu0 0.0
      %1838 = vmatprep.subr.mxu0 0.0
      %1839 = vmatpush2.msra.mxu0 0.0
      %1840 = vmatprep.subr.mxu0 0.0
      %1841 = vmatpush2.msra.mxu0 0.0
      %1842 = vmatprep.subr.mxu0 0.0
      %1843 = vmatpush2.msra.mxu0 0.0
      %1844 = vmatprep.subr.mxu0 0.0
      %1845 = vmatpush2.msra.mxu0 0.0
      %1846 = vmatprep.subr.mxu0 0.0
      %1847 = vmatpush2.msra.mxu0 0.0
      %1848 = vmatprep.subr.mxu0 0.0
      %1849 = vmatpush2.msra.mxu0 0.0
      %1850 = vmatprep.mubr.f32.mxu0 0.0
      %1851 = vmatmul.mubr.f32.gmra.mxu0 %v1714
      %v1852 = vpop.f32.mrf.mxu0
      %v1853 = vadd.f32 %v1783, %v1852
      %v1854 = vpop.f32.mrf.mxu0
      %1855 = vdwg.mxu0
      %v1856 = vmul.f32 %v1853, %v1582
      %v1857 = vld [vmem:[%s1 + $0xd8] sm:$0xff]
      %v1858 = vld [vmem:[%s2 + $0x48] sm:$0xff]
      %v1859 = vld [vmem:[%s3 + $0x5] ss:$0 sm:$0xff]
      %1861 = vrot.lane.b32.xlu0 %v1856, 7
      %v1862 = vpop.permute.xlu0 %1861
      %v1864 = vsel %vm1389, 0.0, %v1862
      %v1865 = vsel %vm1392, %v1864, 0.0
      %v1867 = vrot.slane %v1865, 4
      %1868 = vrot.lane.b32.xlu0 %v1867, 127
      %v1869 = vpop.permute.xlu0 %1868
      %1871 = vrot.lane.b32.xlu0 %v1865, 126
      %v1872 = vpop.permute.xlu0 %1871
      %1874 = vrot.lane.b32.xlu0 %v1867, 122
      %v1875 = vpop.permute.xlu0 %1874
      %1877 = vrot.lane.b32.xlu0 %v1865, 121
      %v1878 = vpop.permute.xlu0 %1877
      %1880 = vrot.lane.b32.xlu0 %v1867, 120
      %v1881 = vpop.permute.xlu0 %1880
      %1883 = vrot.lane.b32.xlu0 %v1865, 116
      %v1884 = vpop.permute.xlu0 %1883
      %1886 = vrot.lane.b32.xlu0 %v1867, 115
      %v1887 = vpop.permute.xlu0 %1886
      %1889 = vrot.lane.b32.xlu0 %v1865, 114
      %v1890 = vpop.permute.xlu0 %1889
      %v1891 = vsel %vm324, %v1865, %v1869
      %v1892 = vsel %vm324, %v1872, %v1875
      %v1893 = vsel %vm324, %v1878, %v1881
      %v1894 = vsel %vm324, %v1884, %v1887
      %1896 = vset.pattern.permute.xlu0 0
      %1897 = vperm.xlu0 %1896, %v1858
      %v1898 = vpop.permute.xlu0 %1897
      %vm1900 = vcmask 293888
      %v1902 = vsel %vm1900, %v1857, 0
      %v1904 = vsel %vm324, %v1890, 0
      %1906 = vmatprep.subr.mxu0 0.0
      %1907 = vmatpush1.msra.mxu0 0.0
      %1908 = vmatprep.subr.mxu0 0.0
      %1909 = vmatpush1.msra.mxu0 0.0
      %1910 = vmatprep.subr.mxu0 0.0
      %1911 = vmatpush1.msra.mxu0 0.0
      %1912 = vmatprep.subr.mxu0 0.0
      %1913 = vmatpush1.msra.mxu0 0.0
      %1914 = vmatprep.subr.mxu0 0.0
      %1915 = vmatpush1.msra.mxu0 0.0
      %1916 = vmatprep.subr.mxu0 0.0
      %1917 = vmatpush1.msra.mxu0 0.0
      %1918 = vmatprep.subr.mxu0 0.0
      %1919 = vmatpush1.msra.mxu0 0.0
      %1920 = vmatprep.subr.mxu0 0.0
      %1921 = vmatpush1.msra.mxu0 0.0
      %1922 = vmatprep.subr.mxu0 0.0
      %1923 = vmatpush1.msra.mxu0 0.0
      %1924 = vmatprep.subr.mxu0 0.0
      %1925 = vmatpush1.msra.mxu0 0.0
      %1926 = vmatprep.subr.mxu0 0.0
      %1927 = vmatpush1.msra.mxu0 0.0
      %1928 = vmatprep.subr.mxu0 0.0
      %1929 = vmatpush1.msra.mxu0 %v1904
      %1930 = vmatprep.subr.mxu0 0.0
      %1931 = vmatpush1.msra.mxu0 %v1894
      %1932 = vmatprep.subr.mxu0 0.0
      %1933 = vmatpush1.msra.mxu0 %v1893
      %1934 = vmatprep.subr.mxu0 0.0
      %1935 = vmatpush1.msra.mxu0 %v1892
      %1936 = vmatprep.subr.mxu0 0.0
      %1937 = vmatpush1.msra.mxu0 %v1891
      %1938 = vmatprep.subr.mxu0 0.0
      %1939 = vmatpush2.msra.mxu0 0.0
      %1940 = vmatprep.subr.mxu0 0.0
      %1941 = vmatpush2.msra.mxu0 0.0
      %1942 = vmatprep.subr.mxu0 0.0
      %1943 = vmatpush2.msra.mxu0 0.0
      %1944 = vmatprep.subr.mxu0 0.0
      %1945 = vmatpush2.msra.mxu0 0.0
      %1946 = vmatprep.subr.mxu0 0.0
      %1947 = vmatpush2.msra.mxu0 0.0
      %1948 = vmatprep.subr.mxu0 0.0
      %1949 = vmatpush2.msra.mxu0 0.0
      %1950 = vmatprep.subr.mxu0 0.0
      %1951 = vmatpush2.msra.mxu0 0.0
      %1952 = vmatprep.subr.mxu0 0.0
      %1953 = vmatpush2.msra.mxu0 0.0
      %1954 = vmatprep.subr.mxu0 0.0
      %1955 = vmatpush2.msra.mxu0 0.0
      %1956 = vmatprep.subr.mxu0 0.0
      %1957 = vmatpush2.msra.mxu0 0.0
      %1958 = vmatprep.subr.mxu0 0.0
      %1959 = vmatpush2.msra.mxu0 0.0
      %1960 = vmatprep.subr.mxu0 0.0
      %1961 = vmatpush2.msra.mxu0 0.0
      %1962 = vmatprep.subr.mxu0 0.0
      %1963 = vmatpush2.msra.mxu0 0.0
      %1964 = vmatprep.subr.mxu0 0.0
      %1965 = vmatpush2.msra.mxu0 0.0
      %1966 = vmatprep.subr.mxu0 0.0
      %1967 = vmatpush2.msra.mxu0 0.0
      %1968 = vmatprep.subr.mxu0 0.0
      %1969 = vmatpush2.msra.mxu0 0.0
      %1970 = vmatprep.mubr.f32.mxu0 0.0
      %1971 = vmatmul.mubr.f32.gmra.mxu0 %v1902
      %v1972 = vpop.f32.mrf.mxu0
      %v1973 = vadd.f32 %v1898, %v1972
      %v1974 = vpop.f32.mrf.mxu0
      %1975 = vdwg.mxu0
      %v1976 = vmul.f32 %v1973, %v1859
      %vm1977 = vcmp.ge.f32.partialorder %v1976, 0.0
      %v1978 = vmul.f32 %v1976, 0.01
      %v1979 = vsel %vm1977, %v1976, %v1978
      %v1980 = vld [vmem:[%s6] sm:$0xf]
      %v1981 = vld [vmem:[%s6 + $0x4] sm:$0xf]
      %v1982 = vld [vmem:[%s6 + $0x8] sm:$0xf]
      %v1983 = vld [vmem:[%s6 + $0xc] sm:$0xf]
      %v1984 = vld [vmem:[%s6 + $0x10] sm:$0x3]
      %v1985 = vunpack.c.l.bf16 %v1980
      %v1986 = vunpack.c.l.bf16 %v1981
      %v1987 = vunpack.c.l.bf16 %v1982
      %v1988 = vunpack.c.l.bf16 %v1983
      %v1989 = vunpack.c.l.bf16 %v1984
      %v1991 = vsel %vm1900, %v1979, 0
      %v1994 = vsel %vm324, %v1989, 0
      %1996 = vmatprep.subr.mxu0 0.0
      %1997 = vmatpush1.msra.mxu0 0.0
      %1998 = vmatprep.subr.mxu0 0.0
      %1999 = vmatpush1.msra.mxu0 0.0
      %2000 = vmatprep.subr.mxu0 0.0
      %2001 = vmatpush1.msra.mxu0 0.0
      %2002 = vmatprep.subr.mxu0 0.0
      %2003 = vmatpush1.msra.mxu0 0.0
      %2004 = vmatprep.subr.mxu0 0.0
      %2005 = vmatpush1.msra.mxu0 0.0
      %2006 = vmatprep.subr.mxu0 0.0
      %2007 = vmatpush1.msra.mxu0 0.0
      %2008 = vmatprep.subr.mxu0 0.0
      %2009 = vmatpush1.msra.mxu0 0.0
      %2010 = vmatprep.subr.mxu0 0.0
      %2011 = vmatpush1.msra.mxu0 0.0
      %2012 = vmatprep.subr.mxu0 0.0
      %2013 = vmatpush1.msra.mxu0 0.0
      %2014 = vmatprep.subr.mxu0 0.0
      %2015 = vmatpush1.msra.mxu0 0.0
      %2016 = vmatprep.subr.mxu0 0.0
      %2017 = vmatpush1.msra.mxu0 0.0
      %2018 = vmatprep.subr.mxu0 0.0
      %2019 = vmatpush1.msra.mxu0 %v1994
      %2020 = vmatprep.subr.mxu0 0.0
      %2021 = vmatpush1.msra.mxu0 %v1988
      %2022 = vmatprep.subr.mxu0 0.0
      %2023 = vmatpush1.msra.mxu0 %v1987
      %2024 = vmatprep.subr.mxu0 0.0
      %2025 = vmatpush1.msra.mxu0 %v1986
      %2026 = vmatprep.subr.mxu0 0.0
      %2027 = vmatpush1.msra.mxu0 %v1985
      %2028 = vmatprep.subr.mxu0 0.0
      %2029 = vmatpush2.msra.mxu0 0.0
      %2030 = vmatprep.subr.mxu0 0.0
      %2031 = vmatpush2.msra.mxu0 0.0
      %2032 = vmatprep.subr.mxu0 0.0
      %2033 = vmatpush2.msra.mxu0 0.0
      %2034 = vmatprep.subr.mxu0 0.0
      %2035 = vmatpush2.msra.mxu0 0.0
      %2036 = vmatprep.subr.mxu0 0.0
      %2037 = vmatpush2.msra.mxu0 0.0
      %2038 = vmatprep.subr.mxu0 0.0
      %2039 = vmatpush2.msra.mxu0 0.0
      %2040 = vmatprep.subr.mxu0 0.0
      %2041 = vmatpush2.msra.mxu0 0.0
      %2042 = vmatprep.subr.mxu0 0.0
      %2043 = vmatpush2.msra.mxu0 0.0
      %2044 = vmatprep.subr.mxu0 0.0
      %2045 = vmatpush2.msra.mxu0 0.0
      %2046 = vmatprep.subr.mxu0 0.0
      %2047 = vmatpush2.msra.mxu0 0.0
      %2048 = vmatprep.subr.mxu0 0.0
      %2049 = vmatpush2.msra.mxu0 0.0
      %2050 = vmatprep.subr.mxu0 0.0
      %2051 = vmatpush2.msra.mxu0 0.0
      %2052 = vmatprep.subr.mxu0 0.0
      %2053 = vmatpush2.msra.mxu0 0.0
      %2054 = vmatprep.subr.mxu0 0.0
      %2055 = vmatpush2.msra.mxu0 0.0
      %2056 = vmatprep.subr.mxu0 0.0
      %2057 = vmatpush2.msra.mxu0 0.0
      %2058 = vmatprep.subr.mxu0 0.0
      %2059 = vmatpush2.msra.mxu0 0.0
      %2060 = vmatprep.mubr.f32.mxu0 0.0
      %2061 = vmatmul.mubr.f32.gmra.mxu0 %v1991
      %v2062 = vpop.f32.mrf.mxu0
      %v2063 = vadd.f32 0.0, %v2062
      %v2064 = vpop.f32.mrf.mxu0
      %2065 = vdwg.mxu0
      %v2066 = vld [vmem:[%s1 + $0xf0] sm:$0xff]
      %v2067 = vld [vmem:[%s1 + $0x108] sm:$0xff]
      %v2068 = vld [vmem:[%s2 + $0x50] sm:$0xff]
      %v2069 = vld [vmem:[%s2 + $0x58] sm:$0xff]
      %v2070 = vld [vmem:[%s3 + $0x6] ss:$0 sm:$0xff]
      %2072 = vrot.lane.b32.xlu0 %v2063, 11
      %v2073 = vpop.permute.xlu0 %2072
      %vm2075 = vcmask 89088
      %v2076 = vsel %vm2075, 0.0, %v2073
      %vm2077 = vcmask 908288
      %v2078 = vsel %vm2077, %v2076, 0.0
      %2080 = vrot.lane.b32.xlu0 %v2078, 127
      %v2081 = vpop.permute.xlu0 %2080
      %2083 = vrot.lane.b32.xlu0 %v2078, 126
      %v2084 = vpop.permute.xlu0 %2083
      %2086 = vrot.lane.b32.xlu0 %v2078, 118
      %v2087 = vpop.permute.xlu0 %2086
      %2089 = vrot.lane.b32.xlu0 %v2078, 117
      %v2090 = vpop.permute.xlu0 %2089
      %2092 = vrot.lane.b32.xlu0 %v2078, 116
      %v2093 = vpop.permute.xlu0 %2092
      %2095 = vrot.lane.b32.xlu0 %v2078, 108
      %v2096 = vpop.permute.xlu0 %2095
      %2098 = vrot.lane.b32.xlu0 %v2078, 107
      %v2099 = vpop.permute.xlu0 %2098
      %2101 = vrot.lane.b32.xlu0 %v2078, 106
      %v2102 = vpop.permute.xlu0 %2101
      %2105 = vset.pattern.permute.xlu0 0
      %2106 = vperm.xlu0 %2105, %v2068
      %v2107 = vpop.permute.xlu0 %2106
      %2110 = vset.pattern.permute.xlu0 0
      %2111 = vperm.xlu0 %2110, %v2069
      %v2112 = vpop.permute.xlu0 %2111
      %v2115 = vsel %vm662, %v2066, 0
      %v2118 = vsel %vm662, %v2067, 0
      %2120 = vmatprep.subr.mxu0 0.0
      %2121 = vmatpush1.msra.mxu0 0.0
      %2122 = vmatprep.subr.mxu0 0.0
      %2123 = vmatpush1.msra.mxu0 0.0
      %2124 = vmatprep.subr.mxu0 0.0
      %2125 = vmatpush1.msra.mxu0 0.0
      %2126 = vmatprep.subr.mxu0 0.0
      %2127 = vmatpush1.msra.mxu0 0.0
      %2128 = vmatprep.subr.mxu0 0.0
      %2129 = vmatpush1.msra.mxu0 0.0
      %2130 = vmatprep.subr.mxu0 0.0
      %2131 = vmatpush1.msra.mxu0 0.0
      %2132 = vmatprep.subr.mxu0 0.0
      %2133 = vmatpush1.msra.mxu0 0.0
      %2134 = vmatprep.subr.mxu0 0.0
      %2135 = vmatpush1.msra.mxu0 %v2102
      %2136 = vmatprep.subr.mxu0 0.0
      %2137 = vmatpush1.msra.mxu0 %v2099
      %2138 = vmatprep.subr.mxu0 0.0
      %2139 = vmatpush1.msra.mxu0 %v2096
      %2140 = vmatprep.subr.mxu0 0.0
      %2141 = vmatpush1.msra.mxu0 %v2093
      %2142 = vmatprep.subr.mxu0 0.0
      %2143 = vmatpush1.msra.mxu0 %v2090
      %2144 = vmatprep.subr.mxu0 0.0
      %2145 = vmatpush1.msra.mxu0 %v2087
      %2146 = vmatprep.subr.mxu0 0.0
      %2147 = vmatpush1.msra.mxu0 %v2084
      %2148 = vmatprep.subr.mxu0 0.0
      %2149 = vmatpush1.msra.mxu0 %v2081
      %2150 = vmatprep.subr.mxu0 0.0
      %2151 = vmatpush1.msra.mxu0 %v2078
      %2152 = vmatprep.subr.mxu0 0.0
      %2153 = vmatpush2.msra.mxu0 0.0
      %2154 = vmatprep.subr.mxu0 0.0
      %2155 = vmatpush2.msra.mxu0 0.0
      %2156 = vmatprep.subr.mxu0 0.0
      %2157 = vmatpush2.msra.mxu0 0.0
      %2158 = vmatprep.subr.mxu0 0.0
      %2159 = vmatpush2.msra.mxu0 0.0
      %2160 = vmatprep.subr.mxu0 0.0
      %2161 = vmatpush2.msra.mxu0 0.0
      %2162 = vmatprep.subr.mxu0 0.0
      %2163 = vmatpush2.msra.mxu0 0.0
      %2164 = vmatprep.subr.mxu0 0.0
      %2165 = vmatpush2.msra.mxu0 0.0
      %2166 = vmatprep.subr.mxu0 0.0
      %2167 = vmatpush2.msra.mxu0 0.0
      %2168 = vmatprep.subr.mxu0 0.0
      %2169 = vmatpush2.msra.mxu0 0.0
      %2170 = vmatprep.subr.mxu0 0.0
      %2171 = vmatpush2.msra.mxu0 0.0
      %2172 = vmatprep.subr.mxu0 0.0
      %2173 = vmatpush2.msra.mxu0 0.0
      %2174 = vmatprep.subr.mxu0 0.0
      %2175 = vmatpush2.msra.mxu0 0.0
      %2176 = vmatprep.subr.mxu0 0.0
      %2177 = vmatpush2.msra.mxu0 0.0
      %2178 = vmatprep.subr.mxu0 0.0
      %2179 = vmatpush2.msra.mxu0 0.0
      %2180 = vmatprep.subr.mxu0 0.0
      %2181 = vmatpush2.msra.mxu0 0.0
      %2182 = vmatprep.subr.mxu0 0.0
      %2183 = vmatpush2.msra.mxu0 0.0
      %2184 = vmatprep.mubr.f32.mxu0 0.0
      %2185 = vmatmul.mubr.f32.gmra.mxu0 %v2115
      %v2186 = vpop.f32.mrf.mxu0
      %v2187 = vadd.f32 %v2107, %v2186
      %v2188 = vpop.f32.mrf.mxu0
      %2189 = vmatprep.mubr.f32.mxu0 0.0
      %2190 = vmatmul.mubr.f32.gmra.mxu0 %v2118
      %v2191 = vpop.f32.mrf.mxu0
      %v2192 = vadd.f32 %v2112, %v2191
      %v2193 = vpop.f32.mrf.mxu0
      %2194 = vdwg.mxu0
      %v2195 = vmul.f32 %v2187, %v2070
      %v2196 = vmul.f32 %v2192, %v2070
      %vm2197 = vcmp.ge.f32.partialorder %v2195, 0.0
      %vm2198 = vcmp.ge.f32.partialorder %v2196, 0.0
      %v2199 = vmul.f32 %v2195, 0.01
      %v2200 = vmul.f32 %v2196, 0.01
      %v2201 = vsel %vm2197, %v2195, %v2199
      %v2202 = vsel %vm2198, %v2196, %v2200
      %v2203 = vld [vmem:[%s7] sm:$0xff]
      %v2204 = vld [vmem:[%s7 + $0x8] sm:$0xf]
      %v2205 = vld [vmem:[%s7 + $0xc] sm:$0xff]
      %v2206 = vld [vmem:[%s7 + $0x14] sm:$0xf]
      %v2207 = vld [vmem:[%s7 + $0x18] sm:$0xff]
      %v2208 = vld [vmem:[%s7 + $0x20] sm:$0xf]
      %v2209 = vld [vmem:[%s7 + $0x24] sm:$0xff]
      %v2210 = vld [vmem:[%s7 + $0x2c] sm:$0xf]
      %v2211 = vld [vmem:[%s7 + $0x30] sm:$0xff]
      %v2212 = vld [vmem:[%s7 + $0x38] sm:$0xf]
      %v2213 = vld [vmem:[%s7 + $0x3c] sm:$0xff]
      %v2214 = vld [vmem:[%s7 + $0x44] sm:$0xf]
      %v2215 = vld [vmem:[%s7 + $0x48] sm:$0xff]
      %v2216 = vld [vmem:[%s7 + $0x50] sm:$0xf]
      %v2217 = vld [vmem:[%s7 + $0x54] sm:$0xff]
      %v2218 = vld [vmem:[%s7 + $0x5c] sm:$0xf]
      %v2219 = vld [vmem:[%s7 + $0x60] sm:$0xff]
      %v2220 = vld [vmem:[%s7 + $0x68] sm:$0xf]
      %v2221 = vld [vmem:[%s7 + $0x6c] sm:$0xff]
      %v2222 = vld [vmem:[%s7 + $0x74] sm:$0xf]
      %v2223 = vld [vmem:[%s7 + $0x78] sm:$0xff]
      %v2224 = vld [vmem:[%s7 + $0x80] sm:$0xf]
      %v2225 = vld [vmem:[%s7 + $0x84] sm:$0xff]
      %v2226 = vld [vmem:[%s7 + $0x8c] sm:$0xf]
      %v2227 = vld [vmem:[%s7 + $0x90] sm:$0x33]
      %v2228 = vld [vmem:[%s7 + $0x98] sm:$0x3]
      %v2229 = vunpack.c.l.bf16 %v2203
      %v2230 = vunpack.c.h.bf16 %v2203
      %v2231 = vunpack.c.l.bf16 %v2204
      %v2232 = vunpack.c.l.bf16 %v2205
      %v2233 = vunpack.c.h.bf16 %v2205
      %v2234 = vunpack.c.l.bf16 %v2206
      %v2235 = vunpack.c.l.bf16 %v2207
      %v2236 = vunpack.c.h.bf16 %v2207
      %v2237 = vunpack.c.l.bf16 %v2208
      %v2238 = vunpack.c.l.bf16 %v2209
      %v2239 = vunpack.c.h.bf16 %v2209
      %v2240 = vunpack.c.l.bf16 %v2210
      %v2241 = vunpack.c.l.bf16 %v2211
      %v2242 = vunpack.c.h.bf16 %v2211
      %v2243 = vunpack.c.l.bf16 %v2212
      %v2244 = vunpack.c.l.bf16 %v2213
      %v2245 = vunpack.c.h.bf16 %v2213
      %v2246 = vunpack.c.l.bf16 %v2214
      %v2247 = vunpack.c.l.bf16 %v2215
      %v2248 = vunpack.c.h.bf16 %v2215
      %v2249 = vunpack.c.l.bf16 %v2216
      %v2250 = vunpack.c.l.bf16 %v2217
      %v2251 = vunpack.c.h.bf16 %v2217
      %v2252 = vunpack.c.l.bf16 %v2218
      %v2253 = vunpack.c.l.bf16 %v2219
      %v2254 = vunpack.c.h.bf16 %v2219
      %v2255 = vunpack.c.l.bf16 %v2220
      %v2256 = vunpack.c.l.bf16 %v2221
      %v2257 = vunpack.c.h.bf16 %v2221
      %v2258 = vunpack.c.l.bf16 %v2222
      %v2259 = vunpack.c.l.bf16 %v2223
      %v2260 = vunpack.c.h.bf16 %v2223
      %v2261 = vunpack.c.l.bf16 %v2224
      %v2262 = vunpack.c.l.bf16 %v2225
      %v2263 = vunpack.c.h.bf16 %v2225
      %v2264 = vunpack.c.l.bf16 %v2226
      %v2265 = vunpack.c.l.bf16 %v2227
      %v2266 = vunpack.c.h.bf16 %v2227
      %v2267 = vunpack.c.l.bf16 %v2228
      %vm2268 = vcmask 818176
      %v2270 = vsel %vm2268, %v2201, 0
      %v2273 = vsel %vm2268, %v2202, 0
      %v2276 = vsel %vm324, %v2265, 0
      %v2279 = vsel %vm324, %v2266, 0
      %v2282 = vsel %vm324, %v2267, 0
      %2284 = vmatprep.subr.mxu0 0.0
      %2285 = vmatpush1.msra.mxu0 0.0
      %2286 = vmatprep.subr.mxu0 0.0
      %2287 = vmatpush1.msra.mxu0 0.0
      %2288 = vmatprep.subr.mxu0 0.0
      %2289 = vmatpush1.msra.mxu0 0.0
      %2290 = vmatprep.subr.mxu0 %v2279
      %2291 = vmatpush1.msra.mxu0 %v2276
      %2292 = vmatprep.subr.mxu0 %v2263
      %2293 = vmatpush1.msra.mxu0 %v2262
      %2294 = vmatprep.subr.mxu0 %v2260
      %2295 = vmatpush1.msra.mxu0 %v2259
      %2296 = vmatprep.subr.mxu0 %v2257
      %2297 = vmatpush1.msra.mxu0 %v2256
      %2298 = vmatprep.subr.mxu0 %v2254
      %2299 = vmatpush1.msra.mxu0 %v2253
      %2300 = vmatprep.subr.mxu0 %v2251
      %2301 = vmatpush1.msra.mxu0 %v2250
      %2302 = vmatprep.subr.mxu0 %v2248
      %2303 = vmatpush1.msra.mxu0 %v2247
      %2304 = vmatprep.subr.mxu0 %v2245
      %2305 = vmatpush1.msra.mxu0 %v2244
      %2306 = vmatprep.subr.mxu0 %v2242
      %2307 = vmatpush1.msra.mxu0 %v2241
      %2308 = vmatprep.subr.mxu0 %v2239
      %2309 = vmatpush1.msra.mxu0 %v2238
      %2310 = vmatprep.subr.mxu0 %v2236
      %2311 = vmatpush1.msra.mxu0 %v2235
      %2312 = vmatprep.subr.mxu0 %v2233
      %2313 = vmatpush1.msra.mxu0 %v2232
      %2314 = vmatprep.subr.mxu0 %v2230
      %2315 = vmatpush1.msra.mxu0 %v2229
      %2316 = vmatprep.subr.mxu0 0.0
      %2317 = vmatpush2.msra.mxu0 0.0
      %2318 = vmatprep.subr.mxu0 0.0
      %2319 = vmatpush2.msra.mxu0 0.0
      %2320 = vmatprep.subr.mxu0 0.0
      %2321 = vmatpush2.msra.mxu0 0.0
      %2322 = vmatprep.subr.mxu0 0.0
      %2323 = vmatpush2.msra.mxu0 0.0
      %2324 = vmatprep.subr.mxu0 0.0
      %2325 = vmatpush2.msra.mxu0 0.0
      %2326 = vmatprep.subr.mxu0 0.0
      %2327 = vmatpush2.msra.mxu0 0.0
      %2328 = vmatprep.subr.mxu0 0.0
      %2329 = vmatpush2.msra.mxu0 0.0
      %2330 = vmatprep.subr.mxu0 0.0
      %2331 = vmatpush2.msra.mxu0 0.0
      %2332 = vmatprep.subr.mxu0 0.0
      %2333 = vmatpush2.msra.mxu0 0.0
      %2334 = vmatprep.subr.mxu0 0.0
      %2335 = vmatpush2.msra.mxu0 0.0
      %2336 = vmatprep.subr.mxu0 0.0
      %2337 = vmatpush2.msra.mxu0 0.0
      %2338 = vmatprep.subr.mxu0 0.0
      %2339 = vmatpush2.msra.mxu0 0.0
      %2340 = vmatprep.subr.mxu0 0.0
      %2341 = vmatpush2.msra.mxu0 0.0
      %2342 = vmatprep.subr.mxu0 0.0
      %2343 = vmatpush2.msra.mxu0 0.0
      %2344 = vmatprep.subr.mxu0 0.0
      %2345 = vmatpush2.msra.mxu0 0.0
      %2346 = vmatprep.subr.mxu0 0.0
      %2347 = vmatpush2.msra.mxu0 0.0
      %2348 = vmatprep.mubr.f32.mxu0 0.0
      %2349 = vmatmul.mubr.f32.gmra.mxu0 %v2270
      %v2350 = vpop.f32.mrf.mxu0
      %v2351 = vadd.f32 0.0, %v2350
      %v2352 = vpop.f32.mrf.mxu0
      %v2353 = vadd.f32 0.0, %v2352
      %2354 = vmatprep.mubr.f32.mxu0 0.0
      %2355 = vmatmul.mubr.f32.gmra.mxu0 %v2273
      %v2356 = vpop.f32.mrf.mxu0
      %v2357 = vadd.f32 0.0, %v2356
      %v2358 = vpop.f32.mrf.mxu0
      %v2359 = vadd.f32 0.0, %v2358
      %2360 = vdwg.mxu0
      %2361 = vmatprep.subr.mxu0 0.0
      %2362 = vmatpush1.msra.mxu0 0.0
      %2363 = vmatprep.subr.mxu0 0.0
      %2364 = vmatpush1.msra.mxu0 0.0
      %2365 = vmatprep.subr.mxu0 0.0
      %2366 = vmatpush1.msra.mxu0 0.0
      %2367 = vmatprep.subr.mxu0 0.0
      %2368 = vmatpush1.msra.mxu0 %v2282
      %2369 = vmatprep.subr.mxu0 0.0
      %2370 = vmatpush1.msra.mxu0 %v2264
      %2371 = vmatprep.subr.mxu0 0.0
      %2372 = vmatpush1.msra.mxu0 %v2261
      %2373 = vmatprep.subr.mxu0 0.0
      %2374 = vmatpush1.msra.mxu0 %v2258
      %2375 = vmatprep.subr.mxu0 0.0
      %2376 = vmatpush1.msra.mxu0 %v2255
      %2377 = vmatprep.subr.mxu0 0.0
      %2378 = vmatpush1.msra.mxu0 %v2252
      %2379 = vmatprep.subr.mxu0 0.0
      %2380 = vmatpush1.msra.mxu0 %v2249
      %2381 = vmatprep.subr.mxu0 0.0
      %2382 = vmatpush1.msra.mxu0 %v2246
      %2383 = vmatprep.subr.mxu0 0.0
      %2384 = vmatpush1.msra.mxu0 %v2243
      %2385 = vmatprep.subr.mxu0 0.0
      %2386 = vmatpush1.msra.mxu0 %v2240
      %2387 = vmatprep.subr.mxu0 0.0
      %2388 = vmatpush1.msra.mxu0 %v2237
      %2389 = vmatprep.subr.mxu0 0.0
      %2390 = vmatpush1.msra.mxu0 %v2234
      %2391 = vmatprep.subr.mxu0 0.0
      %2392 = vmatpush1.msra.mxu0 %v2231
      %2393 = vmatprep.subr.mxu0 0.0
      %2394 = vmatpush2.msra.mxu0 0.0
      %2395 = vmatprep.subr.mxu0 0.0
      %2396 = vmatpush2.msra.mxu0 0.0
      %2397 = vmatprep.subr.mxu0 0.0
      %2398 = vmatpush2.msra.mxu0 0.0
      %2399 = vmatprep.subr.mxu0 0.0
      %2400 = vmatpush2.msra.mxu0 0.0
      %2401 = vmatprep.subr.mxu0 0.0
      %2402 = vmatpush2.msra.mxu0 0.0
      %2403 = vmatprep.subr.mxu0 0.0
      %2404 = vmatpush2.msra.mxu0 0.0
      %2405 = vmatprep.subr.mxu0 0.0
      %2406 = vmatpush2.msra.mxu0 0.0
      %2407 = vmatprep.subr.mxu0 0.0
      %2408 = vmatpush2.msra.mxu0 0.0
      %2409 = vmatprep.subr.mxu0 0.0
      %2410 = vmatpush2.msra.mxu0 0.0
      %2411 = vmatprep.subr.mxu0 0.0
      %2412 = vmatpush2.msra.mxu0 0.0
      %2413 = vmatprep.subr.mxu0 0.0
      %2414 = vmatpush2.msra.mxu0 0.0
      %2415 = vmatprep.subr.mxu0 0.0
      %2416 = vmatpush2.msra.mxu0 0.0
      %2417 = vmatprep.subr.mxu0 0.0
      %2418 = vmatpush2.msra.mxu0 0.0
      %2419 = vmatprep.subr.mxu0 0.0
      %2420 = vmatpush2.msra.mxu0 0.0
      %2421 = vmatprep.subr.mxu0 0.0
      %2422 = vmatpush2.msra.mxu0 0.0
      %2423 = vmatprep.subr.mxu0 0.0
      %2424 = vmatpush2.msra.mxu0 0.0
      %2425 = vmatprep.mubr.f32.mxu0 0.0
      %2426 = vmatmul.mubr.f32.gmra.mxu0 %v2270
      %v2427 = vpop.f32.mrf.mxu0
      %v2428 = vadd.f32 0.0, %v2427
      %v2429 = vpop.f32.mrf.mxu0
      %2430 = vmatprep.mubr.f32.mxu0 0.0
      %2431 = vmatmul.mubr.f32.gmra.mxu0 %v2273
      %v2432 = vpop.f32.mrf.mxu0
      %v2433 = vadd.f32 0.0, %v2432
      %v2434 = vpop.f32.mrf.mxu0
      %2435 = vdwg.mxu0
      %v2436 = vld [vmem:[%s1 + $0x120] sm:$0xff]
      %v2437 = vld [vmem:[%s1 + $0x128] sm:$0xff]
      %v2438 = vld [vmem:[%s2 + $0x60] sm:$0xff]
      %s2439 = scalar_lea.vmem %s3, 7
      %v2440 = vld [vmem:[%s2439] ss:$8 sm:$0x7]
      %2447 = vrot.lane.b32.xlu0 %v2351, 19
      %v2448 = vpop.permute.xlu0 %2447
      %2449 = vrot.lane.b32.xlu0 %v2353, 19
      %v2450 = vpop.permute.xlu0 %2449
      %2451 = vrot.lane.b32.xlu0 %v2428, 19
      %v2452 = vpop.permute.xlu0 %2451
      %2453 = vrot.lane.b32.xlu0 %v2357, 19
      %v2454 = vpop.permute.xlu0 %2453
      %2455 = vrot.lane.b32.xlu0 %v2359, 19
      %v2456 = vpop.permute.xlu0 %2455
      %2457 = vrot.lane.b32.xlu0 %v2433, 19
      %v2458 = vpop.permute.xlu0 %2457
      %vm2459 = vcmask 154624
      %v2460 = vsel %vm2459, %v2448, %v2450
      %v2461 = vsel %vm2459, %v2450, %v2452
      %v2462 = vsel %vm2459, %v2454, %v2456
      %v2463 = vsel %vm2459, %v2456, %v2458
      %v2470 = vsel %vm2459, 0.0, %v2448
      %v2471 = vsel %vm2459, 0.0, %v2454
      %v2472 = vsel %vm633, %v2461, 0.0
      %v2473 = vsel %vm633, %v2463, 0.0
      %2478 = vrot.lane.b32.xlu0 %v2470, 127
      %v2479 = vpop.permute.xlu0 %2478
      %2480 = vrot.lane.b32.xlu0 %v2460, 127
      %v2481 = vpop.permute.xlu0 %2480
      %2482 = vrot.lane.b32.xlu0 %v2472, 127
      %v2483 = vpop.permute.xlu0 %2482
      %2484 = vrot.lane.b32.xlu0 %v2471, 127
      %v2485 = vpop.permute.xlu0 %2484
      %2486 = vrot.lane.b32.xlu0 %v2462, 127
      %v2487 = vpop.permute.xlu0 %2486
      %2488 = vrot.lane.b32.xlu0 %v2473, 127
      %v2489 = vpop.permute.xlu0 %2488
      %v2490 = vsel %vm537, %v2479, %v2481
      %v2491 = vsel %vm537, %v2481, %v2483
      %v2492 = vsel %vm537, %v2485, %v2487
      %v2493 = vsel %vm537, %v2487, %v2489
      %2500 = vrot.lane.b32.xlu0 %v2470, 126
      %v2501 = vpop.permute.xlu0 %2500
      %2502 = vrot.lane.b32.xlu0 %v2460, 126
      %v2503 = vpop.permute.xlu0 %2502
      %2504 = vrot.lane.b32.xlu0 %v2472, 126
      %v2505 = vpop.permute.xlu0 %2504
      %2506 = vrot.lane.b32.xlu0 %v2471, 126
      %v2507 = vpop.permute.xlu0 %2506
      %2508 = vrot.lane.b32.xlu0 %v2462, 126
      %v2509 = vpop.permute.xlu0 %2508
      %2510 = vrot.lane.b32.xlu0 %v2473, 126
      %v2511 = vpop.permute.xlu0 %2510
      %v2512 = vsel %vm553, %v2501, %v2503
      %v2513 = vsel %vm553, %v2503, %v2505
      %v2514 = vsel %vm553, %v2507, %v2509
      %v2515 = vsel %vm553, %v2509, %v2511
      %2522 = vrot.lane.b32.xlu0 %v2470, 110
      %v2523 = vpop.permute.xlu0 %2522
      %2524 = vrot.lane.b32.xlu0 %v2460, 110
      %v2525 = vpop.permute.xlu0 %2524
      %2526 = vrot.lane.b32.xlu0 %v2472, 110
      %v2527 = vpop.permute.xlu0 %2526
      %2528 = vrot.lane.b32.xlu0 %v2471, 110
      %v2529 = vpop.permute.xlu0 %2528
      %2530 = vrot.lane.b32.xlu0 %v2462, 110
      %v2531 = vpop.permute.xlu0 %2530
      %2532 = vrot.lane.b32.xlu0 %v2473, 110
      %v2533 = vpop.permute.xlu0 %2532
      %vm2534 = vcmask 900096
      %v2535 = vsel %vm2534, %v2523, %v2525
      %v2536 = vsel %vm2534, %v2525, %v2527
      %v2537 = vsel %vm2534, %v2529, %v2531
      %v2538 = vsel %vm2534, %v2531, %v2533
      %2545 = vrot.lane.b32.xlu0 %v2470, 109
      %v2546 = vpop.permute.xlu0 %2545
      %2547 = vrot.lane.b32.xlu0 %v2460, 109
      %v2548 = vpop.permute.xlu0 %2547
      %2549 = vrot.lane.b32.xlu0 %v2472, 109
      %v2550 = vpop.permute.xlu0 %2549
      %2551 = vrot.lane.b32.xlu0 %v2471, 109
      %v2552 = vpop.permute.xlu0 %2551
      %2553 = vrot.lane.b32.xlu0 %v2462, 109
      %v2554 = vpop.permute.xlu0 %2553
      %2555 = vrot.lane.b32.xlu0 %v2473, 109
      %v2556 = vpop.permute.xlu0 %2555
      %vm2557 = vcmask 891904
      %v2558 = vsel %vm2557, %v2546, %v2548
      %v2559 = vsel %vm2557, %v2548, %v2550
      %v2560 = vsel %vm2557, %v2552, %v2554
      %v2561 = vsel %vm2557, %v2554, %v2556
      %2568 = vrot.lane.b32.xlu0 %v2470, 108
      %v2569 = vpop.permute.xlu0 %2568
      %2570 = vrot.lane.b32.xlu0 %v2460, 108
      %v2571 = vpop.permute.xlu0 %2570
      %2572 = vrot.lane.b32.xlu0 %v2472, 108
      %v2573 = vpop.permute.xlu0 %2572
      %2574 = vrot.lane.b32.xlu0 %v2471, 108
      %v2575 = vpop.permute.xlu0 %2574
      %2576 = vrot.lane.b32.xlu0 %v2462, 108
      %v2577 = vpop.permute.xlu0 %2576
      %2578 = vrot.lane.b32.xlu0 %v2473, 108
      %v2579 = vpop.permute.xlu0 %2578
      %v2580 = vsel %vm569, %v2569, %v2571
      %v2581 = vsel %vm569, %v2571, %v2573
      %v2582 = vsel %vm569, %v2575, %v2577
      %v2583 = vsel %vm569, %v2577, %v2579
      %2590 = vrot.lane.b32.xlu0 %v2470, 92
      %v2591 = vpop.permute.xlu0 %2590
      %2592 = vrot.lane.b32.xlu0 %v2460, 92
      %v2593 = vpop.permute.xlu0 %2592
      %2594 = vrot.lane.b32.xlu0 %v2472, 92
      %v2595 = vpop.permute.xlu0 %2594
      %2596 = vrot.lane.b32.xlu0 %v2471, 92
      %v2597 = vpop.permute.xlu0 %2596
      %2598 = vrot.lane.b32.xlu0 %v2462, 92
      %v2599 = vpop.permute.xlu0 %2598
      %2600 = vrot.lane.b32.xlu0 %v2473, 92
      %v2601 = vpop.permute.xlu0 %2600
      %vm2602 = vcmask 752640
      %v2603 = vsel %vm2602, %v2591, %v2593
      %v2604 = vsel %vm2602, %v2593, %v2595
      %v2605 = vsel %vm2602, %v2597, %v2599
      %v2606 = vsel %vm2602, %v2599, %v2601
      %2613 = vrot.lane.b32.xlu0 %v2470, 91
      %v2614 = vpop.permute.xlu0 %2613
      %2615 = vrot.lane.b32.xlu0 %v2460, 91
      %v2616 = vpop.permute.xlu0 %2615
      %2617 = vrot.lane.b32.xlu0 %v2472, 91
      %v2618 = vpop.permute.xlu0 %2617
      %2619 = vrot.lane.b32.xlu0 %v2471, 91
      %v2620 = vpop.permute.xlu0 %2619
      %2621 = vrot.lane.b32.xlu0 %v2462, 91
      %v2622 = vpop.permute.xlu0 %2621
      %2623 = vrot.lane.b32.xlu0 %v2473, 91
      %v2624 = vpop.permute.xlu0 %2623
      %vm2625 = vcmask 744448
      %v2626 = vsel %vm2625, %v2614, %v2616
      %v2627 = vsel %vm2625, %v2616, %v2618
      %v2628 = vsel %vm2625, %v2620, %v2622
      %v2629 = vsel %vm2625, %v2622, %v2624
      %2636 = vrot.lane.b32.xlu0 %v2470, 90
      %v2637 = vpop.permute.xlu0 %2636
      %2638 = vrot.lane.b32.xlu0 %v2460, 90
      %v2639 = vpop.permute.xlu0 %2638
      %2640 = vrot.lane.b32.xlu0 %v2472, 90
      %v2641 = vpop.permute.xlu0 %2640
      %2642 = vrot.lane.b32.xlu0 %v2471, 90
      %v2643 = vpop.permute.xlu0 %2642
      %2644 = vrot.lane.b32.xlu0 %v2462, 90
      %v2645 = vpop.permute.xlu0 %2644
      %2646 = vrot.lane.b32.xlu0 %v2473, 90
      %v2647 = vpop.permute.xlu0 %2646
      %vm2648 = vcmask 736256
      %v2649 = vsel %vm2648, %v2637, %v2639
      %v2650 = vsel %vm2648, %v2639, %v2641
      %v2651 = vsel %vm2648, %v2643, %v2645
      %v2652 = vsel %vm2648, %v2645, %v2647
      %2660 = vset.pattern.permute.xlu0 0
      %2661 = vperm.xlu0 %2660, %v2438
      %v2662 = vpop.permute.xlu0 %2661
      %v2665 = vsel %vm945, %v2437, 0
      %2667 = vmatprep.subr.mxu0 %v2629
      %2668 = vmatpush1.msra.mxu0 %v2628
      %2669 = vmatprep.subr.mxu0 %v2627
      %2670 = vmatpush1.msra.mxu0 %v2626
      %2671 = vmatprep.subr.mxu0 %v2606
      %2672 = vmatpush1.msra.mxu0 %v2605
      %2673 = vmatprep.subr.mxu0 %v2604
      %2674 = vmatpush1.msra.mxu0 %v2603
      %2675 = vmatprep.subr.mxu0 %v2583
      %2676 = vmatpush1.msra.mxu0 %v2582
      %2677 = vmatprep.subr.mxu0 %v2581
      %2678 = vmatpush1.msra.mxu0 %v2580
      %2679 = vmatprep.subr.mxu0 %v2561
      %2680 = vmatpush1.msra.mxu0 %v2560
      %2681 = vmatprep.subr.mxu0 %v2559
      %2682 = vmatpush1.msra.mxu0 %v2558
      %2683 = vmatprep.subr.mxu0 %v2538
      %2684 = vmatpush1.msra.mxu0 %v2537
      %2685 = vmatprep.subr.mxu0 %v2536
      %2686 = vmatpush1.msra.mxu0 %v2535
      %2687 = vmatprep.subr.mxu0 %v2515
      %2688 = vmatpush1.msra.mxu0 %v2514
      %2689 = vmatprep.subr.mxu0 %v2513
      %2690 = vmatpush1.msra.mxu0 %v2512
      %2691 = vmatprep.subr.mxu0 %v2493
      %2692 = vmatpush1.msra.mxu0 %v2492
      %2693 = vmatprep.subr.mxu0 %v2491
      %2694 = vmatpush1.msra.mxu0 %v2490
      %2695 = vmatprep.subr.mxu0 %v2462
      %2696 = vmatpush1.msra.mxu0 %v2471
      %2697 = vmatprep.subr.mxu0 %v2460
      %2698 = vmatpush1.msra.mxu0 %v2470
      %2699 = vmatprep.subr.mxu0 0.0
      %2700 = vmatpush2.msra.mxu0 0.0
      %2701 = vmatprep.subr.mxu0 0.0
      %2702 = vmatpush2.msra.mxu0 0.0
      %2703 = vmatprep.subr.mxu0 0.0
      %2704 = vmatpush2.msra.mxu0 0.0
      %2705 = vmatprep.subr.mxu0 0.0
      %2706 = vmatpush2.msra.mxu0 0.0
      %2707 = vmatprep.subr.mxu0 0.0
      %2708 = vmatpush2.msra.mxu0 0.0
      %2709 = vmatprep.subr.mxu0 0.0
      %2710 = vmatpush2.msra.mxu0 0.0
      %2711 = vmatprep.subr.mxu0 0.0
      %2712 = vmatpush2.msra.mxu0 0.0
      %2713 = vmatprep.subr.mxu0 0.0
      %2714 = vmatpush2.msra.mxu0 0.0
      %2715 = vmatprep.subr.mxu0 0.0
      %2716 = vmatpush2.msra.mxu0 0.0
      %2717 = vmatprep.subr.mxu0 0.0
      %2718 = vmatpush2.msra.mxu0 0.0
      %2719 = vmatprep.subr.mxu0 0.0
      %2720 = vmatpush2.msra.mxu0 0.0
      %2721 = vmatprep.subr.mxu0 0.0
      %2722 = vmatpush2.msra.mxu0 0.0
      %2723 = vmatprep.subr.mxu0 0.0
      %2724 = vmatpush2.msra.mxu0 0.0
      %2725 = vmatprep.subr.mxu0 0.0
      %2726 = vmatpush2.msra.mxu0 0.0
      %2727 = vmatprep.subr.mxu0 %v2652
      %2728 = vmatpush2.msra.mxu0 %v2651
      %2729 = vmatprep.subr.mxu0 %v2650
      %2730 = vmatpush2.msra.mxu0 %v2649
      %2731 = vmatprep.mubr.f32.mxu0 %v2665
      %2732 = vmatmul.mubr.f32.gmra.mxu0 %v2436
      %v2733 = vpop.f32.mrf.mxu0
      %v2734 = vadd.f32 %v2662, %v2733
      %v2735 = vpop.f32.mrf.mxu0
      %v2736 = vadd.f32 %v2662, %v2735
      %2737 = vdwg.mxu0
      %2738 = vmatprep.subr.mxu0 0.0
      %2739 = vmatpush1.msra.mxu0 %v2624
      %2740 = vmatprep.subr.mxu0 0.0
      %2741 = vmatpush1.msra.mxu0 %v2618
      %2742 = vmatprep.subr.mxu0 0.0
      %2743 = vmatpush1.msra.mxu0 %v2601
      %2744 = vmatprep.subr.mxu0 0.0
      %2745 = vmatpush1.msra.mxu0 %v2595
      %2746 = vmatprep.subr.mxu0 0.0
      %2747 = vmatpush1.msra.mxu0 %v2579
      %2748 = vmatprep.subr.mxu0 0.0
      %2749 = vmatpush1.msra.mxu0 %v2573
      %2750 = vmatprep.subr.mxu0 0.0
      %2751 = vmatpush1.msra.mxu0 %v2556
      %2752 = vmatprep.subr.mxu0 0.0
      %2753 = vmatpush1.msra.mxu0 %v2550
      %2754 = vmatprep.subr.mxu0 0.0
      %2755 = vmatpush1.msra.mxu0 %v2533
      %2756 = vmatprep.subr.mxu0 0.0
      %2757 = vmatpush1.msra.mxu0 %v2527
      %2758 = vmatprep.subr.mxu0 0.0
      %2759 = vmatpush1.msra.mxu0 %v2511
      %2760 = vmatprep.subr.mxu0 0.0
      %2761 = vmatpush1.msra.mxu0 %v2505
      %2762 = vmatprep.subr.mxu0 0.0
      %2763 = vmatpush1.msra.mxu0 %v2489
      %2764 = vmatprep.subr.mxu0 0.0
      %2765 = vmatpush1.msra.mxu0 %v2483
      %2766 = vmatprep.subr.mxu0 0.0
      %2767 = vmatpush1.msra.mxu0 %v2473
      %2768 = vmatprep.subr.mxu0 0.0
      %2769 = vmatpush1.msra.mxu0 %v2472
      %2770 = vmatprep.subr.mxu0 0.0
      %2771 = vmatpush2.msra.mxu0 0.0
      %2772 = vmatprep.subr.mxu0 0.0
      %2773 = vmatpush2.msra.mxu0 0.0
      %2774 = vmatprep.subr.mxu0 0.0
      %2775 = vmatpush2.msra.mxu0 0.0
      %2776 = vmatprep.subr.mxu0 0.0
      %2777 = vmatpush2.msra.mxu0 0.0
      %2778 = vmatprep.subr.mxu0 0.0
      %2779 = vmatpush2.msra.mxu0 0.0
      %2780 = vmatprep.subr.mxu0 0.0
      %2781 = vmatpush2.msra.mxu0 0.0
      %2782 = vmatprep.subr.mxu0 0.0
      %2783 = vmatpush2.msra.mxu0 0.0
      %2784 = vmatprep.subr.mxu0 0.0
      %2785 = vmatpush2.msra.mxu0 0.0
      %2786 = vmatprep.subr.mxu0 0.0
      %2787 = vmatpush2.msra.mxu0 0.0
      %2788 = vmatprep.subr.mxu0 0.0
      %2789 = vmatpush2.msra.mxu0 0.0
      %2790 = vmatprep.subr.mxu0 0.0
      %2791 = vmatpush2.msra.mxu0 0.0
      %2792 = vmatprep.subr.mxu0 0.0
      %2793 = vmatpush2.msra.mxu0 0.0
      %2794 = vmatprep.subr.mxu0 0.0
      %2795 = vmatpush2.msra.mxu0 0.0
      %2796 = vmatprep.subr.mxu0 0.0
      %2797 = vmatpush2.msra.mxu0 0.0
      %2798 = vmatprep.subr.mxu0 0.0
      %2799 = vmatpush2.msra.mxu0 %v2647
      %2800 = vmatprep.subr.mxu0 0.0
      %2801 = vmatpush2.msra.mxu0 %v2641
      %2802 = vmatprep.mubr.f32.mxu0 %v2665
      %2803 = vmatmul.mubr.f32.gmra.mxu0 %v2436
      %v2804 = vpop.f32.mrf.mxu0
      %v2805 = vadd.f32 %v2662, %v2804
      %v2806 = vpop.f32.mrf.mxu0
      %2807 = vdwg.mxu0
      %v2809 = vlaneseq
      %v2810 = vshrl.u32 %v2809, 7
      %v2811 = vsub.s32 0, %v2810
      %v2812 = vrot.slane %v2440, %v2811
      %v2813 = vlaneseq
      %v2814 = vshrl.u32 %v2813, 7
      %v2815 = vsub.s32 1, %v2814
      %v2816 = vrot.slane %v2440, %v2815
      %v2817 = vlaneseq
      %v2818 = vshrl.u32 %v2817, 7
      %v2819 = vsub.s32 2, %v2818
      %v2820 = vrot.slane %v2440, %v2819
      %v2824 = vmul.f32 %v2734, %v2812
      %v2825 = vmul.f32 %v2736, %v2816
      %v2826 = vmul.f32 %v2805, %v2820
      %vm2827 = vcmp.ge.f32.partialorder %v2824, 0.0
      %vm2828 = vcmp.ge.f32.partialorder %v2825, 0.0
      %vm2829 = vcmp.ge.f32.partialorder %v2826, 0.0
      %v2830 = vmul.f32 %v2824, 0.01
      %v2831 = vmul.f32 %v2825, 0.01
      %v2832 = vmul.f32 %v2826, 0.01
      %v2833 = vsel %vm2827, %v2824, %v2830
      %v2834 = vsel %vm2828, %v2825, %v2831
      %v2835 = vsel %vm2829, %v2826, %v2832
      %v2836 = vld [vmem:[%s1 + $0x138] sm:$0xf]
      %v2837 = vld [vmem:[%s2 + $0x68] sm:$0xf]
      %s2838 = scalar_lea.vmem %s3, 32
      %v2839 = vld [vmem:[%s2838] ss:$8 sm:$0x7]
      %2843 = vrot.lane.b32.xlu0 %v2833, 19
      %v2844 = vpop.permute.xlu0 %2843
      %2845 = vrot.lane.b32.xlu0 %v2834, 19
      %v2846 = vpop.permute.xlu0 %2845
      %2847 = vrot.lane.b32.xlu0 %v2835, 19
      %v2848 = vpop.permute.xlu0 %2847
      %v2849 = vsel %vm2459, %v2844, %v2846
      %v2850 = vsel %vm2459, %v2846, %v2848
      %v2854 = vsel %vm2459, 0.0, %v2844
      %v2855 = vsel %vm633, %v2850, 0.0
      %2858 = vrot.lane.b32.xlu0 %v2854, 127
      %v2859 = vpop.permute.xlu0 %2858
      %2860 = vrot.lane.b32.xlu0 %v2849, 127
      %v2861 = vpop.permute.xlu0 %2860
      %2862 = vrot.lane.b32.xlu0 %v2855, 127
      %v2863 = vpop.permute.xlu0 %2862
      %v2864 = vsel %vm537, %v2859, %v2861
      %v2865 = vsel %vm537, %v2861, %v2863
      %2869 = vrot.lane.b32.xlu0 %v2854, 126
      %v2870 = vpop.permute.xlu0 %2869
      %2871 = vrot.lane.b32.xlu0 %v2849, 126
      %v2872 = vpop.permute.xlu0 %2871
      %2873 = vrot.lane.b32.xlu0 %v2855, 126
      %v2874 = vpop.permute.xlu0 %2873
      %v2875 = vsel %vm553, %v2870, %v2872
      %v2876 = vsel %vm553, %v2872, %v2874
      %2880 = vrot.lane.b32.xlu0 %v2854, 110
      %v2881 = vpop.permute.xlu0 %2880
      %2882 = vrot.lane.b32.xlu0 %v2849, 110
      %v2883 = vpop.permute.xlu0 %2882
      %2884 = vrot.lane.b32.xlu0 %v2855, 110
      %v2885 = vpop.permute.xlu0 %2884
      %v2886 = vsel %vm2534, %v2881, %v2883
      %v2887 = vsel %vm2534, %v2883, %v2885
      %2891 = vrot.lane.b32.xlu0 %v2854, 109
      %v2892 = vpop.permute.xlu0 %2891
      %2893 = vrot.lane.b32.xlu0 %v2849, 109
      %v2894 = vpop.permute.xlu0 %2893
      %2895 = vrot.lane.b32.xlu0 %v2855, 109
      %v2896 = vpop.permute.xlu0 %2895
      %v2897 = vsel %vm2557, %v2892, %v2894
      %v2898 = vsel %vm2557, %v2894, %v2896
      %2902 = vrot.lane.b32.xlu0 %v2854, 108
      %v2903 = vpop.permute.xlu0 %2902
      %2904 = vrot.lane.b32.xlu0 %v2849, 108
      %v2905 = vpop.permute.xlu0 %2904
      %2906 = vrot.lane.b32.xlu0 %v2855, 108
      %v2907 = vpop.permute.xlu0 %2906
      %v2908 = vsel %vm569, %v2903, %v2905
      %v2909 = vsel %vm569, %v2905, %v2907
      %2913 = vrot.lane.b32.xlu0 %v2854, 92
      %v2914 = vpop.permute.xlu0 %2913
      %2915 = vrot.lane.b32.xlu0 %v2849, 92
      %v2916 = vpop.permute.xlu0 %2915
      %2917 = vrot.lane.b32.xlu0 %v2855, 92
      %v2918 = vpop.permute.xlu0 %2917
      %v2919 = vsel %vm2602, %v2914, %v2916
      %v2920 = vsel %vm2602, %v2916, %v2918
      %2924 = vrot.lane.b32.xlu0 %v2854, 91
      %v2925 = vpop.permute.xlu0 %2924
      %2926 = vrot.lane.b32.xlu0 %v2849, 91
      %v2927 = vpop.permute.xlu0 %2926
      %2928 = vrot.lane.b32.xlu0 %v2855, 91
      %v2929 = vpop.permute.xlu0 %2928
      %v2930 = vsel %vm2625, %v2925, %v2927
      %v2931 = vsel %vm2625, %v2927, %v2929
      %2935 = vrot.lane.b32.xlu0 %v2854, 90
      %v2936 = vpop.permute.xlu0 %2935
      %2937 = vrot.lane.b32.xlu0 %v2849, 90
      %v2938 = vpop.permute.xlu0 %2937
      %2939 = vrot.lane.b32.xlu0 %v2855, 90
      %v2940 = vpop.permute.xlu0 %2939
      %v2941 = vsel %vm2648, %v2936, %v2938
      %v2942 = vsel %vm2648, %v2938, %v2940
      %2947 = vset.pattern.permute.xlu0 0
      %2948 = vperm.xlu0 %2947, %v2837
      %v2949 = vpop.permute.xlu0 %2948
      %v2952 = vsel %vm662, %v2836, 0
      %2954 = vmatprep.subr.mxu0 0.0
      %2955 = vmatpush1.msra.mxu0 0.0
      %2956 = vmatprep.subr.mxu0 0.0
      %2957 = vmatpush1.msra.mxu0 0.0
      %2958 = vmatprep.subr.mxu0 0.0
      %2959 = vmatpush1.msra.mxu0 0.0
      %2960 = vmatprep.subr.mxu0 0.0
      %2961 = vmatpush1.msra.mxu0 0.0
      %2962 = vmatprep.subr.mxu0 0.0
      %2963 = vmatpush1.msra.mxu0 0.0
      %2964 = vmatprep.subr.mxu0 0.0
      %2965 = vmatpush1.msra.mxu0 0.0
      %2966 = vmatprep.subr.mxu0 0.0
      %2967 = vmatpush1.msra.mxu0 0.0
      %2968 = vmatprep.subr.mxu0 %v2942
      %2969 = vmatpush1.msra.mxu0 %v2941
      %2970 = vmatprep.subr.mxu0 %v2931
      %2971 = vmatpush1.msra.mxu0 %v2930
      %2972 = vmatprep.subr.mxu0 %v2920
      %2973 = vmatpush1.msra.mxu0 %v2919
      %2974 = vmatprep.subr.mxu0 %v2909
      %2975 = vmatpush1.msra.mxu0 %v2908
      %2976 = vmatprep.subr.mxu0 %v2898
      %2977 = vmatpush1.msra.mxu0 %v2897
      %2978 = vmatprep.subr.mxu0 %v2887
      %2979 = vmatpush1.msra.mxu0 %v2886
      %2980 = vmatprep.subr.mxu0 %v2876
      %2981 = vmatpush1.msra.mxu0 %v2875
      %2982 = vmatprep.subr.mxu0 %v2865
      %2983 = vmatpush1.msra.mxu0 %v2864
      %2984 = vmatprep.subr.mxu0 %v2849
      %2985 = vmatpush1.msra.mxu0 %v2854
      %2986 = vmatprep.subr.mxu0 0.0
      %2987 = vmatpush2.msra.mxu0 0.0
      %2988 = vmatprep.subr.mxu0 0.0
      %2989 = vmatpush2.msra.mxu0 0.0
      %2990 = vmatprep.subr.mxu0 0.0
      %2991 = vmatpush2.msra.mxu0 0.0
      %2992 = vmatprep.subr.mxu0 0.0
      %2993 = vmatpush2.msra.mxu0 0.0
      %2994 = vmatprep.subr.mxu0 0.0
      %2995 = vmatpush2.msra.mxu0 0.0
      %2996 = vmatprep.subr.mxu0 0.0
      %2997 = vmatpush2.msra.mxu0 0.0
      %2998 = vmatprep.subr.mxu0 0.0
      %2999 = vmatpush2.msra.mxu0 0.0
      %3000 = vmatprep.subr.mxu0 0.0
      %3001 = vmatpush2.msra.mxu0 0.0
      %3002 = vmatprep.subr.mxu0 0.0
      %3003 = vmatpush2.msra.mxu0 0.0
      %3004 = vmatprep.subr.mxu0 0.0
      %3005 = vmatpush2.msra.mxu0 0.0
      %3006 = vmatprep.subr.mxu0 0.0
      %3007 = vmatpush2.msra.mxu0 0.0
      %3008 = vmatprep.subr.mxu0 0.0
      %3009 = vmatpush2.msra.mxu0 0.0
      %3010 = vmatprep.subr.mxu0 0.0
      %3011 = vmatpush2.msra.mxu0 0.0
      %3012 = vmatprep.subr.mxu0 0.0
      %3013 = vmatpush2.msra.mxu0 0.0
      %3014 = vmatprep.subr.mxu0 0.0
      %3015 = vmatpush2.msra.mxu0 0.0
      %3016 = vmatprep.subr.mxu0 0.0
      %3017 = vmatpush2.msra.mxu0 0.0
      %3018 = vmatprep.mubr.f32.mxu0 0.0
      %3019 = vmatmul.mubr.f32.gmra.mxu0 %v2952
      %v3020 = vpop.f32.mrf.mxu0
      %v3021 = vadd.f32 %v2949, %v3020
      %v3022 = vpop.f32.mrf.mxu0
      %v3023 = vadd.f32 %v2949, %v3022
      %3024 = vdwg.mxu0
      %3025 = vmatprep.subr.mxu0 0.0
      %3026 = vmatpush1.msra.mxu0 0.0
      %3027 = vmatprep.subr.mxu0 0.0
      %3028 = vmatpush1.msra.mxu0 0.0
      %3029 = vmatprep.subr.mxu0 0.0
      %3030 = vmatpush1.msra.mxu0 0.0
      %3031 = vmatprep.subr.mxu0 0.0
      %3032 = vmatpush1.msra.mxu0 0.0
      %3033 = vmatprep.subr.mxu0 0.0
      %3034 = vmatpush1.msra.mxu0 0.0
      %3035 = vmatprep.subr.mxu0 0.0
      %3036 = vmatpush1.msra.mxu0 0.0
      %3037 = vmatprep.subr.mxu0 0.0
      %3038 = vmatpush1.msra.mxu0 0.0
      %3039 = vmatprep.subr.mxu0 0.0
      %3040 = vmatpush1.msra.mxu0 %v2940
      %3041 = vmatprep.subr.mxu0 0.0
      %3042 = vmatpush1.msra.mxu0 %v2929
      %3043 = vmatprep.subr.mxu0 0.0
      %3044 = vmatpush1.msra.mxu0 %v2918
      %3045 = vmatprep.subr.mxu0 0.0
      %3046 = vmatpush1.msra.mxu0 %v2907
      %3047 = vmatprep.subr.mxu0 0.0
      %3048 = vmatpush1.msra.mxu0 %v2896
      %3049 = vmatprep.subr.mxu0 0.0
      %3050 = vmatpush1.msra.mxu0 %v2885
      %3051 = vmatprep.subr.mxu0 0.0
      %3052 = vmatpush1.msra.mxu0 %v2874
      %3053 = vmatprep.subr.mxu0 0.0
      %3054 = vmatpush1.msra.mxu0 %v2863
      %3055 = vmatprep.subr.mxu0 0.0
      %3056 = vmatpush1.msra.mxu0 %v2855
      %3057 = vmatprep.subr.mxu0 0.0
      %3058 = vmatpush2.msra.mxu0 0.0
      %3059 = vmatprep.subr.mxu0 0.0
      %3060 = vmatpush2.msra.mxu0 0.0
      %3061 = vmatprep.subr.mxu0 0.0
      %3062 = vmatpush2.msra.mxu0 0.0
      %3063 = vmatprep.subr.mxu0 0.0
      %3064 = vmatpush2.msra.mxu0 0.0
      %3065 = vmatprep.subr.mxu0 0.0
      %3066 = vmatpush2.msra.mxu0 0.0
      %3067 = vmatprep.subr.mxu0 0.0
      %3068 = vmatpush2.msra.mxu0 0.0
      %3069 = vmatprep.subr.mxu0 0.0
      %3070 = vmatpush2.msra.mxu0 0.0
      %3071 = vmatprep.subr.mxu0 0.0
      %3072 = vmatpush2.msra.mxu0 0.0
      %3073 = vmatprep.subr.mxu0 0.0
      %3074 = vmatpush2.msra.mxu0 0.0
      %3075 = vmatprep.subr.mxu0 0.0
      %3076 = vmatpush2.msra.mxu0 0.0
      %3077 = vmatprep.subr.mxu0 0.0
      %3078 = vmatpush2.msra.mxu0 0.0
      %3079 = vmatprep.subr.mxu0 0.0
      %3080 = vmatpush2.msra.mxu0 0.0
      %3081 = vmatprep.subr.mxu0 0.0
      %3082 = vmatpush2.msra.mxu0 0.0
      %3083 = vmatprep.subr.mxu0 0.0
      %3084 = vmatpush2.msra.mxu0 0.0
      %3085 = vmatprep.subr.mxu0 0.0
      %3086 = vmatpush2.msra.mxu0 0.0
      %3087 = vmatprep.subr.mxu0 0.0
      %3088 = vmatpush2.msra.mxu0 0.0
      %3089 = vmatprep.mubr.f32.mxu0 0.0
      %3090 = vmatmul.mubr.f32.gmra.mxu0 %v2952
      %v3091 = vpop.f32.mrf.mxu0
      %v3092 = vadd.f32 %v2949, %v3091
      %v3093 = vpop.f32.mrf.mxu0
      %3094 = vdwg.mxu0
      %v3096 = vlaneseq
      %v3097 = vshrl.u32 %v3096, 7
      %v3098 = vsub.s32 0, %v3097
      %v3099 = vrot.slane %v2839, %v3098
      %v3100 = vlaneseq
      %v3101 = vshrl.u32 %v3100, 7
      %v3102 = vsub.s32 1, %v3101
      %v3103 = vrot.slane %v2839, %v3102
      %v3104 = vlaneseq
      %v3105 = vshrl.u32 %v3104, 7
      %v3106 = vsub.s32 2, %v3105
      %v3107 = vrot.slane %v2839, %v3106
      %v3111 = vmul.f32 %v3021, %v3099
      %v3112 = vmul.f32 %v3023, %v3103
      %v3113 = vmul.f32 %v3092, %v3107
      %v3114 = vsel %vm324, %v3111, 0.0
      %v3115 = vsel %vm324, %v3112, 0.0
      %v3116 = vsel %vm324, %v3113, 0.0
      %vm3117 = vcmask 556032
      %v3118 = vsel %vm3117, %v3116, 0.0
      %3119 = vst [vmem:[%s305] sm:$0xff] %v3114
      %3120 = vst [vmem:[%s305 + $0x8] sm:$0xff] %v3115
      %3121 = vst [vmem:[%s305 + $0x10] sm:$0xff] %v3118
      %p3122 = scmp.lt.s32.totalorder %s19, 1
      %s3123 = scalar_select %p3122, %s19, 1
      %s3124 = smul.addr %s3123, 3
      %s3125 = smul.addr %s3124, 8
      %s3126 = scalar_lea.vmem %s8, %s3125
      // Predicated region
      $region53: #{autoencoder_forward.1} parent=51 // pred_check
        %p3127 = pneg %p210
      $region54: #{autoencoder_forward.1} parent=51 // pred_check_branch
        %3129 = sbr.rel (%p3127) target = $region56
      $region55: #{autoencoder_forward.1} parent=51 // pred_region
        _
      $region56: #{autoencoder_forward.1} parent=51 // pred_fallthru
        _
    $region52: #{autoencoder_forward.1} parent=5 // pred_fallthru
      _
    %p3130 = scmp.le.s32.totalorder 2, %s14
    // Predicated region
    $region57: #{autoencoder_forward.1} parent=5 // pred_check
      %p3131 = pneg %p3130
    $region58: #{autoencoder_forward.1} parent=5 // pred_check_branch
      %3133 = sbr.rel (%p3131) target = $region60
    $region59: #{autoencoder_forward.1} parent=5 // pred_region
      %s3134 = ssub.s32 %s14, 2
      // Predicated region
      $region61: #{autoencoder_forward.1} parent=59 // pred_check
        %p3135 = pneg %p216
      $region62: #{autoencoder_forward.1} parent=59 // pred_check_branch
        %3137 = sbr.rel (%p3135) target = $region64
      $region63: #{autoencoder_forward.1} parent=59 // pred_region
        %p3138 = scmp.lt.s32.totalorder %s20, 1
        %s3139 = scalar_select %p3138, %s20, 1
        %s3140 = smul.addr %s3139, 3
        %s3141 = smul.addr %s3140, 8
        %s3142 = scalar_lea.vmem %s8, %s3141
      $region64: #{autoencoder_forward.1} parent=59 // pred_fallthru
        _
    $region60: #{autoencoder_forward.1} parent=5 // pred_fallthru
      _
  $region6: #{autoencoder_forward.1} parent=0 // loop_footer
    %s18 = sadd.s32 1, %s14
  $region7: #{autoencoder_forward.1} parent=0 // loop_footer_branch
    %13 = sbr.rel target = $region3
  $region8: #{autoencoder_forward.1} parent=0 // loop_exit
    _

</llo_original>
